<compile_context>
chip_gen: v7x
topology: tpu7x:2x2x1
jax: 0.10.0
libtpu: 0.0.40
codegen_flags: <defaults>
</compile_context>

<pallas_src>
import functools
import numpy as np

import jax
import jax.numpy as jnp
from jax.experimental import pallas as pl
from jax.experimental.pallas import tpu as pltpu


# ----------------------------------------------------------------------------
# Pallas kernel: fused MLP + volume rendering for a tile of rays
# ----------------------------------------------------------------------------
def _mlp_render_kernel(S, F,
                       feats_ref, deltas_ref,
                       w1_ref, b1_ref, w2_ref, b2_ref, w3_ref, b3_ref,
                       out_ref):
    TR = deltas_ref.shape[0]          # rays in this tile
    P = TR * S                        # points in this tile

    # ---- 3-layer MLP (Linear/ReLU/Linear/ReLU/Linear), fused output heads ----
    x = feats_ref[...]                                                      # (P, F) bf16/f32
    h = jnp.dot(x, w1_ref[...], preferred_element_type=jnp.float32) + b1_ref[...]
    h = jnp.maximum(h, 0.0)
    h = jnp.dot(h.astype(w2_ref.dtype), w2_ref[...],
                preferred_element_type=jnp.float32) + b2_ref[...]
    h = jnp.maximum(h, 0.0)
    y = jnp.dot(h.astype(w3_ref.dtype), w3_ref[...],
                preferred_element_type=jnp.float32) + b3_ref[...]           # (P, 1+F)

    density = jnp.maximum(y[:, :1], 0.0)                                    # (P, 1)
    rgb = x.astype(jnp.float32) + y[:, 1:]                                  # (P, F) residual

    # ---- volume rendering, lane-dense (TR, S) ----
    sigma = density.reshape(TR, S)                                          # samples onto lanes
    dd = sigma * deltas_ref[...]                                            # (TR, S)

    # inclusive per-ray cumsum via small triangular matmul (matches torch.cumsum)
    si = jax.lax.broadcasted_iota(jnp.int32, (S, S), 0)
    sj = jax.lax.broadcasted_iota(jnp.int32, (S, S), 1)
    tri = (si <= sj).astype(jnp.float32)                                    # (S, S)
    cs = jnp.dot(dd, tri, preferred_element_type=jnp.float32)               # (TR, S)

    alpha = 1.0 - jnp.exp(-dd)
    trans = jnp.exp(-cs)
    wgt = alpha * trans                                                     # (TR, S)

    weighted = wgt.reshape(TR, S, 1) * rgb.reshape(TR, S, F)                # (TR, S, F)
    out_ref[...] = jnp.sum(weighted, axis=1)                                # (TR, F)


def _round_up(x, m):
    return (x + m - 1) // m * m


def choose_tile_rays(n_rays, S, *, point_budget=8192):
    """Multiple of 8, ~point_budget points per tile, prefer >=2 grid steps (v7x megacore)."""
    tile = max(8, (point_budget // max(S, 1)) // 8 * 8)
    tile = min(tile, _round_up(n_rays, 8))
    if _round_up(n_rays, tile) // tile < 2 and tile >= 16:
        tile = max(8, (tile // 2) // 8 * 8)
    return tile


def mlp_volume_render(feats, deltas, params, *, tile_rays,
                      vmem_limit_bytes=48 * 1024 * 1024):
    """feats: (N_pad*S, F) bf16/f32, deltas: (N_pad, S) f32 -> (N_pad, F) f32."""
    N_pad, S = deltas.shape
    F = feats.shape[-1]
    assert feats.shape[0] == N_pad * S
    assert N_pad % tile_rays == 0 and tile_rays % 8 == 0

    wdt = feats.dtype
    w1 = params["w1"].astype(wdt)
    w2 = params["w2"].astype(wdt)
    w3 = params["w3"].astype(wdt)
    b1 = params["b1"].astype(jnp.float32)
    b2 = params["b2"].astype(jnp.float32)
    b3 = params["b3"].astype(jnp.float32)

    kern = functools.partial(_mlp_render_kernel, S, F)

    def full_spec(shape):
        nd = len(shape)
        return pl.BlockSpec(shape, lambda i, _nd=nd: (0,) * _nd)

    return pl.pallas_call(
        kern,
        out_shape=jax.ShapeDtypeStruct((N_pad, F), jnp.float32),
        grid_spec=pltpu.PrefetchScalarGridSpec(
            num_scalar_prefetch=0,
            grid=(N_pad // tile_rays,),
            in_specs=[
                pl.BlockSpec((tile_rays * S, F), lambda i: (i, 0)),
                pl.BlockSpec((tile_rays, S), lambda i: (i, 0)),
                full_spec(w1.shape), full_spec(b1.shape),
                full_spec(w2.shape), full_spec(b2.shape),
                full_spec(w3.shape), full_spec(b3.shape),
            ],
            out_specs=pl.BlockSpec((tile_rays, F), lambda i: (i, 0)),
        ),
        compiler_params=pltpu.CompilerParams(
            dimension_semantics=("parallel",),
            vmem_limit_bytes=vmem_limit_bytes),
    )(feats, deltas, w1, b1, w2, b2, w3, b3)


# ----------------------------------------------------------------------------
# Plain-JAX glue (ray generation, pose inversion, trilinear grid_sample, upsample)
# ----------------------------------------------------------------------------
def gen_rays(poses, H2, W2, focal):
    """poses: (NP, 4, 4) camera-to-world, OpenGL convention (camera looks along -z)."""
    ys = (jnp.arange(H2, dtype=jnp.float32) + 0.5) / H2 * 2.0 - 1.0
    xs = (jnp.arange(W2, dtype=jnp.float32) + 0.5) / W2 * 2.0 - 1.0
    yy, xx = jnp.meshgrid(ys, xs, indexing="ij")
    dirs_cam = jnp.stack([xx / focal, -yy / focal, -jnp.ones_like(xx)], axis=-1)  # (H2,W2,3)
    R = poses[:, :3, :3]
    origins = poses[:, :3, 3]
    dirs = jnp.einsum("nij,hwj->nhwi", R, dirs_cam)                               # (NP,H2,W2,3)
    origins = jnp.broadcast_to(origins[:, None, None, :], dirs.shape)
    return origins, dirs


def gen_pts_from_rays(origins, dirs, z_near, z_far, S):
    t = jnp.linspace(z_near, z_far, S, dtype=jnp.float32)
    pts = origins[..., None, :] + dirs[..., None, :] * t[:, None]                 # (NP,H2,W2,S,3)
    times = jnp.broadcast_to(t, origins.shape[:-1] + (S,))
    return pts, times


def invert_pose_mats(poses):
    """Analytic inverse of rigid 4x4 pose matrices."""
    R = poses[..., :3, :3]
    t = poses[..., :3, 3]
    Rt = jnp.swapaxes(R, -1, -2)
    tt = -jnp.einsum("...ij,...j->...i", Rt, t)
    inv = jnp.zeros_like(poses)
    inv = inv.at[..., :3, :3].set(Rt).at[..., :3, 3].set(tt).at[..., 3, 3].set(1.0)
    return inv


def grid_sample_3d_zeros(vol, grid):
    """PyTorch F.grid_sample 3-D, mode='bilinear' (trilinear), padding='zeros',
    align_corners=False.  Channel-LAST: vol (N,D,H,W,C), grid (N,M,3) with (x->W,y->H,z->D)
    -> (N,M,C), so no post-sample channel transpose is needed."""
    # TODO(synk): move this gather into a Pallas kernel (scalar-prefetched cell indices +
    # manual DMA gather of the 8 corners); it dominates wall-clock at production resolutions.
    N, D, H, W, C = vol.shape

    def sample_one(vol_n, g):
        gx, gy, gz = g[:, 0], g[:, 1], g[:, 2]
        ix = ((gx + 1.0) * W - 1.0) * 0.5
        iy = ((gy + 1.0) * H - 1.0) * 0.5
        iz = ((gz + 1.0) * D - 1.0) * 0.5
        x0, y0, z0 = jnp.floor(ix), jnp.floor(iy), jnp.floor(iz)
        out = jnp.zeros((g.shape[0], C), vol.dtype)
        for dz in (0.0, 1.0):
            for dy in (0.0, 1.0):
                for dx in (0.0, 1.0):
                    xi, yi, zi = x0 + dx, y0 + dy, z0 + dz
                    wx = (ix - x0) if dx == 1.0 else (1.0 - (ix - x0))
                    wy = (iy - y0) if dy == 1.0 else (1.0 - (iy - y0))
                    wz = (iz - z0) if dz == 1.0 else (1.0 - (iz - z0))
                    valid = ((xi >= 0) & (xi <= W - 1) & (yi >= 0) & (yi <= H - 1)
                             & (zi >= 0) & (zi <= D - 1))
                    xc = jnp.clip(xi, 0, W - 1).astype(jnp.int32)
                    yc = jnp.clip(yi, 0, H - 1).astype(jnp.int32)
                    zc = jnp.clip(zi, 0, D - 1).astype(jnp.int32)
                    vals = vol_n[zc, yc, xc]                                      # (M, C)
                    out = out + vals * (wx * wy * wz * valid.astype(vol.dtype))[:, None]
        return out

    return jax.vmap(sample_one)(vol, grid)                                        # (N, M, C)


def cam_weight_baseline_mean(input_poses, target_poses):
    # 'baseline_mean' camera weighting: uniform average over input views.
    ns, niv = input_poses.shape[:2]
    ntv = target_poses.shape[1]
    return jnp.full((ns, niv, ntv), 1.0 / niv, jnp.float32)


def _interp_matrix_x2_align_corners(n):
    m = 2 * n
    out_idx = jnp.arange(m, dtype=jnp.float32)
    src = out_idx * (n - 1) / (m - 1)
    i0 = jnp.floor(src).astype(jnp.int32)
    i1 = jnp.minimum(i0 + 1, n - 1)
    frac = src - i0.astype(jnp.float32)
    M = jnp.zeros((m, n), jnp.float32)
    M = M.at[jnp.arange(m), i0].add(1.0 - frac)
    M = M.at[jnp.arange(m), i1].add(frac)
    return M


def upsample_bilinear_x2_align_corners(x):
    """nn.UpsamplingBilinear2d(scale_factor=2) == align_corners=True.  x: (N,C,h,w)."""
    _, _, h, w = x.shape
    Mh = _interp_matrix_x2_align_corners(h)
    Mw = _interp_matrix_x2_align_corners(w)
    return jnp.einsum("ah,nchw,bw->ncab", Mh, x, Mw)


def init_mlp_params(key, input_dim=16, hidden_dim=64, output_dim=17):
    """Deterministic PyTorch-Linear-like init; W stored as (in, out)."""
    def linear(k, fi, fo):
        k1, k2 = jax.random.split(k)
        b = 1.0 / np.sqrt(fi)
        W = jax.random.uniform(k1, (fi, fo), jnp.float32, -b, b)
        bias = jax.random.uniform(k2, (1, fo), jnp.float32, -b, b)
        return W, bias
    k1, k2, k3 = jax.random.split(key, 3)
    w1, b1 = linear(k1, input_dim, hidden_dim)
    w2, b2 = linear(k2, hidden_dim, hidden_dim)
    w3, b3 = linear(k3, hidden_dim, output_dim)   # fused heads: col 0 = density, 1: = feats
    return dict(w1=w1, b1=b1, w2=w2, b2=b2, w3=w3, b3=b3)


# ----------------------------------------------------------------------------
# PixelNeRFNet.forward (range_angle_feat_img=False path)
# ----------------------------------------------------------------------------
def pixel_nerf_forward(inputs_encoded, target_poses, focal, z_near, z_far,
                       mlp_params, range_angle_feat_img=False, samples_per_ray=64,
                       compute_dtype=jnp.bfloat16):
    if range_angle_feat_img:
        # TODO(synk): range-angle scatter_add histogram path not implemented (data-dependent scatter).
        raise NotImplementedError("range_angle_feat_img=True path not implemented")

    encoded_imgs, input_poses = inputs_encoded
    ns, niv, F, D, H, W = encoded_imgs.shape
    ntv = target_poses.shape[1]
    H2, W2 = H // 2, W // 2
    S = samples_per_ray

    origins, dirs = gen_rays(target_poses.reshape(ns * ntv, 4, 4), H2, W2, focal)
    pts, times = gen_pts_from_rays(origins, dirs, z_near, z_far, S)
    times = times.reshape(ns, ntv, H2, W2, S)
    pts = pts.reshape(ns, 1, ntv, H2, W2, S, 3, 1)
    pts_h = jnp.concatenate([pts, jnp.ones_like(pts[..., :1, :])], axis=-2)        # (...,4,1)

    extrinsics = invert_pose_mats(input_poses).reshape(ns, niv, 1, 1, 1, 1, 4, 4)
    local = jnp.matmul(extrinsics, pts_h)                                          # (ns,niv,ntv,H2,W2,S,4,1)
    x = local[..., 0, 0]
    y = local[..., 1, 0]
    z = -local[..., 2, 0]
    u = x / z * focal
    v = y / z * focal
    min_z, max_z = focal * z_near, focal * z_far
    w = 2.0 * (z - min_z) / (max_z - min_z) - 1.0
    uvw = jnp.stack([u, -v, -w], axis=-1)                                          # (ns,niv,ntv,H2,W2,S,3)

    # channel-last volume + channel-last gather: no big channel transpose after sampling
    vol = jnp.transpose(encoded_imgs.reshape(ns * niv, F, D, H, W), (0, 2, 3, 4, 1))
    grid = uvw.reshape(ns * niv, -1, 3)
    sampled = grid_sample_3d_zeros(vol, grid)                                      # (ns*niv, M, F)
    sampled = sampled.reshape(ns, niv, ntv, H2, W2, S, F)

    cw = cam_weight_baseline_mean(input_poses, target_poses)                       # (ns,niv,ntv)
    feats = jnp.sum(sampled * cw[:, :, :, None, None, None, None], axis=1)         # (ns,ntv,H2,W2,S,F)

    # per-sample step sizes, last = 1e10 (exact torch math), lane-dense (N_rays, S)
    deltas = jnp.concatenate(
        [times[..., 1:] - times[..., :-1],
         jnp.full(times[..., :1].shape, 1e10, jnp.float32)], axis=-1)

    N_rays = ns * ntv * H2 * W2
    feats_k = feats.reshape(N_rays * S, F).astype(compute_dtype)
    deltas_k = deltas.reshape(N_rays, S).astype(jnp.float32)

    tile_rays = choose_tile_rays(N_rays, S)
    N_pad = _round_up(N_rays, tile_rays)
    if N_pad != N_rays:                     # pad rays so the grid tiles evenly (padding ignored)
        feats_k = jnp.pad(feats_k, ((0, (N_pad - N_rays) * S), (0, 0)))
        deltas_k = jnp.pad(deltas_k, ((0, N_pad - N_rays), (0, 0)))

    renders = mlp_volume_render(feats_k, deltas_k, mlp_params,
                                tile_rays=tile_rays)[:N_rays]                      # (N_rays, F)

    renders = renders.reshape(ns, ntv, H2, W2, F)
    renders = jnp.transpose(renders, (0, 1, 4, 2, 3)).reshape(ns * ntv, F, H2, W2)
    renders = upsample_bilinear_x2_align_corners(renders)                          # (ns*ntv, F, H, W)
    return renders.reshape(ns, ntv, F, H, W)


# ----------------------------------------------------------------------------
# Pure-JAX reference for the fused kernel (sanity check only)
# ----------------------------------------------------------------------------
def _render_reference(feats, deltas, params):
    """feats: (N, S, F) f32, deltas: (N, S) f32 -> (N, F) f32."""
    x = feats.astype(jnp.float32)
    h = jax.nn.relu(x @ params["w1"] + params["b1"])
    h = jax.nn.relu(h @ params["w2"] + params["b2"])
    yo = h @ params["w3"] + params["b3"]
    density = jax.nn.relu(yo[..., 0])
    rgb = x + yo[..., 1:]
    dd = density * deltas
    alpha = 1.0 - jnp.exp(-dd)
    trans = jnp.exp(-jnp.cumsum(dd, axis=-1))
    wgt = alpha * trans
    return jnp.sum(wgt[..., None] * rgb, axis=-2)


# ----------------------------------------------------------------------------
if __name__ == "__main__":
    key = jax.random.PRNGKey(0)
    ns, niv, ntv = 1, 2, 2
    feat_dim, num_depths = 16, 8
    H = W = 16
    samples_per_ray = 8
    focal, z_near, z_far = 1.5, 0.8, 1.8

    k_enc, k_mlp, k_cf, k_cd = jax.random.split(key, 4)
    mlp_params = init_mlp_params(k_mlp, input_dim=feat_dim, hidden_dim=64, output_dim=17)

    # --- standalone check of the fused Pallas kernel against a pure-JAX reference (f32) ---
    chk_rays, chk_S = 128, samples_per_ray
    chk_feats = 0.5 * jax.random.normal(k_cf, (chk_rays, chk_S, feat_dim), jnp.float32)
    chk_deltas = jax.random.uniform(k_cd, (chk_rays, chk_S), jnp.float32, 0.02, 0.2)
    chk_deltas = chk_deltas.at[:, -1].set(1e10)
    tile = choose_tile_rays(chk_rays, chk_S)
    got = mlp_volume_render(chk_feats.reshape(-1, feat_dim), chk_deltas, mlp_params,
                            tile_rays=tile)
    ref = _render_reference(chk_feats, chk_deltas, mlp_params)
    got, ref = jax.block_until_ready((got, ref))
    max_err = float(jnp.max(jnp.abs(got - ref)))
    assert max_err < 5e-2, f"kernel mismatch vs reference: {max_err}"

    # --- full forward pass (bf16 MXU path) ---
    encoded_imgs = jax.random.normal(k_enc, (ns, niv, feat_dim, num_depths, H, W), jnp.float32)

    def look_at(eye):
        eye = jnp.asarray(eye, jnp.float32)
        z_axis = eye / jnp.linalg.norm(eye)                  # camera -z looks at origin
        up = jnp.array([0.0, 1.0, 0.0], jnp.float32)
        x_axis = jnp.cross(up, z_axis)
        x_axis = x_axis / jnp.linalg.norm(x_axis)
        y_axis = jnp.cross(z_axis, x_axis)
        pose = jnp.eye(4, dtype=jnp.float32)
        pose = pose.at[:3, 0].set(x_axis).at[:3, 1].set(y_axis)
        pose = pose.at[:3, 2].set(z_axis).at[:3, 3].set(eye)
        return pose

    radius = 1.3
    eye_at = lambda th: [radius * np.sin(th), 0.3, radius * np.cos(th)]
    input_poses = jnp.stack([look_at(eye_at(0.0)), look_at(eye_at(0.3))])[None]     # (1,2,4,4)
    target_poses = jnp.stack([look_at(eye_at(0.15)), look_at(eye_at(0.45))])[None]  # (1,2,4,4)

    out = pixel_nerf_forward((encoded_imgs, input_poses), target_poses,
                             focal, z_near, z_far, mlp_params,
                             range_angle_feat_img=False,
                             samples_per_ray=samples_per_ray,
                             compute_dtype=jnp.bfloat16)
    out = jax.block_until_ready(out)
    assert out.shape == (ns, ntv, feat_dim, H, W), out.shape
    assert bool(jnp.all(jnp.isfinite(out)))
    print("KERNEL_OK")
</pallas_src>

<mosaic_0001>
module attributes {stable_mosaic.version = 11 : i64} {
  func.func @_mlp_render_kernel(%arg0: i32, %arg1: memref<512x16xf32, #tpu.memory_space<vmem>>, %arg2: memref<64x8xf32, #tpu.memory_space<vmem>>, %arg3: memref<16x64xf32, #tpu.memory_space<vmem>>, %arg4: memref<1x64xf32, #tpu.memory_space<vmem>>, %arg5: memref<64x64xf32, #tpu.memory_space<vmem>>, %arg6: memref<1x64xf32, #tpu.memory_space<vmem>>, %arg7: memref<64x17xf32, #tpu.memory_space<vmem>>, %arg8: memref<1x17xf32, #tpu.memory_space<vmem>>, %arg9: memref<64x16xf32, #tpu.memory_space<vmem>>) attributes {dimension_semantics = [#tpu.dimension_semantics<parallel>], iteration_bounds = array<i64: 2>, scalar_prefetch = 0 : i64, scratch_operands = 0 : i64, tpu.core_type = #tpu.core_type<tc>, window_params = [{transform_indices = @transform_0, window_bounds = array<i64: 512, 16>}, {transform_indices = @transform_1, window_bounds = array<i64: 64, 8>}, {pipeline_mode = #tpu.pipeline_mode<synchronous>, transform_indices = @transform_2, window_bounds = array<i64: 16, 64>}, {pipeline_mode = #tpu.pipeline_mode<synchronous>, transform_indices = @transform_3, window_bounds = array<i64: 1, 64>}, {pipeline_mode = #tpu.pipeline_mode<synchronous>, transform_indices = @transform_4, window_bounds = array<i64: 64, 64>}, {pipeline_mode = #tpu.pipeline_mode<synchronous>, transform_indices = @transform_5, window_bounds = array<i64: 1, 64>}, {pipeline_mode = #tpu.pipeline_mode<synchronous>, transform_indices = @transform_6, window_bounds = array<i64: 64, 17>}, {pipeline_mode = #tpu.pipeline_mode<synchronous>, transform_indices = @transform_7, window_bounds = array<i64: 1, 17>}, {transform_indices = @transform_8, window_bounds = array<i64: 64, 16>}]} {
    %c0 = arith.constant 0 : index
    %c0_0 = arith.constant 0 : index
    %0 = vector.load %arg1[%c0, %c0_0] : memref<512x16xf32, #tpu.memory_space<vmem>>, vector<512x16xf32>
    %c0_1 = arith.constant 0 : index
    %c0_2 = arith.constant 0 : index
    %1 = vector.load %arg3[%c0_1, %c0_2] : memref<16x64xf32, #tpu.memory_space<vmem>>, vector<16x64xf32>
    %cst = arith.constant dense<0.000000e+00> : vector<512x64xf32>
    %2 = tpu.matmul %0, %1, %cst {dimension_numbers = #tpu.dot_dimension_numbers<[1], [0], [0], [1], [0, 0, 1, 1], [], []>} : vector<512x16xf32>, vector<16x64xf32>, vector<512x64xf32> -> vector<512x64xf32>
    %c0_3 = arith.constant 0 : index
    %c0_4 = arith.constant 0 : index
    %3 = vector.load %arg4[%c0_3, %c0_4] : memref<1x64xf32, #tpu.memory_space<vmem>>, vector<1x64xf32>
    %4 = vector.broadcast %3 : vector<1x64xf32> to vector<512x64xf32>
    %5 = arith.addf %2, %4 : vector<512x64xf32>
    %cst_5 = arith.constant 0.000000e+00 : f32
    %6 = vector.broadcast %cst_5 : f32 to vector<512x64xf32>
    %7 = arith.maximumf %5, %6 : vector<512x64xf32>
    %c0_6 = arith.constant 0 : index
    %c0_7 = arith.constant 0 : index
    %8 = vector.load %arg5[%c0_6, %c0_7] : memref<64x64xf32, #tpu.memory_space<vmem>>, vector<64x64xf32>
    %cst_8 = arith.constant dense<0.000000e+00> : vector<512x64xf32>
    %9 = tpu.matmul %7, %8, %cst_8 {dimension_numbers = #tpu.dot_dimension_numbers<[1], [0], [0], [1], [0, 0, 1, 1], [], []>} : vector<512x64xf32>, vector<64x64xf32>, vector<512x64xf32> -> vector<512x64xf32>
    %c0_9 = arith.constant 0 : index
    %c0_10 = arith.constant 0 : index
    %10 = vector.load %arg6[%c0_9, %c0_10] : memref<1x64xf32, #tpu.memory_space<vmem>>, vector<1x64xf32>
    %11 = vector.broadcast %10 : vector<1x64xf32> to vector<512x64xf32>
    %12 = arith.addf %9, %11 : vector<512x64xf32>
    %cst_11 = arith.constant 0.000000e+00 : f32
    %13 = vector.broadcast %cst_11 : f32 to vector<512x64xf32>
    %14 = arith.maximumf %12, %13 : vector<512x64xf32>
    %c0_12 = arith.constant 0 : index
    %c0_13 = arith.constant 0 : index
    %15 = vector.load %arg7[%c0_12, %c0_13] : memref<64x17xf32, #tpu.memory_space<vmem>>, vector<64x17xf32>
    %cst_14 = arith.constant dense<0.000000e+00> : vector<512x17xf32>
    %16 = tpu.matmul %14, %15, %cst_14 {dimension_numbers = #tpu.dot_dimension_numbers<[1], [0], [0], [1], [0, 0, 1, 1], [], []>} : vector<512x64xf32>, vector<64x17xf32>, vector<512x17xf32> -> vector<512x17xf32>
    %c0_15 = arith.constant 0 : index
    %c0_16 = arith.constant 0 : index
    %17 = vector.load %arg8[%c0_15, %c0_16] : memref<1x17xf32, #tpu.memory_space<vmem>>, vector<1x17xf32>
    %18 = vector.broadcast %17 : vector<1x17xf32> to vector<512x17xf32>
    %19 = arith.addf %16, %18 : vector<512x17xf32>
    %20 = vector.extract_strided_slice %19 {offsets = [0, 0], sizes = [512, 1], strides = [1, 1]} : vector<512x17xf32> to vector<512x1xf32>
    %cst_17 = arith.constant 0.000000e+00 : f32
    %21 = vector.broadcast %cst_17 : f32 to vector<512x1xf32>
    %22 = arith.maximumf %20, %21 : vector<512x1xf32>
    %23 = vector.extract_strided_slice %19 {offsets = [0, 1], sizes = [512, 16], strides = [1, 1]} : vector<512x17xf32> to vector<512x16xf32>
    %24 = arith.addf %0, %23 : vector<512x16xf32>
    %25 = vector.shape_cast %22 : vector<512x1xf32> to vector<64x8xf32>
    %c0_18 = arith.constant 0 : index
    %c0_19 = arith.constant 0 : index
    %26 = vector.load %arg2[%c0_18, %c0_19] : memref<64x8xf32, #tpu.memory_space<vmem>>, vector<64x8xf32>
    %27 = arith.mulf %25, %26 : vector<64x8xf32>
    %28 = tpu.iota {dimensions = array<i32: 0>} : vector<8x8xi32>
    %29 = tpu.iota {dimensions = array<i32: 1>} : vector<8x8xi32>
    %30 = arith.cmpi sle, %28, %29 : vector<8x8xi32>
    %31 = arith.extui %30 : vector<8x8xi1> to vector<8x8xi32>
    %32 = arith.sitofp %31 : vector<8x8xi32> to vector<8x8xf32>
    %cst_20 = arith.constant dense<0.000000e+00> : vector<64x8xf32>
    %33 = tpu.matmul %27, %32, %cst_20 {dimension_numbers = #tpu.dot_dimension_numbers<[1], [0], [0], [1], [0, 0, 1, 1], [], []>} : vector<64x8xf32>, vector<8x8xf32>, vector<64x8xf32> -> vector<64x8xf32>
    %cst_21 = arith.constant 0.000000e+00 : f32
    %34 = vector.broadcast %cst_21 : f32 to vector<64x8xf32>
    %35 = arith.subf %34, %27 : vector<64x8xf32>
    %36 = math.exp %35 : vector<64x8xf32>
    %cst_22 = arith.constant 1.000000e+00 : f32
    %37 = vector.broadcast %cst_22 : f32 to vector<64x8xf32>
    %38 = arith.subf %37, %36 : vector<64x8xf32>
    %cst_23 = arith.constant 0.000000e+00 : f32
    %39 = vector.broadcast %cst_23 : f32 to vector<64x8xf32>
    %40 = arith.subf %39, %33 : vector<64x8xf32>
    %41 = math.exp %40 : vector<64x8xf32>
    %42 = arith.mulf %38, %41 : vector<64x8xf32>
    %43 = vector.shape_cast %42 : vector<64x8xf32> to vector<64x8x1xf32>
    %44 = vector.shape_cast %24 : vector<512x16xf32> to vector<64x8x16xf32>
    %45 = vector.broadcast %43 : vector<64x8x1xf32> to vector<64x8x16xf32>
    %46 = arith.mulf %45, %44 : vector<64x8x16xf32>
    %cst_24 = arith.constant dense<0.000000e+00> : vector<64x16xf32>
    %47 = vector.multi_reduction <add>, %46, %cst_24 [1] : vector<64x8x16xf32> to vector<64x16xf32>
    %c0_25 = arith.constant 0 : index
    %c0_26 = arith.constant 0 : index
    %48 = vector.load %arg9[%c0_25, %c0_26] : memref<64x16xf32, #tpu.memory_space<vmem>>, vector<64x16xf32>
    tpu.vector_store %arg9[%c0_25, %c0_26], %47 {strides = array<i32>} : memref<64x16xf32, #tpu.memory_space<vmem>>, vector<64x16xf32>,
    return
  }
  func.func @transform_0(%arg0: i32) -> (i32, i32) {
    %c0_i32 = arith.constant 0 : i32
    %c0_i32_0 = arith.constant 0 : i32
    return %arg0, %c0_i32 : i32, i32
  }
  func.func @transform_1(%arg0: i32) -> (i32, i32) {
    %c0_i32 = arith.constant 0 : i32
    %c0_i32_0 = arith.constant 0 : i32
    return %arg0, %c0_i32 : i32, i32
  }
  func.func @transform_2(%arg0: i32) -> (i32, i32) {
    %c0_i32 = arith.constant 0 : i32
    %c0_i32_0 = arith.constant 0 : i32
    %c0_i32_1 = arith.constant 0 : i32
    return %c0_i32, %c0_i32_0 : i32, i32
  }
  func.func @transform_3(%arg0: i32) -> (i32, i32) {
    %c0_i32 = arith.constant 0 : i32
    %c0_i32_0 = arith.constant 0 : i32
    %c0_i32_1 = arith.constant 0 : i32
    return %c0_i32, %c0_i32_0 : i32, i32
  }
  func.func @transform_4(%arg0: i32) -> (i32, i32) {
    %c0_i32 = arith.constant 0 : i32
    %c0_i32_0 = arith.constant 0 : i32
    %c0_i32_1 = arith.constant 0 : i32
    return %c0_i32, %c0_i32_0 : i32, i32
  }
  func.func @transform_5(%arg0: i32) -> (i32, i32) {
    %c0_i32 = arith.constant 0 : i32
    %c0_i32_0 = arith.constant 0 : i32
    %c0_i32_1 = arith.constant 0 : i32
    return %c0_i32, %c0_i32_0 : i32, i32
  }
  func.func @transform_6(%arg0: i32) -> (i32, i32) {
    %c0_i32 = arith.constant 0 : i32
    %c0_i32_0 = arith.constant 0 : i32
    %c0_i32_1 = arith.constant 0 : i32
    return %c0_i32, %c0_i32_0 : i32, i32
  }
  func.func @transform_7(%arg0: i32) -> (i32, i32) {
    %c0_i32 = arith.constant 0 : i32
    %c0_i32_0 = arith.constant 0 : i32
    %c0_i32_1 = arith.constant 0 : i32
    return %c0_i32, %c0_i32_0 : i32, i32
  }
  func.func @transform_8(%arg0: i32) -> (i32, i32) {
    %c0_i32 = arith.constant 0 : i32
    %c0_i32_0 = arith.constant 0 : i32
    return %arg0, %c0_i32 : i32, i32
  }
}

</mosaic_0001>

<llo_original>
// kernel: tpu_custom_call.1
$region0: #{tpu_custom_call.1}
  #allocation0 [shape = 'u32[]', space=smem, size = 0x4, offset = 0x4, fixed_abs, tag = 'smem constant byte address 0x4 - core index']
  #allocation1 [shape = 'u32[144,128]{1,0:T(1,128)}', space=vmem, size = 0x12000, scoped, tag = 'internal scratch']
  %s0 = inlined_call_operand.vmem [shape: f32[1024,16], index: 0, kind: input, shape index: {}]
  %s1 = inlined_call_operand.vmem [shape: f32[128,8], index: 1, kind: input, shape index: {}]
  %s2 = inlined_call_operand.vmem [shape: f32[16,64], index: 2, kind: input, shape index: {}]
  %s3 = inlined_call_operand.vmem [shape: f32[1,64], index: 3, kind: input, shape index: {}]
  %s4 = inlined_call_operand.vmem [shape: f32[64,64], index: 4, kind: input, shape index: {}]
  %s5 = inlined_call_operand.vmem [shape: f32[1,64], index: 5, kind: input, shape index: {}]
  %s6 = inlined_call_operand.vmem [shape: f32[64,17], index: 6, kind: input, shape index: {}]
  %s7 = inlined_call_operand.vmem [shape: f32[1,17], index: 7, kind: input, shape index: {}]
  %s8 = inlined_call_operand.vmem [shape: f32[128,16], index: 8, kind: output, shape index: {}]
  %s9 = sld [smem:[#allocation0]]
  $region65: #{tpu_custom_call.1} parent=0
    _
  %s11 = ssub.s32 1, %s9
  %s12 = scalar_select 0, %s11, %s9
  loop: start=0, step=1, limit=4
  $region2: #{tpu_custom_call.1} parent=0 // loop_pre_header
    _
  $region3: #{tpu_custom_call.1} parent=0 // loop_header
    %s14 = sphi 0, %s18
    %p15 = scmp.ge.s32.totalorder %s14, 4
    %s24 = sphi 0, %s26
    %s27 = sphi 0, %s24
    %s28 = sphi 0, %s27
    %s44 = sphi 0, %s28
    %s50 = sphi 0, %s52
    %s53 = sphi 0, %s50
    %s54 = sphi 0, %s53
    %s70 = sphi 0, %s54
    %s74 = sphi 0, %s74
    %s76 = sphi 0, %s74
    %s77 = sphi 0, %s76
    %s91 = sphi 0, %s77
    %s95 = sphi 0, %s95
    %s97 = sphi 0, %s95
    %s98 = sphi 0, %s97
    %s112 = sphi 0, %s98
    %s116 = sphi 0, %s116
    %s118 = sphi 0, %s116
    %s119 = sphi 0, %s118
    %s133 = sphi 0, %s119
    %s137 = sphi 0, %s137
    %s139 = sphi 0, %s137
    %s140 = sphi 0, %s139
    %s154 = sphi 0, %s140
    %s158 = sphi 0, %s158
    %s160 = sphi 0, %s158
    %s161 = sphi 0, %s160
    %s175 = sphi 0, %s161
    %s179 = sphi 0, %s179
    %s181 = sphi 0, %s179
    %s182 = sphi 0, %s181
    %s196 = sphi 0, %s182
    %s202 = sphi 0, %s204
    %s205 = sphi 0, %s202
    %s206 = sphi 0, %s205
    %s222 = sphi 0, %s206
  $region4: #{tpu_custom_call.1} parent=0 // loop_header_branch
    %17 = sbr.rel (%p15) target = $region8
  $region5: #{tpu_custom_call.1} parent=0 // loop_body
    %s19 = ssub.s32 %s14, 1
    %s20 = ssub.s32 %s14, 2
    %s21 = sadd.s32 %s14, 1
    %s22 = ssub.s32 %s14, %s21
    %p23 = scmp.eq.s32.totalorder %s22, 0
    %s25 = sadd.s32 %s24, 1
    %s26 = scalar_select %p23, %s24, %s25
    %p29 = pneg %p23
    %p30 = scmp.eq.s32.totalorder %s14, 1
    %p31 = por %p29, %p30
    %p32 = scmp.ne.s32.totalorder %s24, %s27
    %p33 = scmp.eq.s32.totalorder %s14, 0
    %p34 = por %p32, %p33
    %p35 = scmp.ne.s32.totalorder %s24, %s27
    %p36 = scmp.eq.s32.totalorder %s19, 1
    %p37 = por %p35, %p36
    %p38 = scmp.ne.s32.totalorder %s27, %s28
    %p39 = scmp.eq.s32.totalorder %s19, 0
    %p40 = por %p38, %p39
    %p41 = scmp.ne.s32.totalorder %s27, %s28
    %p42 = scmp.eq.s32.totalorder %s20, 1
    %p43 = por %p41, %p42
    %p45 = scmp.ne.s32.totalorder %s28, %s44
    %p46 = scmp.eq.s32.totalorder %s20, 0
    %p47 = por %p45, %p46
    %s48 = ssub.s32 %s14, %s21
    %p49 = scmp.eq.s32.totalorder %s48, 0
    %s51 = sadd.s32 %s50, 1
    %s52 = scalar_select %p49, %s50, %s51
    %p55 = pneg %p49
    %p56 = scmp.eq.s32.totalorder %s14, 1
    %p57 = por %p55, %p56
    %p58 = scmp.ne.s32.totalorder %s50, %s53
    %p59 = scmp.eq.s32.totalorder %s14, 0
    %p60 = por %p58, %p59
    %p61 = scmp.ne.s32.totalorder %s50, %s53
    %p62 = scmp.eq.s32.totalorder %s19, 1
    %p63 = por %p61, %p62
    %p64 = scmp.ne.s32.totalorder %s53, %s54
    %p65 = scmp.eq.s32.totalorder %s19, 0
    %p66 = por %p64, %p65
    %p67 = scmp.ne.s32.totalorder %s53, %s54
    %p68 = scmp.eq.s32.totalorder %s20, 1
    %p69 = por %p67, %p68
    %p71 = scmp.ne.s32.totalorder %s54, %s70
    %p72 = scmp.eq.s32.totalorder %s20, 0
    %p73 = por %p71, %p72
    %s75 = sadd.s32 %s74, 1
    %p78 = scmp.eq.s32.totalorder %s14, 1
    %p79 = scmp.ne.s32.totalorder %s74, %s76
    %p80 = scmp.eq.s32.totalorder %s14, 0
    %p81 = por %p79, %p80
    %p82 = scmp.ne.s32.totalorder %s74, %s76
    %p83 = scmp.eq.s32.totalorder %s19, 1
    %p84 = por %p82, %p83
    %p85 = scmp.ne.s32.totalorder %s76, %s77
    %p86 = scmp.eq.s32.totalorder %s19, 0
    %p87 = por %p85, %p86
    %p88 = scmp.ne.s32.totalorder %s76, %s77
    %p89 = scmp.eq.s32.totalorder %s20, 1
    %p90 = por %p88, %p89
    %p92 = scmp.ne.s32.totalorder %s77, %s91
    %p93 = scmp.eq.s32.totalorder %s20, 0
    %p94 = por %p92, %p93
    %s96 = sadd.s32 %s95, 1
    %p99 = scmp.eq.s32.totalorder %s14, 1
    %p100 = scmp.ne.s32.totalorder %s95, %s97
    %p101 = scmp.eq.s32.totalorder %s14, 0
    %p102 = por %p100, %p101
    %p103 = scmp.ne.s32.totalorder %s95, %s97
    %p104 = scmp.eq.s32.totalorder %s19, 1
    %p105 = por %p103, %p104
    %p106 = scmp.ne.s32.totalorder %s97, %s98
    %p107 = scmp.eq.s32.totalorder %s19, 0
    %p108 = por %p106, %p107
    %p109 = scmp.ne.s32.totalorder %s97, %s98
    %p110 = scmp.eq.s32.totalorder %s20, 1
    %p111 = por %p109, %p110
    %p113 = scmp.ne.s32.totalorder %s98, %s112
    %p114 = scmp.eq.s32.totalorder %s20, 0
    %p115 = por %p113, %p114
    %s117 = sadd.s32 %s116, 1
    %p120 = scmp.eq.s32.totalorder %s14, 1
    %p121 = scmp.ne.s32.totalorder %s116, %s118
    %p122 = scmp.eq.s32.totalorder %s14, 0
    %p123 = por %p121, %p122
    %p124 = scmp.ne.s32.totalorder %s116, %s118
    %p125 = scmp.eq.s32.totalorder %s19, 1
    %p126 = por %p124, %p125
    %p127 = scmp.ne.s32.totalorder %s118, %s119
    %p128 = scmp.eq.s32.totalorder %s19, 0
    %p129 = por %p127, %p128
    %p130 = scmp.ne.s32.totalorder %s118, %s119
    %p131 = scmp.eq.s32.totalorder %s20, 1
    %p132 = por %p130, %p131
    %p134 = scmp.ne.s32.totalorder %s119, %s133
    %p135 = scmp.eq.s32.totalorder %s20, 0
    %p136 = por %p134, %p135
    %s138 = sadd.s32 %s137, 1
    %p141 = scmp.eq.s32.totalorder %s14, 1
    %p142 = scmp.ne.s32.totalorder %s137, %s139
    %p143 = scmp.eq.s32.totalorder %s14, 0
    %p144 = por %p142, %p143
    %p145 = scmp.ne.s32.totalorder %s137, %s139
    %p146 = scmp.eq.s32.totalorder %s19, 1
    %p147 = por %p145, %p146
    %p148 = scmp.ne.s32.totalorder %s139, %s140
    %p149 = scmp.eq.s32.totalorder %s19, 0
    %p150 = por %p148, %p149
    %p151 = scmp.ne.s32.totalorder %s139, %s140
    %p152 = scmp.eq.s32.totalorder %s20, 1
    %p153 = por %p151, %p152
    %p155 = scmp.ne.s32.totalorder %s140, %s154
    %p156 = scmp.eq.s32.totalorder %s20, 0
    %p157 = por %p155, %p156
    %s159 = sadd.s32 %s158, 1
    %p162 = scmp.eq.s32.totalorder %s14, 1
    %p163 = scmp.ne.s32.totalorder %s158, %s160
    %p164 = scmp.eq.s32.totalorder %s14, 0
    %p165 = por %p163, %p164
    %p166 = scmp.ne.s32.totalorder %s158, %s160
    %p167 = scmp.eq.s32.totalorder %s19, 1
    %p168 = por %p166, %p167
    %p169 = scmp.ne.s32.totalorder %s160, %s161
    %p170 = scmp.eq.s32.totalorder %s19, 0
    %p171 = por %p169, %p170
    %p172 = scmp.ne.s32.totalorder %s160, %s161
    %p173 = scmp.eq.s32.totalorder %s20, 1
    %p174 = por %p172, %p173
    %p176 = scmp.ne.s32.totalorder %s161, %s175
    %p177 = scmp.eq.s32.totalorder %s20, 0
    %p178 = por %p176, %p177
    %s180 = sadd.s32 %s179, 1
    %p183 = scmp.eq.s32.totalorder %s14, 1
    %p184 = scmp.ne.s32.totalorder %s179, %s181
    %p185 = scmp.eq.s32.totalorder %s14, 0
    %p186 = por %p184, %p185
    %p187 = scmp.ne.s32.totalorder %s179, %s181
    %p188 = scmp.eq.s32.totalorder %s19, 1
    %p189 = por %p187, %p188
    %p190 = scmp.ne.s32.totalorder %s181, %s182
    %p191 = scmp.eq.s32.totalorder %s19, 0
    %p192 = por %p190, %p191
    %p193 = scmp.ne.s32.totalorder %s181, %s182
    %p194 = scmp.eq.s32.totalorder %s20, 1
    %p195 = por %p193, %p194
    %p197 = scmp.ne.s32.totalorder %s182, %s196
    %p198 = scmp.eq.s32.totalorder %s20, 0
    %p199 = por %p197, %p198
    %s200 = ssub.s32 %s14, %s21
    %p201 = scmp.eq.s32.totalorder %s200, 0
    %s203 = sadd.s32 %s202, 1
    %s204 = scalar_select %p201, %s202, %s203
    %p207 = pneg %p201
    %p208 = scmp.eq.s32.totalorder %s14, 1
    %p209 = por %p207, %p208
    %p210 = scmp.ne.s32.totalorder %s202, %s205
    %p211 = scmp.eq.s32.totalorder %s14, 0
    %p212 = por %p210, %p211
    %p213 = scmp.ne.s32.totalorder %s202, %s205
    %p214 = scmp.eq.s32.totalorder %s19, 1
    %p215 = por %p213, %p214
    %p216 = scmp.ne.s32.totalorder %s205, %s206
    %p217 = scmp.eq.s32.totalorder %s19, 0
    %p218 = por %p216, %p217
    %p219 = scmp.ne.s32.totalorder %s205, %s206
    %p220 = scmp.eq.s32.totalorder %s20, 1
    %p221 = por %p219, %p220
    %p223 = scmp.ne.s32.totalorder %s206, %s222
    %p224 = scmp.eq.s32.totalorder %s20, 0
    %p225 = por %p223, %p224
    %p226 = scmp.le.s32.totalorder 1, %s14
    %p227 = scmp.lt.s32.totalorder %s14, 3
    %p228 = pnand %p226, %p227
    %p229 = pneg %p228
    // Predicated region
    $region9: #{tpu_custom_call.1} parent=5 // pred_check
      _
    $region10: #{tpu_custom_call.1} parent=5 // pred_check_branch
      %231 = sbr.rel (%p228) target = $region12
    $region11: #{tpu_custom_call.1} parent=5 // pred_region
      %s232 = ssub.s32 %s14, 1
      // Predicated region
      $region13: #{tpu_custom_call.1} parent=11 // pred_check
        %p233 = pneg %p87
      $region14: #{tpu_custom_call.1} parent=11 // pred_check_branch
        %235 = sbr.rel (%p233) target = $region16
      $region15: #{tpu_custom_call.1} parent=11 // pred_region
        _
      $region16: #{tpu_custom_call.1} parent=11 // pred_fallthru
        _
      // Predicated region
      $region17: #{tpu_custom_call.1} parent=11 // pred_check
        %p236 = pneg %p108
      $region18: #{tpu_custom_call.1} parent=11 // pred_check_branch
        %238 = sbr.rel (%p236) target = $region20
      $region19: #{tpu_custom_call.1} parent=11 // pred_region
        _
      $region20: #{tpu_custom_call.1} parent=11 // pred_fallthru
        _
      // Predicated region
      $region21: #{tpu_custom_call.1} parent=11 // pred_check
        %p239 = pneg %p129
      $region22: #{tpu_custom_call.1} parent=11 // pred_check_branch
        %241 = sbr.rel (%p239) target = $region24
      $region23: #{tpu_custom_call.1} parent=11 // pred_region
        _
      $region24: #{tpu_custom_call.1} parent=11 // pred_fallthru
        _
      // Predicated region
      $region25: #{tpu_custom_call.1} parent=11 // pred_check
        %p242 = pneg %p150
      $region26: #{tpu_custom_call.1} parent=11 // pred_check_branch
        %244 = sbr.rel (%p242) target = $region28
      $region27: #{tpu_custom_call.1} parent=11 // pred_region
        _
      $region28: #{tpu_custom_call.1} parent=11 // pred_fallthru
        _
      // Predicated region
      $region29: #{tpu_custom_call.1} parent=11 // pred_check
        %p245 = pneg %p171
      $region30: #{tpu_custom_call.1} parent=11 // pred_check_branch
        %247 = sbr.rel (%p245) target = $region32
      $region31: #{tpu_custom_call.1} parent=11 // pred_region
        _
      $region32: #{tpu_custom_call.1} parent=11 // pred_fallthru
        _
      // Predicated region
      $region33: #{tpu_custom_call.1} parent=11 // pred_check
        %p248 = pneg %p192
      $region34: #{tpu_custom_call.1} parent=11 // pred_check_branch
        %250 = sbr.rel (%p248) target = $region36
      $region35: #{tpu_custom_call.1} parent=11 // pred_region
        _
      $region36: #{tpu_custom_call.1} parent=11 // pred_fallthru
        _
    $region12: #{tpu_custom_call.1} parent=5 // pred_fallthru
      _
    %p251 = scmp.lt.s32.totalorder %s14, 2
    // Predicated region
    $region37: #{tpu_custom_call.1} parent=5 // pred_check
      %p252 = pneg %p251
    $region38: #{tpu_custom_call.1} parent=5 // pred_check_branch
      %254 = sbr.rel (%p252) target = $region40
    $region39: #{tpu_custom_call.1} parent=5 // pred_region
      // Predicated region
      $region41: #{tpu_custom_call.1} parent=39 // pred_check
        %p255 = pneg %p34
      $region42: #{tpu_custom_call.1} parent=39 // pred_check_branch
        %257 = sbr.rel (%p255) target = $region44
      $region43: #{tpu_custom_call.1} parent=39 // pred_region
        %s258 = smul.u32 64, %s14
        %p259 = scmp.lt.s32.totalorder %s258, 127
        %s260 = scalar_select %p259, %s258, 127
        %s261 = smul.addr %s260, 8
        %s262 = scalar_lea.vmem %s0, %s261
        %s263 = smul.u32 64, %s14
      $region44: #{tpu_custom_call.1} parent=39 // pred_fallthru
        _
      // Predicated region
      $region45: #{tpu_custom_call.1} parent=39 // pred_check
        %p264 = pneg %p60
      $region46: #{tpu_custom_call.1} parent=39 // pred_check_branch
        %266 = sbr.rel (%p264) target = $region48
      $region47: #{tpu_custom_call.1} parent=39 // pred_region
        %s267 = smul.u32 8, %s14
        %p268 = scmp.lt.s32.totalorder %s267, 15
        %s269 = scalar_select %p268, %s267, 15
        %s270 = smul.addr %s269, 8
        %s271 = scalar_lea.vmem %s1, %s270
        %s272 = smul.u32 8, %s14
      $region48: #{tpu_custom_call.1} parent=39 // pred_fallthru
        _
    $region40: #{tpu_custom_call.1} parent=5 // pred_fallthru
      _
    %p273 = scmp.le.s32.totalorder 1, %s14
    %p274 = scmp.lt.s32.totalorder %s14, 3
    %p275 = pnand %p273, %p274
    %p276 = pneg %p275
    // Predicated region
    $region49: #{tpu_custom_call.1} parent=5 // pred_check
      _
    $region50: #{tpu_custom_call.1} parent=5 // pred_check_branch
      %278 = sbr.rel (%p275) target = $region52
    $region51: #{tpu_custom_call.1} parent=5 // pred_region
      %s279 = ssub.s32 %s14, 1
      %s280 = smul.u32 64, %s19
      %p281 = scmp.lt.s32.totalorder %s280, 127
      %s282 = scalar_select %p281, %s280, 127
      %s283 = smul.addr %s282, 8
      %s284 = scalar_lea.vmem %s0, %s283
      %p285 = pneg %p40
      %p286 = pneg %p37
      %s287 = smul.u32 8, %s19
      %p288 = scmp.lt.s32.totalorder %s287, 15
      %s289 = scalar_select %p288, %s287, 15
      %s290 = smul.addr %s289, 8
      %s291 = scalar_lea.vmem %s1, %s290
      %p292 = pneg %p66
      %p293 = pneg %p63
      %p294 = pneg %p87
      %p295 = pneg %p84
      %p296 = pneg %p108
      %p297 = pneg %p105
      %p298 = pneg %p129
      %p299 = pneg %p126
      %p300 = pneg %p150
      %p301 = pneg %p147
      %p302 = pneg %p171
      %p303 = pneg %p168
      %p304 = pneg %p192
      %p305 = pneg %p189
      %p306 = pneg %p218
      %p307 = pneg %p215
      %s308 = smul.u32 8, %s19
      %p309 = scmp.lt.s32.totalorder %s308, 15
      %s310 = scalar_select %p309, %s308, 15
      %s311 = smul.addr %s310, 8
      %s312 = scalar_lea.vmem %s8, %s311
      %s313 = smul.u32 64, %s19
      %p314 = scmp.lt.s32.totalorder %s313, 127
      %s315 = scalar_select %p314, %s313, 127
      %s316 = smul.addr %s315, 8
      %s317 = scalar_lea.vmem %s0, %s316
      %s318 = smul.u32 64, %s19
      %s319 = smul.u32 8, %s19
      %p320 = scmp.lt.s32.totalorder %s319, 15
      %s321 = scalar_select %p320, %s319, 15
      %s322 = smul.addr %s321, 8
      %s323 = scalar_lea.vmem %s1, %s322
      %s324 = smul.u32 8, %s19
      %s325 = smul.u32 8, %s19
      %p326 = scmp.lt.s32.totalorder %s325, 15
      %s327 = scalar_select %p326, %s325, 15
      %s328 = smul.addr %s327, 8
      %s329 = scalar_lea.vmem %s8, %s328
      %s330 = smul.u32 8, %s19
      %v331 = vld [vmem:[%s317] sm:$0xff]
      %v332 = vld [vmem:[%s317 + $0x8] sm:$0xff]
      %v333 = vld [vmem:[%s317 + $0x10] sm:$0xff]
      %v334 = vld [vmem:[%s317 + $0x18] sm:$0xff]
      %v335 = vld [vmem:[%s317 + $0x20] sm:$0xff]
      %v336 = vld [vmem:[%s317 + $0x28] sm:$0xff]
      %v337 = vld [vmem:[%s317 + $0x30] sm:$0xff]
      %v338 = vld [vmem:[%s317 + $0x38] sm:$0xff]
      %v339 = vld [vmem:[%s317 + $0x40] sm:$0xff]
      %v340 = vld [vmem:[%s317 + $0x48] sm:$0xff]
      %v341 = vld [vmem:[%s317 + $0x50] sm:$0xff]
      %v342 = vld [vmem:[%s317 + $0x58] sm:$0xff]
      %v343 = vld [vmem:[%s317 + $0x60] sm:$0xff]
      %v344 = vld [vmem:[%s317 + $0x68] sm:$0xff]
      %v345 = vld [vmem:[%s317 + $0x70] sm:$0xff]
      %v346 = vld [vmem:[%s317 + $0x78] sm:$0xff]
      %v347 = vld [vmem:[%s317 + $0x80] sm:$0xff]
      %v348 = vld [vmem:[%s317 + $0x88] sm:$0xff]
      %v349 = vld [vmem:[%s317 + $0x90] sm:$0xff]
      %v350 = vld [vmem:[%s317 + $0x98] sm:$0xff]
      %v351 = vld [vmem:[%s317 + $0xa0] sm:$0xff]
      %v352 = vld [vmem:[%s317 + $0xa8] sm:$0xff]
      %v353 = vld [vmem:[%s317 + $0xb0] sm:$0xff]
      %v354 = vld [vmem:[%s317 + $0xb8] sm:$0xff]
      %v355 = vld [vmem:[%s317 + $0xc0] sm:$0xff]
      %v356 = vld [vmem:[%s317 + $0xc8] sm:$0xff]
      %v357 = vld [vmem:[%s317 + $0xd0] sm:$0xff]
      %v358 = vld [vmem:[%s317 + $0xd8] sm:$0xff]
      %v359 = vld [vmem:[%s317 + $0xe0] sm:$0xff]
      %v360 = vld [vmem:[%s317 + $0xe8] sm:$0xff]
      %v361 = vld [vmem:[%s317 + $0xf0] sm:$0xff]
      %v362 = vld [vmem:[%s317 + $0xf8] sm:$0xff]
      %v363 = vld [vmem:[%s317 + $0x100] sm:$0xff]
      %v364 = vld [vmem:[%s317 + $0x108] sm:$0xff]
      %v365 = vld [vmem:[%s317 + $0x110] sm:$0xff]
      %v366 = vld [vmem:[%s317 + $0x118] sm:$0xff]
      %v367 = vld [vmem:[%s317 + $0x120] sm:$0xff]
      %v368 = vld [vmem:[%s317 + $0x128] sm:$0xff]
      %v369 = vld [vmem:[%s317 + $0x130] sm:$0xff]
      %v370 = vld [vmem:[%s317 + $0x138] sm:$0xff]
      %v371 = vld [vmem:[%s317 + $0x140] sm:$0xff]
      %v372 = vld [vmem:[%s317 + $0x148] sm:$0xff]
      %v373 = vld [vmem:[%s317 + $0x150] sm:$0xff]
      %v374 = vld [vmem:[%s317 + $0x158] sm:$0xff]
      %v375 = vld [vmem:[%s317 + $0x160] sm:$0xff]
      %v376 = vld [vmem:[%s317 + $0x168] sm:$0xff]
      %v377 = vld [vmem:[%s317 + $0x170] sm:$0xff]
      %v378 = vld [vmem:[%s317 + $0x178] sm:$0xff]
      %v379 = vld [vmem:[%s317 + $0x180] sm:$0xff]
      %v380 = vld [vmem:[%s317 + $0x188] sm:$0xff]
      %v381 = vld [vmem:[%s317 + $0x190] sm:$0xff]
      %v382 = vld [vmem:[%s317 + $0x198] sm:$0xff]
      %v383 = vld [vmem:[%s317 + $0x1a0] sm:$0xff]
      %v384 = vld [vmem:[%s317 + $0x1a8] sm:$0xff]
      %v385 = vld [vmem:[%s317 + $0x1b0] sm:$0xff]
      %v386 = vld [vmem:[%s317 + $0x1b8] sm:$0xff]
      %v387 = vld [vmem:[%s317 + $0x1c0] sm:$0xff]
      %v388 = vld [vmem:[%s317 + $0x1c8] sm:$0xff]
      %v389 = vld [vmem:[%s317 + $0x1d0] sm:$0xff]
      %v390 = vld [vmem:[%s317 + $0x1d8] sm:$0xff]
      %v391 = vld [vmem:[%s317 + $0x1e0] sm:$0xff]
      %v392 = vld [vmem:[%s317 + $0x1e8] sm:$0xff]
      %v393 = vld [vmem:[%s317 + $0x1f0] sm:$0xff]
      %v394 = vld [vmem:[%s317 + $0x1f8] sm:$0xff]
      %v395 = vld [vmem:[%s2] sm:$0xff]
      %v396 = vld [vmem:[%s2 + $0x8] sm:$0xff]
      %v397 = vld [vmem:[%s3] sm:$0x1]
      %v399 = vlaneseq
      %v400 = vshrl.u32 %v399, 7
      %v401 = vsub.s32 0, %v400
      %v402 = vrot.slane %v397, %v401
      %vm404 = vcmask 130048
      %v406 = vsel %vm404, %v331, 0
      %v409 = vsel %vm404, %v332, 0
      %v412 = vsel %vm404, %v333, 0
      %v415 = vsel %vm404, %v334, 0
      %v418 = vsel %vm404, %v335, 0
      %v421 = vsel %vm404, %v336, 0
      %v424 = vsel %vm404, %v337, 0
      %v427 = vsel %vm404, %v338, 0
      %v430 = vsel %vm404, %v339, 0
      %v433 = vsel %vm404, %v340, 0
      %v436 = vsel %vm404, %v341, 0
      %v439 = vsel %vm404, %v342, 0
      %v442 = vsel %vm404, %v343, 0
      %v445 = vsel %vm404, %v344, 0
      %v448 = vsel %vm404, %v345, 0
      %v451 = vsel %vm404, %v346, 0
      %v454 = vsel %vm404, %v347, 0
      %v457 = vsel %vm404, %v348, 0
      %v460 = vsel %vm404, %v349, 0
      %v463 = vsel %vm404, %v350, 0
      %v466 = vsel %vm404, %v351, 0
      %v469 = vsel %vm404, %v352, 0
      %v472 = vsel %vm404, %v353, 0
      %v475 = vsel %vm404, %v354, 0
      %v478 = vsel %vm404, %v355, 0
      %v481 = vsel %vm404, %v356, 0
      %v484 = vsel %vm404, %v357, 0
      %v487 = vsel %vm404, %v358, 0
      %v490 = vsel %vm404, %v359, 0
      %v493 = vsel %vm404, %v360, 0
      %v496 = vsel %vm404, %v361, 0
      %v499 = vsel %vm404, %v362, 0
      %v502 = vsel %vm404, %v363, 0
      %v505 = vsel %vm404, %v364, 0
      %v508 = vsel %vm404, %v365, 0
      %v511 = vsel %vm404, %v366, 0
      %v514 = vsel %vm404, %v367, 0
      %v517 = vsel %vm404, %v368, 0
      %v520 = vsel %vm404, %v369, 0
      %v523 = vsel %vm404, %v370, 0
      %v526 = vsel %vm404, %v371, 0
      %v529 = vsel %vm404, %v372, 0
      %v532 = vsel %vm404, %v373, 0
      %v535 = vsel %vm404, %v374, 0
      %v538 = vsel %vm404, %v375, 0
      %v541 = vsel %vm404, %v376, 0
      %v544 = vsel %vm404, %v377, 0
      %v547 = vsel %vm404, %v378, 0
      %v550 = vsel %vm404, %v379, 0
      %v553 = vsel %vm404, %v380, 0
      %v556 = vsel %vm404, %v381, 0
      %v559 = vsel %vm404, %v382, 0
      %v562 = vsel %vm404, %v383, 0
      %v565 = vsel %vm404, %v384, 0
      %v568 = vsel %vm404, %v385, 0
      %v571 = vsel %vm404, %v386, 0
      %v574 = vsel %vm404, %v387, 0
      %v577 = vsel %vm404, %v388, 0
      %v580 = vsel %vm404, %v389, 0
      %v583 = vsel %vm404, %v390, 0
      %v586 = vsel %vm404, %v391, 0
      %v589 = vsel %vm404, %v392, 0
      %v592 = vsel %vm404, %v393, 0
      %v595 = vsel %vm404, %v394, 0
      %597 = vmatprep.subr.mxu0 0.0
      %598 = vmatpush1.msra.mxu0 %v395
      %599 = vmatprep.subr.mxu0 0.0
      %600 = vmatpush1.msra.mxu0 %v396
      %601 = vmatprep.subr.mxu0 0.0
      %602 = vmatpush1.msra.mxu0 0.0
      %603 = vmatprep.subr.mxu0 0.0
      %604 = vmatpush1.msra.mxu0 0.0
      %605 = vmatprep.subr.mxu0 0.0
      %606 = vmatpush1.msra.mxu0 0.0
      %607 = vmatprep.subr.mxu0 0.0
      %608 = vmatpush1.msra.mxu0 0.0
      %609 = vmatprep.subr.mxu0 0.0
      %610 = vmatpush1.msra.mxu0 0.0
      %611 = vmatprep.subr.mxu0 0.0
      %612 = vmatpush1.msra.mxu0 0.0
      %613 = vmatprep.subr.mxu0 0.0
      %614 = vmatpush1.msra.mxu0 0.0
      %615 = vmatprep.subr.mxu0 0.0
      %616 = vmatpush1.msra.mxu0 0.0
      %617 = vmatprep.subr.mxu0 0.0
      %618 = vmatpush1.msra.mxu0 0.0
      %619 = vmatprep.subr.mxu0 0.0
      %620 = vmatpush1.msra.mxu0 0.0
      %621 = vmatprep.subr.mxu0 0.0
      %622 = vmatpush1.msra.mxu0 0.0
      %623 = vmatprep.subr.mxu0 0.0
      %624 = vmatpush1.msra.mxu0 0.0
      %625 = vmatprep.subr.mxu0 0.0
      %626 = vmatpush1.msra.mxu0 0.0
      %627 = vmatprep.subr.mxu0 0.0
      %628 = vmatpush1.msra.mxu0 0.0
      %629 = vmatprep.subr.mxu0 0.0
      %630 = vmatpush1.msra.mxu0 0.0
      %631 = vmatprep.subr.mxu0 0.0
      %632 = vmatpush1.msra.mxu0 0.0
      %633 = vmatprep.subr.mxu0 0.0
      %634 = vmatpush1.msra.mxu0 0.0
      %635 = vmatprep.subr.mxu0 0.0
      %636 = vmatpush1.msra.mxu0 0.0
      %637 = vmatprep.subr.mxu0 0.0
      %638 = vmatpush1.msra.mxu0 0.0
      %639 = vmatprep.subr.mxu0 0.0
      %640 = vmatpush1.msra.mxu0 0.0
      %641 = vmatprep.subr.mxu0 0.0
      %642 = vmatpush1.msra.mxu0 0.0
      %643 = vmatprep.subr.mxu0 0.0
      %644 = vmatpush1.msra.mxu0 0.0
      %645 = vmatprep.subr.mxu0 0.0
      %646 = vmatpush1.msra.mxu0 0.0
      %647 = vmatprep.subr.mxu0 0.0
      %648 = vmatpush1.msra.mxu0 0.0
      %649 = vmatprep.subr.mxu0 0.0
      %650 = vmatpush1.msra.mxu0 0.0
      %651 = vmatprep.subr.mxu0 0.0
      %652 = vmatpush1.msra.mxu0 0.0
      %653 = vmatprep.subr.mxu0 0.0
      %654 = vmatpush1.msra.mxu0 0.0
      %655 = vmatprep.subr.mxu0 0.0
      %656 = vmatpush1.msra.mxu0 0.0
      %657 = vmatprep.subr.mxu0 0.0
      %658 = vmatpush1.msra.mxu0 0.0
      %659 = vmatprep.subr.mxu0 0.0
      %660 = vmatpush1.msra.mxu0 0.0
      %661 = vmatprep.mubr.f32.mxu0 0.0
      %662 = vmatmul.mubr.f32.gmra.mrb[0].mxu0 %v406
      %v663 = vpop.f32.mrb[0].mxu0
      %v664 = vadd.f32 %v402, %v663
      %v665 = vpop.f32.mrb[0].mxu0
      %666 = vmatprep.mubr.f32.mxu0 0.0
      %667 = vmatmul.mubr.f32.gmra.mrb[0].mxu0 %v409
      %v668 = vpop.f32.mrb[0].mxu0
      %v669 = vadd.f32 %v402, %v668
      %v670 = vpop.f32.mrb[0].mxu0
      %671 = vmatprep.mubr.f32.mxu0 0.0
      %672 = vmatmul.mubr.f32.gmra.mrb[0].mxu0 %v412
      %v673 = vpop.f32.mrb[0].mxu0
      %v674 = vadd.f32 %v402, %v673
      %v675 = vpop.f32.mrb[0].mxu0
      %676 = vmatprep.mubr.f32.mxu0 0.0
      %677 = vmatmul.mubr.f32.gmra.mrb[0].mxu0 %v415
      %v678 = vpop.f32.mrb[0].mxu0
      %v679 = vadd.f32 %v402, %v678
      %v680 = vpop.f32.mrb[0].mxu0
      %681 = vmatprep.mubr.f32.mxu0 0.0
      %682 = vmatmul.mubr.f32.gmra.mrb[0].mxu0 %v418
      %v683 = vpop.f32.mrb[0].mxu0
      %v684 = vadd.f32 %v402, %v683
      %v685 = vpop.f32.mrb[0].mxu0
      %686 = vmatprep.mubr.f32.mxu0 0.0
      %687 = vmatmul.mubr.f32.gmra.mrb[0].mxu0 %v421
      %v688 = vpop.f32.mrb[0].mxu0
      %v689 = vadd.f32 %v402, %v688
      %v690 = vpop.f32.mrb[0].mxu0
      %691 = vmatprep.mubr.f32.mxu0 0.0
      %692 = vmatmul.mubr.f32.gmra.mrb[0].mxu0 %v424
      %v693 = vpop.f32.mrb[0].mxu0
      %v694 = vadd.f32 %v402, %v693
      %v695 = vpop.f32.mrb[0].mxu0
      %696 = vmatprep.mubr.f32.mxu0 0.0
      %697 = vmatmul.mubr.f32.gmra.mrb[0].mxu0 %v427
      %v698 = vpop.f32.mrb[0].mxu0
      %v699 = vadd.f32 %v402, %v698
      %v700 = vpop.f32.mrb[0].mxu0
      %701 = vmatprep.mubr.f32.mxu0 0.0
      %702 = vmatmul.mubr.f32.gmra.mrb[0].mxu0 %v430
      %v703 = vpop.f32.mrb[0].mxu0
      %v704 = vadd.f32 %v402, %v703
      %v705 = vpop.f32.mrb[0].mxu0
      %706 = vmatprep.mubr.f32.mxu0 0.0
      %707 = vmatmul.mubr.f32.gmra.mrb[0].mxu0 %v433
      %v708 = vpop.f32.mrb[0].mxu0
      %v709 = vadd.f32 %v402, %v708
      %v710 = vpop.f32.mrb[0].mxu0
      %711 = vmatprep.mubr.f32.mxu0 0.0
      %712 = vmatmul.mubr.f32.gmra.mrb[0].mxu0 %v436
      %v713 = vpop.f32.mrb[0].mxu0
      %v714 = vadd.f32 %v402, %v713
      %v715 = vpop.f32.mrb[0].mxu0
      %716 = vmatprep.mubr.f32.mxu0 0.0
      %717 = vmatmul.mubr.f32.gmra.mrb[0].mxu0 %v439
      %v718 = vpop.f32.mrb[0].mxu0
      %v719 = vadd.f32 %v402, %v718
      %v720 = vpop.f32.mrb[0].mxu0
      %721 = vmatprep.mubr.f32.mxu0 0.0
      %722 = vmatmul.mubr.f32.gmra.mrb[0].mxu0 %v442
      %v723 = vpop.f32.mrb[0].mxu0
      %v724 = vadd.f32 %v402, %v723
      %v725 = vpop.f32.mrb[0].mxu0
      %726 = vmatprep.mubr.f32.mxu0 0.0
      %727 = vmatmul.mubr.f32.gmra.mrb[0].mxu0 %v445
      %v728 = vpop.f32.mrb[0].mxu0
      %v729 = vadd.f32 %v402, %v728
      %v730 = vpop.f32.mrb[0].mxu0
      %731 = vmatprep.mubr.f32.mxu0 0.0
      %732 = vmatmul.mubr.f32.gmra.mrb[0].mxu0 %v448
      %v733 = vpop.f32.mrb[0].mxu0
      %v734 = vadd.f32 %v402, %v733
      %v735 = vpop.f32.mrb[0].mxu0
      %736 = vmatprep.mubr.f32.mxu0 0.0
      %737 = vmatmul.mubr.f32.gmra.mrb[0].mxu0 %v451
      %v738 = vpop.f32.mrb[0].mxu0
      %v739 = vadd.f32 %v402, %v738
      %v740 = vpop.f32.mrb[0].mxu0
      %741 = vmatprep.mubr.f32.mxu0 0.0
      %742 = vmatmul.mubr.f32.gmra.mrb[0].mxu0 %v454
      %v743 = vpop.f32.mrb[0].mxu0
      %v744 = vadd.f32 %v402, %v743
      %v745 = vpop.f32.mrb[0].mxu0
      %746 = vmatprep.mubr.f32.mxu0 0.0
      %747 = vmatmul.mubr.f32.gmra.mrb[0].mxu0 %v457
      %v748 = vpop.f32.mrb[0].mxu0
      %v749 = vadd.f32 %v402, %v748
      %v750 = vpop.f32.mrb[0].mxu0
      %751 = vmatprep.mubr.f32.mxu0 0.0
      %752 = vmatmul.mubr.f32.gmra.mrb[0].mxu0 %v460
      %v753 = vpop.f32.mrb[0].mxu0
      %v754 = vadd.f32 %v402, %v753
      %v755 = vpop.f32.mrb[0].mxu0
      %756 = vmatprep.mubr.f32.mxu0 0.0
      %757 = vmatmul.mubr.f32.gmra.mrb[0].mxu0 %v463
      %v758 = vpop.f32.mrb[0].mxu0
      %v759 = vadd.f32 %v402, %v758
      %v760 = vpop.f32.mrb[0].mxu0
      %761 = vmatprep.mubr.f32.mxu0 0.0
      %762 = vmatmul.mubr.f32.gmra.mrb[0].mxu0 %v466
      %v763 = vpop.f32.mrb[0].mxu0
      %v764 = vadd.f32 %v402, %v763
      %v765 = vpop.f32.mrb[0].mxu0
      %766 = vmatprep.mubr.f32.mxu0 0.0
      %767 = vmatmul.mubr.f32.gmra.mrb[0].mxu0 %v469
      %v768 = vpop.f32.mrb[0].mxu0
      %v769 = vadd.f32 %v402, %v768
      %v770 = vpop.f32.mrb[0].mxu0
      %771 = vmatprep.mubr.f32.mxu0 0.0
      %772 = vmatmul.mubr.f32.gmra.mrb[0].mxu0 %v472
      %v773 = vpop.f32.mrb[0].mxu0
      %v774 = vadd.f32 %v402, %v773
      %v775 = vpop.f32.mrb[0].mxu0
      %776 = vmatprep.mubr.f32.mxu0 0.0
      %777 = vmatmul.mubr.f32.gmra.mrb[0].mxu0 %v475
      %v778 = vpop.f32.mrb[0].mxu0
      %v779 = vadd.f32 %v402, %v778
      %v780 = vpop.f32.mrb[0].mxu0
      %781 = vmatprep.mubr.f32.mxu0 0.0
      %782 = vmatmul.mubr.f32.gmra.mrb[0].mxu0 %v478
      %v783 = vpop.f32.mrb[0].mxu0
      %v784 = vadd.f32 %v402, %v783
      %v785 = vpop.f32.mrb[0].mxu0
      %786 = vmatprep.mubr.f32.mxu0 0.0
      %787 = vmatmul.mubr.f32.gmra.mrb[0].mxu0 %v481
      %v788 = vpop.f32.mrb[0].mxu0
      %v789 = vadd.f32 %v402, %v788
      %v790 = vpop.f32.mrb[0].mxu0
      %791 = vmatprep.mubr.f32.mxu0 0.0
      %792 = vmatmul.mubr.f32.gmra.mrb[0].mxu0 %v484
      %v793 = vpop.f32.mrb[0].mxu0
      %v794 = vadd.f32 %v402, %v793
      %v795 = vpop.f32.mrb[0].mxu0
      %796 = vmatprep.mubr.f32.mxu0 0.0
      %797 = vmatmul.mubr.f32.gmra.mrb[0].mxu0 %v487
      %v798 = vpop.f32.mrb[0].mxu0
      %v799 = vadd.f32 %v402, %v798
      %v800 = vpop.f32.mrb[0].mxu0
      %801 = vmatprep.mubr.f32.mxu0 0.0
      %802 = vmatmul.mubr.f32.gmra.mrb[0].mxu0 %v490
      %v803 = vpop.f32.mrb[0].mxu0
      %v804 = vadd.f32 %v402, %v803
      %v805 = vpop.f32.mrb[0].mxu0
      %806 = vmatprep.mubr.f32.mxu0 0.0
      %807 = vmatmul.mubr.f32.gmra.mrb[0].mxu0 %v493
      %v808 = vpop.f32.mrb[0].mxu0
      %v809 = vadd.f32 %v402, %v808
      %v810 = vpop.f32.mrb[0].mxu0
      %811 = vmatprep.mubr.f32.mxu0 0.0
      %812 = vmatmul.mubr.f32.gmra.mrb[0].mxu0 %v496
      %v813 = vpop.f32.mrb[0].mxu0
      %v814 = vadd.f32 %v402, %v813
      %v815 = vpop.f32.mrb[0].mxu0
      %816 = vmatprep.mubr.f32.mxu0 0.0
      %817 = vmatmul.mubr.f32.gmra.mrb[0].mxu0 %v499
      %v818 = vpop.f32.mrb[0].mxu0
      %v819 = vadd.f32 %v402, %v818
      %v820 = vpop.f32.mrb[0].mxu0
      %821 = vmatprep.mubr.f32.mxu0 0.0
      %822 = vmatmul.mubr.f32.gmra.mrb[0].mxu0 %v502
      %v823 = vpop.f32.mrb[0].mxu0
      %v824 = vadd.f32 %v402, %v823
      %v825 = vpop.f32.mrb[0].mxu0
      %826 = vmatprep.mubr.f32.mxu0 0.0
      %827 = vmatmul.mubr.f32.gmra.mrb[0].mxu0 %v505
      %v828 = vpop.f32.mrb[0].mxu0
      %v829 = vadd.f32 %v402, %v828
      %v830 = vpop.f32.mrb[0].mxu0
      %831 = vmatprep.mubr.f32.mxu0 0.0
      %832 = vmatmul.mubr.f32.gmra.mrb[0].mxu0 %v508
      %v833 = vpop.f32.mrb[0].mxu0
      %v834 = vadd.f32 %v402, %v833
      %v835 = vpop.f32.mrb[0].mxu0
      %836 = vmatprep.mubr.f32.mxu0 0.0
      %837 = vmatmul.mubr.f32.gmra.mrb[0].mxu0 %v511
      %v838 = vpop.f32.mrb[0].mxu0
      %v839 = vadd.f32 %v402, %v838
      %v840 = vpop.f32.mrb[0].mxu0
      %841 = vmatprep.mubr.f32.mxu0 0.0
      %842 = vmatmul.mubr.f32.gmra.mrb[0].mxu0 %v514
      %v843 = vpop.f32.mrb[0].mxu0
      %v844 = vadd.f32 %v402, %v843
      %v845 = vpop.f32.mrb[0].mxu0
      %846 = vmatprep.mubr.f32.mxu0 0.0
      %847 = vmatmul.mubr.f32.gmra.mrb[0].mxu0 %v517
      %v848 = vpop.f32.mrb[0].mxu0
      %v849 = vadd.f32 %v402, %v848
      %v850 = vpop.f32.mrb[0].mxu0
      %851 = vmatprep.mubr.f32.mxu0 0.0
      %852 = vmatmul.mubr.f32.gmra.mrb[0].mxu0 %v520
      %v853 = vpop.f32.mrb[0].mxu0
      %v854 = vadd.f32 %v402, %v853
      %v855 = vpop.f32.mrb[0].mxu0
      %856 = vmatprep.mubr.f32.mxu0 0.0
      %857 = vmatmul.mubr.f32.gmra.mrb[0].mxu0 %v523
      %v858 = vpop.f32.mrb[0].mxu0
      %v859 = vadd.f32 %v402, %v858
      %v860 = vpop.f32.mrb[0].mxu0
      %861 = vmatprep.mubr.f32.mxu0 0.0
      %862 = vmatmul.mubr.f32.gmra.mrb[0].mxu0 %v526
      %v863 = vpop.f32.mrb[0].mxu0
      %v864 = vadd.f32 %v402, %v863
      %v865 = vpop.f32.mrb[0].mxu0
      %866 = vmatprep.mubr.f32.mxu0 0.0
      %867 = vmatmul.mubr.f32.gmra.mrb[0].mxu0 %v529
      %v868 = vpop.f32.mrb[0].mxu0
      %v869 = vadd.f32 %v402, %v868
      %v870 = vpop.f32.mrb[0].mxu0
      %871 = vmatprep.mubr.f32.mxu0 0.0
      %872 = vmatmul.mubr.f32.gmra.mrb[0].mxu0 %v532
      %v873 = vpop.f32.mrb[0].mxu0
      %v874 = vadd.f32 %v402, %v873
      %v875 = vpop.f32.mrb[0].mxu0
      %876 = vmatprep.mubr.f32.mxu0 0.0
      %877 = vmatmul.mubr.f32.gmra.mrb[0].mxu0 %v535
      %v878 = vpop.f32.mrb[0].mxu0
      %v879 = vadd.f32 %v402, %v878
      %v880 = vpop.f32.mrb[0].mxu0
      %881 = vmatprep.mubr.f32.mxu0 0.0
      %882 = vmatmul.mubr.f32.gmra.mrb[0].mxu0 %v538
      %v883 = vpop.f32.mrb[0].mxu0
      %v884 = vadd.f32 %v402, %v883
      %v885 = vpop.f32.mrb[0].mxu0
      %886 = vmatprep.mubr.f32.mxu0 0.0
      %887 = vmatmul.mubr.f32.gmra.mrb[0].mxu0 %v541
      %v888 = vpop.f32.mrb[0].mxu0
      %v889 = vadd.f32 %v402, %v888
      %v890 = vpop.f32.mrb[0].mxu0
      %891 = vmatprep.mubr.f32.mxu0 0.0
      %892 = vmatmul.mubr.f32.gmra.mrb[0].mxu0 %v544
      %v893 = vpop.f32.mrb[0].mxu0
      %v894 = vadd.f32 %v402, %v893
      %v895 = vpop.f32.mrb[0].mxu0
      %896 = vmatprep.mubr.f32.mxu0 0.0
      %897 = vmatmul.mubr.f32.gmra.mrb[0].mxu0 %v547
      %v898 = vpop.f32.mrb[0].mxu0
      %v899 = vadd.f32 %v402, %v898
      %v900 = vpop.f32.mrb[0].mxu0
      %901 = vmatprep.mubr.f32.mxu0 0.0
      %902 = vmatmul.mubr.f32.gmra.mrb[0].mxu0 %v550
      %v903 = vpop.f32.mrb[0].mxu0
      %v904 = vadd.f32 %v402, %v903
      %v905 = vpop.f32.mrb[0].mxu0
      %906 = vmatprep.mubr.f32.mxu0 0.0
      %907 = vmatmul.mubr.f32.gmra.mrb[0].mxu0 %v553
      %v908 = vpop.f32.mrb[0].mxu0
      %v909 = vadd.f32 %v402, %v908
      %v910 = vpop.f32.mrb[0].mxu0
      %911 = vmatprep.mubr.f32.mxu0 0.0
      %912 = vmatmul.mubr.f32.gmra.mrb[0].mxu0 %v556
      %v913 = vpop.f32.mrb[0].mxu0
      %v914 = vadd.f32 %v402, %v913
      %v915 = vpop.f32.mrb[0].mxu0
      %916 = vmatprep.mubr.f32.mxu0 0.0
      %917 = vmatmul.mubr.f32.gmra.mrb[0].mxu0 %v559
      %v918 = vpop.f32.mrb[0].mxu0
      %v919 = vadd.f32 %v402, %v918
      %v920 = vpop.f32.mrb[0].mxu0
      %921 = vmatprep.mubr.f32.mxu0 0.0
      %922 = vmatmul.mubr.f32.gmra.mrb[0].mxu0 %v562
      %v923 = vpop.f32.mrb[0].mxu0
      %v924 = vadd.f32 %v402, %v923
      %v925 = vpop.f32.mrb[0].mxu0
      %926 = vmatprep.mubr.f32.mxu0 0.0
      %927 = vmatmul.mubr.f32.gmra.mrb[0].mxu0 %v565
      %v928 = vpop.f32.mrb[0].mxu0
      %v929 = vadd.f32 %v402, %v928
      %v930 = vpop.f32.mrb[0].mxu0
      %931 = vmatprep.mubr.f32.mxu0 0.0
      %932 = vmatmul.mubr.f32.gmra.mrb[0].mxu0 %v568
      %v933 = vpop.f32.mrb[0].mxu0
      %v934 = vadd.f32 %v402, %v933
      %v935 = vpop.f32.mrb[0].mxu0
      %936 = vmatprep.mubr.f32.mxu0 0.0
      %937 = vmatmul.mubr.f32.gmra.mrb[0].mxu0 %v571
      %v938 = vpop.f32.mrb[0].mxu0
      %v939 = vadd.f32 %v402, %v938
      %v940 = vpop.f32.mrb[0].mxu0
      %941 = vmatprep.mubr.f32.mxu0 0.0
      %942 = vmatmul.mubr.f32.gmra.mrb[0].mxu0 %v574
      %v943 = vpop.f32.mrb[0].mxu0
      %v944 = vadd.f32 %v402, %v943
      %v945 = vpop.f32.mrb[0].mxu0
      %946 = vmatprep.mubr.f32.mxu0 0.0
      %947 = vmatmul.mubr.f32.gmra.mrb[0].mxu0 %v577
      %v948 = vpop.f32.mrb[0].mxu0
      %v949 = vadd.f32 %v402, %v948
      %v950 = vpop.f32.mrb[0].mxu0
      %951 = vmatprep.mubr.f32.mxu0 0.0
      %952 = vmatmul.mubr.f32.gmra.mrb[0].mxu0 %v580
      %v953 = vpop.f32.mrb[0].mxu0
      %v954 = vadd.f32 %v402, %v953
      %v955 = vpop.f32.mrb[0].mxu0
      %956 = vmatprep.mubr.f32.mxu0 0.0
      %957 = vmatmul.mubr.f32.gmra.mrb[0].mxu0 %v583
      %v958 = vpop.f32.mrb[0].mxu0
      %v959 = vadd.f32 %v402, %v958
      %v960 = vpop.f32.mrb[0].mxu0
      %961 = vmatprep.mubr.f32.mxu0 0.0
      %962 = vmatmul.mubr.f32.gmra.mrb[0].mxu0 %v586
      %v963 = vpop.f32.mrb[0].mxu0
      %v964 = vadd.f32 %v402, %v963
      %v965 = vpop.f32.mrb[0].mxu0
      %966 = vmatprep.mubr.f32.mxu0 0.0
      %967 = vmatmul.mubr.f32.gmra.mrb[0].mxu0 %v589
      %v968 = vpop.f32.mrb[0].mxu0
      %v969 = vadd.f32 %v402, %v968
      %v970 = vpop.f32.mrb[0].mxu0
      %971 = vmatprep.mubr.f32.mxu0 0.0
      %972 = vmatmul.mubr.f32.gmra.mrb[0].mxu0 %v592
      %v973 = vpop.f32.mrb[0].mxu0
      %v974 = vadd.f32 %v402, %v973
      %v975 = vpop.f32.mrb[0].mxu0
      %976 = vmatprep.mubr.f32.mxu0 0.0
      %977 = vmatmul.mubr.f32.gmra.mrb[0].mxu0 %v595
      %v978 = vpop.f32.mrb[0].mxu0
      %v979 = vadd.f32 %v402, %v978
      %v980 = vpop.f32.mrb[0].mxu0
      %981 = vdwg.mxu0
      %v982 = vmax.f32 %v664, 0.0
      %v983 = vmax.f32 %v669, 0.0
      %v984 = vmax.f32 %v674, 0.0
      %v985 = vmax.f32 %v679, 0.0
      %v986 = vmax.f32 %v684, 0.0
      %v987 = vmax.f32 %v689, 0.0
      %v988 = vmax.f32 %v694, 0.0
      %v989 = vmax.f32 %v699, 0.0
      %v990 = vmax.f32 %v704, 0.0
      %v991 = vmax.f32 %v709, 0.0
      %v992 = vmax.f32 %v714, 0.0
      %v993 = vmax.f32 %v719, 0.0
      %v994 = vmax.f32 %v724, 0.0
      %v995 = vmax.f32 %v729, 0.0
      %v996 = vmax.f32 %v734, 0.0
      %v997 = vmax.f32 %v739, 0.0
      %v998 = vmax.f32 %v744, 0.0
      %v999 = vmax.f32 %v749, 0.0
      %v1000 = vmax.f32 %v754, 0.0
      %v1001 = vmax.f32 %v759, 0.0
      %v1002 = vmax.f32 %v764, 0.0
      %v1003 = vmax.f32 %v769, 0.0
      %v1004 = vmax.f32 %v774, 0.0
      %v1005 = vmax.f32 %v779, 0.0
      %v1006 = vmax.f32 %v784, 0.0
      %v1007 = vmax.f32 %v789, 0.0
      %v1008 = vmax.f32 %v794, 0.0
      %v1009 = vmax.f32 %v799, 0.0
      %v1010 = vmax.f32 %v804, 0.0
      %v1011 = vmax.f32 %v809, 0.0
      %v1012 = vmax.f32 %v814, 0.0
      %v1013 = vmax.f32 %v819, 0.0
      %v1014 = vmax.f32 %v824, 0.0
      %v1015 = vmax.f32 %v829, 0.0
      %v1016 = vmax.f32 %v834, 0.0
      %v1017 = vmax.f32 %v839, 0.0
      %v1018 = vmax.f32 %v844, 0.0
      %v1019 = vmax.f32 %v849, 0.0
      %v1020 = vmax.f32 %v854, 0.0
      %v1021 = vmax.f32 %v859, 0.0
      %v1022 = vmax.f32 %v864, 0.0
      %v1023 = vmax.f32 %v869, 0.0
      %v1024 = vmax.f32 %v874, 0.0
      %v1025 = vmax.f32 %v879, 0.0
      %v1026 = vmax.f32 %v884, 0.0
      %v1027 = vmax.f32 %v889, 0.0
      %v1028 = vmax.f32 %v894, 0.0
      %v1029 = vmax.f32 %v899, 0.0
      %v1030 = vmax.f32 %v904, 0.0
      %v1031 = vmax.f32 %v909, 0.0
      %v1032 = vmax.f32 %v914, 0.0
      %v1033 = vmax.f32 %v919, 0.0
      %v1034 = vmax.f32 %v924, 0.0
      %v1035 = vmax.f32 %v929, 0.0
      %v1036 = vmax.f32 %v934, 0.0
      %v1037 = vmax.f32 %v939, 0.0
      %v1038 = vmax.f32 %v944, 0.0
      %v1039 = vmax.f32 %v949, 0.0
      %v1040 = vmax.f32 %v954, 0.0
      %v1041 = vmax.f32 %v959, 0.0
      %v1042 = vmax.f32 %v964, 0.0
      %v1043 = vmax.f32 %v969, 0.0
      %v1044 = vmax.f32 %v974, 0.0
      %v1045 = vmax.f32 %v979, 0.0
      %v1046 = vld [vmem:[%s4] sm:$0xff]
      %v1047 = vld [vmem:[%s4 + $0x8] sm:$0xff]
      %v1048 = vld [vmem:[%s4 + $0x10] sm:$0xff]
      %v1049 = vld [vmem:[%s4 + $0x18] sm:$0xff]
      %v1050 = vld [vmem:[%s4 + $0x20] sm:$0xff]
      %v1051 = vld [vmem:[%s4 + $0x28] sm:$0xff]
      %v1052 = vld [vmem:[%s4 + $0x30] sm:$0xff]
      %v1053 = vld [vmem:[%s4 + $0x38] sm:$0xff]
      %v1054 = vld [vmem:[%s5] sm:$0x1]
      %v1056 = vlaneseq
      %v1057 = vshrl.u32 %v1056, 7
      %v1058 = vsub.s32 0, %v1057
      %v1059 = vrot.slane %v1054, %v1058
      %vm1061 = vcmask 523264
      %v1063 = vsel %vm1061, %v982, 0
      %v1066 = vsel %vm1061, %v983, 0
      %v1069 = vsel %vm1061, %v984, 0
      %v1072 = vsel %vm1061, %v985, 0
      %v1075 = vsel %vm1061, %v986, 0
      %v1078 = vsel %vm1061, %v987, 0
      %v1081 = vsel %vm1061, %v988, 0
      %v1084 = vsel %vm1061, %v989, 0
      %v1087 = vsel %vm1061, %v990, 0
      %v1090 = vsel %vm1061, %v991, 0
      %v1093 = vsel %vm1061, %v992, 0
      %v1096 = vsel %vm1061, %v993, 0
      %v1099 = vsel %vm1061, %v994, 0
      %v1102 = vsel %vm1061, %v995, 0
      %v1105 = vsel %vm1061, %v996, 0
      %v1108 = vsel %vm1061, %v997, 0
      %v1111 = vsel %vm1061, %v998, 0
      %v1114 = vsel %vm1061, %v999, 0
      %v1117 = vsel %vm1061, %v1000, 0
      %v1120 = vsel %vm1061, %v1001, 0
      %v1123 = vsel %vm1061, %v1002, 0
      %v1126 = vsel %vm1061, %v1003, 0
      %v1129 = vsel %vm1061, %v1004, 0
      %v1132 = vsel %vm1061, %v1005, 0
      %v1135 = vsel %vm1061, %v1006, 0
      %v1138 = vsel %vm1061, %v1007, 0
      %v1141 = vsel %vm1061, %v1008, 0
      %v1144 = vsel %vm1061, %v1009, 0
      %v1147 = vsel %vm1061, %v1010, 0
      %v1150 = vsel %vm1061, %v1011, 0
      %v1153 = vsel %vm1061, %v1012, 0
      %v1156 = vsel %vm1061, %v1013, 0
      %v1159 = vsel %vm1061, %v1014, 0
      %v1162 = vsel %vm1061, %v1015, 0
      %v1165 = vsel %vm1061, %v1016, 0
      %v1168 = vsel %vm1061, %v1017, 0
      %v1171 = vsel %vm1061, %v1018, 0
      %v1174 = vsel %vm1061, %v1019, 0
      %v1177 = vsel %vm1061, %v1020, 0
      %v1180 = vsel %vm1061, %v1021, 0
      %v1183 = vsel %vm1061, %v1022, 0
      %v1186 = vsel %vm1061, %v1023, 0
      %v1189 = vsel %vm1061, %v1024, 0
      %v1192 = vsel %vm1061, %v1025, 0
      %v1195 = vsel %vm1061, %v1026, 0
      %v1198 = vsel %vm1061, %v1027, 0
      %v1201 = vsel %vm1061, %v1028, 0
      %v1204 = vsel %vm1061, %v1029, 0
      %v1207 = vsel %vm1061, %v1030, 0
      %v1210 = vsel %vm1061, %v1031, 0
      %v1213 = vsel %vm1061, %v1032, 0
      %v1216 = vsel %vm1061, %v1033, 0
      %v1219 = vsel %vm1061, %v1034, 0
      %v1222 = vsel %vm1061, %v1035, 0
      %v1225 = vsel %vm1061, %v1036, 0
      %v1228 = vsel %vm1061, %v1037, 0
      %v1231 = vsel %vm1061, %v1038, 0
      %v1234 = vsel %vm1061, %v1039, 0
      %v1237 = vsel %vm1061, %v1040, 0
      %v1240 = vsel %vm1061, %v1041, 0
      %v1243 = vsel %vm1061, %v1042, 0
      %v1246 = vsel %vm1061, %v1043, 0
      %v1249 = vsel %vm1061, %v1044, 0
      %v1252 = vsel %vm1061, %v1045, 0
      %1254 = vmatprep.subr.mxu0 0.0
      %1255 = vmatpush1.msra.mxu0 %v1046
      %1256 = vmatprep.subr.mxu0 0.0
      %1257 = vmatpush1.msra.mxu0 %v1047
      %1258 = vmatprep.subr.mxu0 0.0
      %1259 = vmatpush1.msra.mxu0 %v1048
      %1260 = vmatprep.subr.mxu0 0.0
      %1261 = vmatpush1.msra.mxu0 %v1049
      %1262 = vmatprep.subr.mxu0 0.0
      %1263 = vmatpush1.msra.mxu0 %v1050
      %1264 = vmatprep.subr.mxu0 0.0
      %1265 = vmatpush1.msra.mxu0 %v1051
      %1266 = vmatprep.subr.mxu0 0.0
      %1267 = vmatpush1.msra.mxu0 %v1052
      %1268 = vmatprep.subr.mxu0 0.0
      %1269 = vmatpush1.msra.mxu0 %v1053
      %1270 = vmatprep.subr.mxu0 0.0
      %1271 = vmatpush1.msra.mxu0 0.0
      %1272 = vmatprep.subr.mxu0 0.0
      %1273 = vmatpush1.msra.mxu0 0.0
      %1274 = vmatprep.subr.mxu0 0.0
      %1275 = vmatpush1.msra.mxu0 0.0
      %1276 = vmatprep.subr.mxu0 0.0
      %1277 = vmatpush1.msra.mxu0 0.0
      %1278 = vmatprep.subr.mxu0 0.0
      %1279 = vmatpush1.msra.mxu0 0.0
      %1280 = vmatprep.subr.mxu0 0.0
      %1281 = vmatpush1.msra.mxu0 0.0
      %1282 = vmatprep.subr.mxu0 0.0
      %1283 = vmatpush1.msra.mxu0 0.0
      %1284 = vmatprep.subr.mxu0 0.0
      %1285 = vmatpush1.msra.mxu0 0.0
      %1286 = vmatprep.subr.mxu0 0.0
      %1287 = vmatpush1.msra.mxu0 0.0
      %1288 = vmatprep.subr.mxu0 0.0
      %1289 = vmatpush1.msra.mxu0 0.0
      %1290 = vmatprep.subr.mxu0 0.0
      %1291 = vmatpush1.msra.mxu0 0.0
      %1292 = vmatprep.subr.mxu0 0.0
      %1293 = vmatpush1.msra.mxu0 0.0
      %1294 = vmatprep.subr.mxu0 0.0
      %1295 = vmatpush1.msra.mxu0 0.0
      %1296 = vmatprep.subr.mxu0 0.0
      %1297 = vmatpush1.msra.mxu0 0.0
      %1298 = vmatprep.subr.mxu0 0.0
      %1299 = vmatpush1.msra.mxu0 0.0
      %1300 = vmatprep.subr.mxu0 0.0
      %1301 = vmatpush1.msra.mxu0 0.0
      %1302 = vmatprep.subr.mxu0 0.0
      %1303 = vmatpush1.msra.mxu0 0.0
      %1304 = vmatprep.subr.mxu0 0.0
      %1305 = vmatpush1.msra.mxu0 0.0
      %1306 = vmatprep.subr.mxu0 0.0
      %1307 = vmatpush1.msra.mxu0 0.0
      %1308 = vmatprep.subr.mxu0 0.0
      %1309 = vmatpush1.msra.mxu0 0.0
      %1310 = vmatprep.subr.mxu0 0.0
      %1311 = vmatpush1.msra.mxu0 0.0
      %1312 = vmatprep.subr.mxu0 0.0
      %1313 = vmatpush1.msra.mxu0 0.0
      %1314 = vmatprep.subr.mxu0 0.0
      %1315 = vmatpush1.msra.mxu0 0.0
      %1316 = vmatprep.subr.mxu0 0.0
      %1317 = vmatpush1.msra.mxu0 0.0
      %1318 = vmatprep.mubr.f32.mxu0 0.0
      %1319 = vmatmul.mubr.f32.gmra.mrb[0].mxu0 %v1063
      %v1320 = vpop.f32.mrb[0].mxu0
      %v1321 = vadd.f32 %v1059, %v1320
      %v1322 = vpop.f32.mrb[0].mxu0
      %1323 = vmatprep.mubr.f32.mxu0 0.0
      %1324 = vmatmul.mubr.f32.gmra.mrb[0].mxu0 %v1066
      %v1325 = vpop.f32.mrb[0].mxu0
      %v1326 = vadd.f32 %v1059, %v1325
      %v1327 = vpop.f32.mrb[0].mxu0
      %1328 = vmatprep.mubr.f32.mxu0 0.0
      %1329 = vmatmul.mubr.f32.gmra.mrb[0].mxu0 %v1069
      %v1330 = vpop.f32.mrb[0].mxu0
      %v1331 = vadd.f32 %v1059, %v1330
      %v1332 = vpop.f32.mrb[0].mxu0
      %1333 = vmatprep.mubr.f32.mxu0 0.0
      %1334 = vmatmul.mubr.f32.gmra.mrb[0].mxu0 %v1072
      %v1335 = vpop.f32.mrb[0].mxu0
      %v1336 = vadd.f32 %v1059, %v1335
      %v1337 = vpop.f32.mrb[0].mxu0
      %1338 = vmatprep.mubr.f32.mxu0 0.0
      %1339 = vmatmul.mubr.f32.gmra.mrb[0].mxu0 %v1075
      %v1340 = vpop.f32.mrb[0].mxu0
      %v1341 = vadd.f32 %v1059, %v1340
      %v1342 = vpop.f32.mrb[0].mxu0
      %1343 = vmatprep.mubr.f32.mxu0 0.0
      %1344 = vmatmul.mubr.f32.gmra.mrb[0].mxu0 %v1078
      %v1345 = vpop.f32.mrb[0].mxu0
      %v1346 = vadd.f32 %v1059, %v1345
      %v1347 = vpop.f32.mrb[0].mxu0
      %1348 = vmatprep.mubr.f32.mxu0 0.0
      %1349 = vmatmul.mubr.f32.gmra.mrb[0].mxu0 %v1081
      %v1350 = vpop.f32.mrb[0].mxu0
      %v1351 = vadd.f32 %v1059, %v1350
      %v1352 = vpop.f32.mrb[0].mxu0
      %1353 = vmatprep.mubr.f32.mxu0 0.0
      %1354 = vmatmul.mubr.f32.gmra.mrb[0].mxu0 %v1084
      %v1355 = vpop.f32.mrb[0].mxu0
      %v1356 = vadd.f32 %v1059, %v1355
      %v1357 = vpop.f32.mrb[0].mxu0
      %1358 = vmatprep.mubr.f32.mxu0 0.0
      %1359 = vmatmul.mubr.f32.gmra.mrb[0].mxu0 %v1087
      %v1360 = vpop.f32.mrb[0].mxu0
      %v1361 = vadd.f32 %v1059, %v1360
      %v1362 = vpop.f32.mrb[0].mxu0
      %1363 = vmatprep.mubr.f32.mxu0 0.0
      %1364 = vmatmul.mubr.f32.gmra.mrb[0].mxu0 %v1090
      %v1365 = vpop.f32.mrb[0].mxu0
      %v1366 = vadd.f32 %v1059, %v1365
      %v1367 = vpop.f32.mrb[0].mxu0
      %1368 = vmatprep.mubr.f32.mxu0 0.0
      %1369 = vmatmul.mubr.f32.gmra.mrb[0].mxu0 %v1093
      %v1370 = vpop.f32.mrb[0].mxu0
      %v1371 = vadd.f32 %v1059, %v1370
      %v1372 = vpop.f32.mrb[0].mxu0
      %1373 = vmatprep.mubr.f32.mxu0 0.0
      %1374 = vmatmul.mubr.f32.gmra.mrb[0].mxu0 %v1096
      %v1375 = vpop.f32.mrb[0].mxu0
      %v1376 = vadd.f32 %v1059, %v1375
      %v1377 = vpop.f32.mrb[0].mxu0
      %1378 = vmatprep.mubr.f32.mxu0 0.0
      %1379 = vmatmul.mubr.f32.gmra.mrb[0].mxu0 %v1099
      %v1380 = vpop.f32.mrb[0].mxu0
      %v1381 = vadd.f32 %v1059, %v1380
      %v1382 = vpop.f32.mrb[0].mxu0
      %1383 = vmatprep.mubr.f32.mxu0 0.0
      %1384 = vmatmul.mubr.f32.gmra.mrb[0].mxu0 %v1102
      %v1385 = vpop.f32.mrb[0].mxu0
      %v1386 = vadd.f32 %v1059, %v1385
      %v1387 = vpop.f32.mrb[0].mxu0
      %1388 = vmatprep.mubr.f32.mxu0 0.0
      %1389 = vmatmul.mubr.f32.gmra.mrb[0].mxu0 %v1105
      %v1390 = vpop.f32.mrb[0].mxu0
      %v1391 = vadd.f32 %v1059, %v1390
      %v1392 = vpop.f32.mrb[0].mxu0
      %1393 = vmatprep.mubr.f32.mxu0 0.0
      %1394 = vmatmul.mubr.f32.gmra.mrb[0].mxu0 %v1108
      %v1395 = vpop.f32.mrb[0].mxu0
      %v1396 = vadd.f32 %v1059, %v1395
      %v1397 = vpop.f32.mrb[0].mxu0
      %1398 = vmatprep.mubr.f32.mxu0 0.0
      %1399 = vmatmul.mubr.f32.gmra.mrb[0].mxu0 %v1111
      %v1400 = vpop.f32.mrb[0].mxu0
      %v1401 = vadd.f32 %v1059, %v1400
      %v1402 = vpop.f32.mrb[0].mxu0
      %1403 = vmatprep.mubr.f32.mxu0 0.0
      %1404 = vmatmul.mubr.f32.gmra.mrb[0].mxu0 %v1114
      %v1405 = vpop.f32.mrb[0].mxu0
      %v1406 = vadd.f32 %v1059, %v1405
      %v1407 = vpop.f32.mrb[0].mxu0
      %1408 = vmatprep.mubr.f32.mxu0 0.0
      %1409 = vmatmul.mubr.f32.gmra.mrb[0].mxu0 %v1117
      %v1410 = vpop.f32.mrb[0].mxu0
      %v1411 = vadd.f32 %v1059, %v1410
      %v1412 = vpop.f32.mrb[0].mxu0
      %1413 = vmatprep.mubr.f32.mxu0 0.0
      %1414 = vmatmul.mubr.f32.gmra.mrb[0].mxu0 %v1120
      %v1415 = vpop.f32.mrb[0].mxu0
      %v1416 = vadd.f32 %v1059, %v1415
      %v1417 = vpop.f32.mrb[0].mxu0
      %1418 = vmatprep.mubr.f32.mxu0 0.0
      %1419 = vmatmul.mubr.f32.gmra.mrb[0].mxu0 %v1123
      %v1420 = vpop.f32.mrb[0].mxu0
      %v1421 = vadd.f32 %v1059, %v1420
      %v1422 = vpop.f32.mrb[0].mxu0
      %1423 = vmatprep.mubr.f32.mxu0 0.0
      %1424 = vmatmul.mubr.f32.gmra.mrb[0].mxu0 %v1126
      %v1425 = vpop.f32.mrb[0].mxu0
      %v1426 = vadd.f32 %v1059, %v1425
      %v1427 = vpop.f32.mrb[0].mxu0
      %1428 = vmatprep.mubr.f32.mxu0 0.0
      %1429 = vmatmul.mubr.f32.gmra.mrb[0].mxu0 %v1129
      %v1430 = vpop.f32.mrb[0].mxu0
      %v1431 = vadd.f32 %v1059, %v1430
      %v1432 = vpop.f32.mrb[0].mxu0
      %1433 = vmatprep.mubr.f32.mxu0 0.0
      %1434 = vmatmul.mubr.f32.gmra.mrb[0].mxu0 %v1132
      %v1435 = vpop.f32.mrb[0].mxu0
      %v1436 = vadd.f32 %v1059, %v1435
      %v1437 = vpop.f32.mrb[0].mxu0
      %1438 = vmatprep.mubr.f32.mxu0 0.0
      %1439 = vmatmul.mubr.f32.gmra.mrb[0].mxu0 %v1135
      %v1440 = vpop.f32.mrb[0].mxu0
      %v1441 = vadd.f32 %v1059, %v1440
      %v1442 = vpop.f32.mrb[0].mxu0
      %1443 = vmatprep.mubr.f32.mxu0 0.0
      %1444 = vmatmul.mubr.f32.gmra.mrb[0].mxu0 %v1138
      %v1445 = vpop.f32.mrb[0].mxu0
      %v1446 = vadd.f32 %v1059, %v1445
      %v1447 = vpop.f32.mrb[0].mxu0
      %1448 = vmatprep.mubr.f32.mxu0 0.0
      %1449 = vmatmul.mubr.f32.gmra.mrb[0].mxu0 %v1141
      %v1450 = vpop.f32.mrb[0].mxu0
      %v1451 = vadd.f32 %v1059, %v1450
      %v1452 = vpop.f32.mrb[0].mxu0
      %1453 = vmatprep.mubr.f32.mxu0 0.0
      %1454 = vmatmul.mubr.f32.gmra.mrb[0].mxu0 %v1144
      %v1455 = vpop.f32.mrb[0].mxu0
      %v1456 = vadd.f32 %v1059, %v1455
      %v1457 = vpop.f32.mrb[0].mxu0
      %1458 = vmatprep.mubr.f32.mxu0 0.0
      %1459 = vmatmul.mubr.f32.gmra.mrb[0].mxu0 %v1147
      %v1460 = vpop.f32.mrb[0].mxu0
      %v1461 = vadd.f32 %v1059, %v1460
      %v1462 = vpop.f32.mrb[0].mxu0
      %1463 = vmatprep.mubr.f32.mxu0 0.0
      %1464 = vmatmul.mubr.f32.gmra.mrb[0].mxu0 %v1150
      %v1465 = vpop.f32.mrb[0].mxu0
      %v1466 = vadd.f32 %v1059, %v1465
      %v1467 = vpop.f32.mrb[0].mxu0
      %1468 = vmatprep.mubr.f32.mxu0 0.0
      %1469 = vmatmul.mubr.f32.gmra.mrb[0].mxu0 %v1153
      %v1470 = vpop.f32.mrb[0].mxu0
      %v1471 = vadd.f32 %v1059, %v1470
      %v1472 = vpop.f32.mrb[0].mxu0
      %1473 = vmatprep.mubr.f32.mxu0 0.0
      %1474 = vmatmul.mubr.f32.gmra.mrb[0].mxu0 %v1156
      %v1475 = vpop.f32.mrb[0].mxu0
      %v1476 = vadd.f32 %v1059, %v1475
      %v1477 = vpop.f32.mrb[0].mxu0
      %1478 = vmatprep.mubr.f32.mxu0 0.0
      %1479 = vmatmul.mubr.f32.gmra.mrb[0].mxu0 %v1159
      %v1480 = vpop.f32.mrb[0].mxu0
      %v1481 = vadd.f32 %v1059, %v1480
      %v1482 = vpop.f32.mrb[0].mxu0
      %1483 = vmatprep.mubr.f32.mxu0 0.0
      %1484 = vmatmul.mubr.f32.gmra.mrb[0].mxu0 %v1162
      %v1485 = vpop.f32.mrb[0].mxu0
      %v1486 = vadd.f32 %v1059, %v1485
      %v1487 = vpop.f32.mrb[0].mxu0
      %1488 = vmatprep.mubr.f32.mxu0 0.0
      %1489 = vmatmul.mubr.f32.gmra.mrb[0].mxu0 %v1165
      %v1490 = vpop.f32.mrb[0].mxu0
      %v1491 = vadd.f32 %v1059, %v1490
      %v1492 = vpop.f32.mrb[0].mxu0
      %1493 = vmatprep.mubr.f32.mxu0 0.0
      %1494 = vmatmul.mubr.f32.gmra.mrb[0].mxu0 %v1168
      %v1495 = vpop.f32.mrb[0].mxu0
      %v1496 = vadd.f32 %v1059, %v1495
      %v1497 = vpop.f32.mrb[0].mxu0
      %1498 = vmatprep.mubr.f32.mxu0 0.0
      %1499 = vmatmul.mubr.f32.gmra.mrb[0].mxu0 %v1171
      %v1500 = vpop.f32.mrb[0].mxu0
      %v1501 = vadd.f32 %v1059, %v1500
      %v1502 = vpop.f32.mrb[0].mxu0
      %1503 = vmatprep.mubr.f32.mxu0 0.0
      %1504 = vmatmul.mubr.f32.gmra.mrb[0].mxu0 %v1174
      %v1505 = vpop.f32.mrb[0].mxu0
      %v1506 = vadd.f32 %v1059, %v1505
      %v1507 = vpop.f32.mrb[0].mxu0
      %1508 = vmatprep.mubr.f32.mxu0 0.0
      %1509 = vmatmul.mubr.f32.gmra.mrb[0].mxu0 %v1177
      %v1510 = vpop.f32.mrb[0].mxu0
      %v1511 = vadd.f32 %v1059, %v1510
      %v1512 = vpop.f32.mrb[0].mxu0
      %1513 = vmatprep.mubr.f32.mxu0 0.0
      %1514 = vmatmul.mubr.f32.gmra.mrb[0].mxu0 %v1180
      %v1515 = vpop.f32.mrb[0].mxu0
      %v1516 = vadd.f32 %v1059, %v1515
      %v1517 = vpop.f32.mrb[0].mxu0
      %1518 = vmatprep.mubr.f32.mxu0 0.0
      %1519 = vmatmul.mubr.f32.gmra.mrb[0].mxu0 %v1183
      %v1520 = vpop.f32.mrb[0].mxu0
      %v1521 = vadd.f32 %v1059, %v1520
      %v1522 = vpop.f32.mrb[0].mxu0
      %1523 = vmatprep.mubr.f32.mxu0 0.0
      %1524 = vmatmul.mubr.f32.gmra.mrb[0].mxu0 %v1186
      %v1525 = vpop.f32.mrb[0].mxu0
      %v1526 = vadd.f32 %v1059, %v1525
      %v1527 = vpop.f32.mrb[0].mxu0
      %1528 = vmatprep.mubr.f32.mxu0 0.0
      %1529 = vmatmul.mubr.f32.gmra.mrb[0].mxu0 %v1189
      %v1530 = vpop.f32.mrb[0].mxu0
      %v1531 = vadd.f32 %v1059, %v1530
      %v1532 = vpop.f32.mrb[0].mxu0
      %1533 = vmatprep.mubr.f32.mxu0 0.0
      %1534 = vmatmul.mubr.f32.gmra.mrb[0].mxu0 %v1192
      %v1535 = vpop.f32.mrb[0].mxu0
      %v1536 = vadd.f32 %v1059, %v1535
      %v1537 = vpop.f32.mrb[0].mxu0
      %1538 = vmatprep.mubr.f32.mxu0 0.0
      %1539 = vmatmul.mubr.f32.gmra.mrb[0].mxu0 %v1195
      %v1540 = vpop.f32.mrb[0].mxu0
      %v1541 = vadd.f32 %v1059, %v1540
      %v1542 = vpop.f32.mrb[0].mxu0
      %1543 = vmatprep.mubr.f32.mxu0 0.0
      %1544 = vmatmul.mubr.f32.gmra.mrb[0].mxu0 %v1198
      %v1545 = vpop.f32.mrb[0].mxu0
      %v1546 = vadd.f32 %v1059, %v1545
      %v1547 = vpop.f32.mrb[0].mxu0
      %1548 = vmatprep.mubr.f32.mxu0 0.0
      %1549 = vmatmul.mubr.f32.gmra.mrb[0].mxu0 %v1201
      %v1550 = vpop.f32.mrb[0].mxu0
      %v1551 = vadd.f32 %v1059, %v1550
      %v1552 = vpop.f32.mrb[0].mxu0
      %1553 = vmatprep.mubr.f32.mxu0 0.0
      %1554 = vmatmul.mubr.f32.gmra.mrb[0].mxu0 %v1204
      %v1555 = vpop.f32.mrb[0].mxu0
      %v1556 = vadd.f32 %v1059, %v1555
      %v1557 = vpop.f32.mrb[0].mxu0
      %1558 = vmatprep.mubr.f32.mxu0 0.0
      %1559 = vmatmul.mubr.f32.gmra.mrb[0].mxu0 %v1207
      %v1560 = vpop.f32.mrb[0].mxu0
      %v1561 = vadd.f32 %v1059, %v1560
      %v1562 = vpop.f32.mrb[0].mxu0
      %1563 = vmatprep.mubr.f32.mxu0 0.0
      %1564 = vmatmul.mubr.f32.gmra.mrb[0].mxu0 %v1210
      %v1565 = vpop.f32.mrb[0].mxu0
      %v1566 = vadd.f32 %v1059, %v1565
      %v1567 = vpop.f32.mrb[0].mxu0
      %1568 = vmatprep.mubr.f32.mxu0 0.0
      %1569 = vmatmul.mubr.f32.gmra.mrb[0].mxu0 %v1213
      %v1570 = vpop.f32.mrb[0].mxu0
      %v1571 = vadd.f32 %v1059, %v1570
      %v1572 = vpop.f32.mrb[0].mxu0
      %1573 = vmatprep.mubr.f32.mxu0 0.0
      %1574 = vmatmul.mubr.f32.gmra.mrb[0].mxu0 %v1216
      %v1575 = vpop.f32.mrb[0].mxu0
      %v1576 = vadd.f32 %v1059, %v1575
      %v1577 = vpop.f32.mrb[0].mxu0
      %1578 = vmatprep.mubr.f32.mxu0 0.0
      %1579 = vmatmul.mubr.f32.gmra.mrb[0].mxu0 %v1219
      %v1580 = vpop.f32.mrb[0].mxu0
      %v1581 = vadd.f32 %v1059, %v1580
      %v1582 = vpop.f32.mrb[0].mxu0
      %1583 = vmatprep.mubr.f32.mxu0 0.0
      %1584 = vmatmul.mubr.f32.gmra.mrb[0].mxu0 %v1222
      %v1585 = vpop.f32.mrb[0].mxu0
      %v1586 = vadd.f32 %v1059, %v1585
      %v1587 = vpop.f32.mrb[0].mxu0
      %1588 = vmatprep.mubr.f32.mxu0 0.0
      %1589 = vmatmul.mubr.f32.gmra.mrb[0].mxu0 %v1225
      %v1590 = vpop.f32.mrb[0].mxu0
      %v1591 = vadd.f32 %v1059, %v1590
      %v1592 = vpop.f32.mrb[0].mxu0
      %1593 = vmatprep.mubr.f32.mxu0 0.0
      %1594 = vmatmul.mubr.f32.gmra.mrb[0].mxu0 %v1228
      %v1595 = vpop.f32.mrb[0].mxu0
      %v1596 = vadd.f32 %v1059, %v1595
      %v1597 = vpop.f32.mrb[0].mxu0
      %1598 = vmatprep.mubr.f32.mxu0 0.0
      %1599 = vmatmul.mubr.f32.gmra.mrb[0].mxu0 %v1231
      %v1600 = vpop.f32.mrb[0].mxu0
      %v1601 = vadd.f32 %v1059, %v1600
      %v1602 = vpop.f32.mrb[0].mxu0
      %1603 = vmatprep.mubr.f32.mxu0 0.0
      %1604 = vmatmul.mubr.f32.gmra.mrb[0].mxu0 %v1234
      %v1605 = vpop.f32.mrb[0].mxu0
      %v1606 = vadd.f32 %v1059, %v1605
      %v1607 = vpop.f32.mrb[0].mxu0
      %1608 = vmatprep.mubr.f32.mxu0 0.0
      %1609 = vmatmul.mubr.f32.gmra.mrb[0].mxu0 %v1237
      %v1610 = vpop.f32.mrb[0].mxu0
      %v1611 = vadd.f32 %v1059, %v1610
      %v1612 = vpop.f32.mrb[0].mxu0
      %1613 = vmatprep.mubr.f32.mxu0 0.0
      %1614 = vmatmul.mubr.f32.gmra.mrb[0].mxu0 %v1240
      %v1615 = vpop.f32.mrb[0].mxu0
      %v1616 = vadd.f32 %v1059, %v1615
      %v1617 = vpop.f32.mrb[0].mxu0
      %1618 = vmatprep.mubr.f32.mxu0 0.0
      %1619 = vmatmul.mubr.f32.gmra.mrb[0].mxu0 %v1243
      %v1620 = vpop.f32.mrb[0].mxu0
      %v1621 = vadd.f32 %v1059, %v1620
      %v1622 = vpop.f32.mrb[0].mxu0
      %1623 = vmatprep.mubr.f32.mxu0 0.0
      %1624 = vmatmul.mubr.f32.gmra.mrb[0].mxu0 %v1246
      %v1625 = vpop.f32.mrb[0].mxu0
      %v1626 = vadd.f32 %v1059, %v1625
      %v1627 = vpop.f32.mrb[0].mxu0
      %1628 = vmatprep.mubr.f32.mxu0 0.0
      %1629 = vmatmul.mubr.f32.gmra.mrb[0].mxu0 %v1249
      %v1630 = vpop.f32.mrb[0].mxu0
      %v1631 = vadd.f32 %v1059, %v1630
      %v1632 = vpop.f32.mrb[0].mxu0
      %1633 = vmatprep.mubr.f32.mxu0 0.0
      %1634 = vmatmul.mubr.f32.gmra.mrb[0].mxu0 %v1252
      %v1635 = vpop.f32.mrb[0].mxu0
      %v1636 = vadd.f32 %v1059, %v1635
      %v1637 = vpop.f32.mrb[0].mxu0
      %1638 = vdwg.mxu0
      %v1639 = vmax.f32 %v1321, 0.0
      %v1640 = vmax.f32 %v1326, 0.0
      %v1641 = vmax.f32 %v1331, 0.0
      %v1642 = vmax.f32 %v1336, 0.0
      %v1643 = vmax.f32 %v1341, 0.0
      %v1644 = vmax.f32 %v1346, 0.0
      %v1645 = vmax.f32 %v1351, 0.0
      %v1646 = vmax.f32 %v1356, 0.0
      %v1647 = vmax.f32 %v1361, 0.0
      %v1648 = vmax.f32 %v1366, 0.0
      %v1649 = vmax.f32 %v1371, 0.0
      %v1650 = vmax.f32 %v1376, 0.0
      %v1651 = vmax.f32 %v1381, 0.0
      %v1652 = vmax.f32 %v1386, 0.0
      %v1653 = vmax.f32 %v1391, 0.0
      %v1654 = vmax.f32 %v1396, 0.0
      %v1655 = vmax.f32 %v1401, 0.0
      %v1656 = vmax.f32 %v1406, 0.0
      %v1657 = vmax.f32 %v1411, 0.0
      %v1658 = vmax.f32 %v1416, 0.0
      %v1659 = vmax.f32 %v1421, 0.0
      %v1660 = vmax.f32 %v1426, 0.0
      %v1661 = vmax.f32 %v1431, 0.0
      %v1662 = vmax.f32 %v1436, 0.0
      %v1663 = vmax.f32 %v1441, 0.0
      %v1664 = vmax.f32 %v1446, 0.0
      %v1665 = vmax.f32 %v1451, 0.0
      %v1666 = vmax.f32 %v1456, 0.0
      %v1667 = vmax.f32 %v1461, 0.0
      %v1668 = vmax.f32 %v1466, 0.0
      %v1669 = vmax.f32 %v1471, 0.0
      %v1670 = vmax.f32 %v1476, 0.0
      %v1671 = vmax.f32 %v1481, 0.0
      %v1672 = vmax.f32 %v1486, 0.0
      %v1673 = vmax.f32 %v1491, 0.0
      %v1674 = vmax.f32 %v1496, 0.0
      %v1675 = vmax.f32 %v1501, 0.0
      %v1676 = vmax.f32 %v1506, 0.0
      %v1677 = vmax.f32 %v1511, 0.0
      %v1678 = vmax.f32 %v1516, 0.0
      %v1679 = vmax.f32 %v1521, 0.0
      %v1680 = vmax.f32 %v1526, 0.0
      %v1681 = vmax.f32 %v1531, 0.0
      %v1682 = vmax.f32 %v1536, 0.0
      %v1683 = vmax.f32 %v1541, 0.0
      %v1684 = vmax.f32 %v1546, 0.0
      %v1685 = vmax.f32 %v1551, 0.0
      %v1686 = vmax.f32 %v1556, 0.0
      %v1687 = vmax.f32 %v1561, 0.0
      %v1688 = vmax.f32 %v1566, 0.0
      %v1689 = vmax.f32 %v1571, 0.0
      %v1690 = vmax.f32 %v1576, 0.0
      %v1691 = vmax.f32 %v1581, 0.0
      %v1692 = vmax.f32 %v1586, 0.0
      %v1693 = vmax.f32 %v1591, 0.0
      %v1694 = vmax.f32 %v1596, 0.0
      %v1695 = vmax.f32 %v1601, 0.0
      %v1696 = vmax.f32 %v1606, 0.0
      %v1697 = vmax.f32 %v1611, 0.0
      %v1698 = vmax.f32 %v1616, 0.0
      %v1699 = vmax.f32 %v1621, 0.0
      %v1700 = vmax.f32 %v1626, 0.0
      %v1701 = vmax.f32 %v1631, 0.0
      %v1702 = vmax.f32 %v1636, 0.0
      %v1703 = vld [vmem:[%s6] sm:$0xff]
      %v1704 = vld [vmem:[%s6 + $0x8] sm:$0xff]
      %v1705 = vld [vmem:[%s6 + $0x10] sm:$0xff]
      %v1706 = vld [vmem:[%s6 + $0x18] sm:$0xff]
      %v1707 = vld [vmem:[%s6 + $0x20] sm:$0xff]
      %v1708 = vld [vmem:[%s6 + $0x28] sm:$0xff]
      %v1709 = vld [vmem:[%s6 + $0x30] sm:$0xff]
      %v1710 = vld [vmem:[%s6 + $0x38] sm:$0xff]
      %v1711 = vld [vmem:[%s7] sm:$0x1]
      %v1713 = vlaneseq
      %v1714 = vshrl.u32 %v1713, 7
      %v1715 = vsub.s32 0, %v1714
      %v1716 = vrot.slane %v1711, %v1715
      %v1719 = vsel %vm1061, %v1639, 0
      %v1722 = vsel %vm1061, %v1640, 0
      %v1725 = vsel %vm1061, %v1641, 0
      %v1728 = vsel %vm1061, %v1642, 0
      %v1731 = vsel %vm1061, %v1643, 0
      %v1734 = vsel %vm1061, %v1644, 0
      %v1737 = vsel %vm1061, %v1645, 0
      %v1740 = vsel %vm1061, %v1646, 0
      %v1743 = vsel %vm1061, %v1647, 0
      %v1746 = vsel %vm1061, %v1648, 0
      %v1749 = vsel %vm1061, %v1649, 0
      %v1752 = vsel %vm1061, %v1650, 0
      %v1755 = vsel %vm1061, %v1651, 0
      %v1758 = vsel %vm1061, %v1652, 0
      %v1761 = vsel %vm1061, %v1653, 0
      %v1764 = vsel %vm1061, %v1654, 0
      %v1767 = vsel %vm1061, %v1655, 0
      %v1770 = vsel %vm1061, %v1656, 0
      %v1773 = vsel %vm1061, %v1657, 0
      %v1776 = vsel %vm1061, %v1658, 0
      %v1779 = vsel %vm1061, %v1659, 0
      %v1782 = vsel %vm1061, %v1660, 0
      %v1785 = vsel %vm1061, %v1661, 0
      %v1788 = vsel %vm1061, %v1662, 0
      %v1791 = vsel %vm1061, %v1663, 0
      %v1794 = vsel %vm1061, %v1664, 0
      %v1797 = vsel %vm1061, %v1665, 0
      %v1800 = vsel %vm1061, %v1666, 0
      %v1803 = vsel %vm1061, %v1667, 0
      %v1806 = vsel %vm1061, %v1668, 0
      %v1809 = vsel %vm1061, %v1669, 0
      %v1812 = vsel %vm1061, %v1670, 0
      %v1815 = vsel %vm1061, %v1671, 0
      %v1818 = vsel %vm1061, %v1672, 0
      %v1821 = vsel %vm1061, %v1673, 0
      %v1824 = vsel %vm1061, %v1674, 0
      %v1827 = vsel %vm1061, %v1675, 0
      %v1830 = vsel %vm1061, %v1676, 0
      %v1833 = vsel %vm1061, %v1677, 0
      %v1836 = vsel %vm1061, %v1678, 0
      %v1839 = vsel %vm1061, %v1679, 0
      %v1842 = vsel %vm1061, %v1680, 0
      %v1845 = vsel %vm1061, %v1681, 0
      %v1848 = vsel %vm1061, %v1682, 0
      %v1851 = vsel %vm1061, %v1683, 0
      %v1854 = vsel %vm1061, %v1684, 0
      %v1857 = vsel %vm1061, %v1685, 0
      %v1860 = vsel %vm1061, %v1686, 0
      %v1863 = vsel %vm1061, %v1687, 0
      %v1866 = vsel %vm1061, %v1688, 0
      %v1869 = vsel %vm1061, %v1689, 0
      %v1872 = vsel %vm1061, %v1690, 0
      %v1875 = vsel %vm1061, %v1691, 0
      %v1878 = vsel %vm1061, %v1692, 0
      %v1881 = vsel %vm1061, %v1693, 0
      %v1884 = vsel %vm1061, %v1694, 0
      %v1887 = vsel %vm1061, %v1695, 0
      %v1890 = vsel %vm1061, %v1696, 0
      %v1893 = vsel %vm1061, %v1697, 0
      %v1896 = vsel %vm1061, %v1698, 0
      %v1899 = vsel %vm1061, %v1699, 0
      %v1902 = vsel %vm1061, %v1700, 0
      %v1905 = vsel %vm1061, %v1701, 0
      %v1908 = vsel %vm1061, %v1702, 0
      %1910 = vmatprep.subr.mxu0 0.0
      %1911 = vmatpush1.msra.mxu0 %v1703
      %1912 = vmatprep.subr.mxu0 0.0
      %1913 = vmatpush1.msra.mxu0 %v1704
      %1914 = vmatprep.subr.mxu0 0.0
      %1915 = vmatpush1.msra.mxu0 %v1705
      %1916 = vmatprep.subr.mxu0 0.0
      %1917 = vmatpush1.msra.mxu0 %v1706
      %1918 = vmatprep.subr.mxu0 0.0
      %1919 = vmatpush1.msra.mxu0 %v1707
      %1920 = vmatprep.subr.mxu0 0.0
      %1921 = vmatpush1.msra.mxu0 %v1708
      %1922 = vmatprep.subr.mxu0 0.0
      %1923 = vmatpush1.msra.mxu0 %v1709
      %1924 = vmatprep.subr.mxu0 0.0
      %1925 = vmatpush1.msra.mxu0 %v1710
      %1926 = vmatprep.subr.mxu0 0.0
      %1927 = vmatpush1.msra.mxu0 0.0
      %1928 = vmatprep.subr.mxu0 0.0
      %1929 = vmatpush1.msra.mxu0 0.0
      %1930 = vmatprep.subr.mxu0 0.0
      %1931 = vmatpush1.msra.mxu0 0.0
      %1932 = vmatprep.subr.mxu0 0.0
      %1933 = vmatpush1.msra.mxu0 0.0
      %1934 = vmatprep.subr.mxu0 0.0
      %1935 = vmatpush1.msra.mxu0 0.0
      %1936 = vmatprep.subr.mxu0 0.0
      %1937 = vmatpush1.msra.mxu0 0.0
      %1938 = vmatprep.subr.mxu0 0.0
      %1939 = vmatpush1.msra.mxu0 0.0
      %1940 = vmatprep.subr.mxu0 0.0
      %1941 = vmatpush1.msra.mxu0 0.0
      %1942 = vmatprep.subr.mxu0 0.0
      %1943 = vmatpush1.msra.mxu0 0.0
      %1944 = vmatprep.subr.mxu0 0.0
      %1945 = vmatpush1.msra.mxu0 0.0
      %1946 = vmatprep.subr.mxu0 0.0
      %1947 = vmatpush1.msra.mxu0 0.0
      %1948 = vmatprep.subr.mxu0 0.0
      %1949 = vmatpush1.msra.mxu0 0.0
      %1950 = vmatprep.subr.mxu0 0.0
      %1951 = vmatpush1.msra.mxu0 0.0
      %1952 = vmatprep.subr.mxu0 0.0
      %1953 = vmatpush1.msra.mxu0 0.0
      %1954 = vmatprep.subr.mxu0 0.0
      %1955 = vmatpush1.msra.mxu0 0.0
      %1956 = vmatprep.subr.mxu0 0.0
      %1957 = vmatpush1.msra.mxu0 0.0
      %1958 = vmatprep.subr.mxu0 0.0
      %1959 = vmatpush1.msra.mxu0 0.0
      %1960 = vmatprep.subr.mxu0 0.0
      %1961 = vmatpush1.msra.mxu0 0.0
      %1962 = vmatprep.subr.mxu0 0.0
      %1963 = vmatpush1.msra.mxu0 0.0
      %1964 = vmatprep.subr.mxu0 0.0
      %1965 = vmatpush1.msra.mxu0 0.0
      %1966 = vmatprep.subr.mxu0 0.0
      %1967 = vmatpush1.msra.mxu0 0.0
      %1968 = vmatprep.subr.mxu0 0.0
      %1969 = vmatpush1.msra.mxu0 0.0
      %1970 = vmatprep.subr.mxu0 0.0
      %1971 = vmatpush1.msra.mxu0 0.0
      %1972 = vmatprep.subr.mxu0 0.0
      %1973 = vmatpush1.msra.mxu0 0.0
      %1974 = vmatprep.mubr.f32.mxu0 0.0
      %1975 = vmatmul.mubr.f32.gmra.mrb[0].mxu0 %v1719
      %v1976 = vpop.f32.mrb[0].mxu0
      %v1977 = vadd.f32 %v1716, %v1976
      %v1978 = vpop.f32.mrb[0].mxu0
      %1979 = vmatprep.mubr.f32.mxu0 0.0
      %1980 = vmatmul.mubr.f32.gmra.mrb[0].mxu0 %v1722
      %v1981 = vpop.f32.mrb[0].mxu0
      %v1982 = vadd.f32 %v1716, %v1981
      %v1983 = vpop.f32.mrb[0].mxu0
      %1984 = vmatprep.mubr.f32.mxu0 0.0
      %1985 = vmatmul.mubr.f32.gmra.mrb[0].mxu0 %v1725
      %v1986 = vpop.f32.mrb[0].mxu0
      %v1987 = vadd.f32 %v1716, %v1986
      %v1988 = vpop.f32.mrb[0].mxu0
      %1989 = vmatprep.mubr.f32.mxu0 0.0
      %1990 = vmatmul.mubr.f32.gmra.mrb[0].mxu0 %v1728
      %v1991 = vpop.f32.mrb[0].mxu0
      %v1992 = vadd.f32 %v1716, %v1991
      %v1993 = vpop.f32.mrb[0].mxu0
      %1994 = vmatprep.mubr.f32.mxu0 0.0
      %1995 = vmatmul.mubr.f32.gmra.mrb[0].mxu0 %v1731
      %v1996 = vpop.f32.mrb[0].mxu0
      %v1997 = vadd.f32 %v1716, %v1996
      %v1998 = vpop.f32.mrb[0].mxu0
      %1999 = vmatprep.mubr.f32.mxu0 0.0
      %2000 = vmatmul.mubr.f32.gmra.mrb[0].mxu0 %v1734
      %v2001 = vpop.f32.mrb[0].mxu0
      %v2002 = vadd.f32 %v1716, %v2001
      %v2003 = vpop.f32.mrb[0].mxu0
      %2004 = vmatprep.mubr.f32.mxu0 0.0
      %2005 = vmatmul.mubr.f32.gmra.mrb[0].mxu0 %v1737
      %v2006 = vpop.f32.mrb[0].mxu0
      %v2007 = vadd.f32 %v1716, %v2006
      %v2008 = vpop.f32.mrb[0].mxu0
      %2009 = vmatprep.mubr.f32.mxu0 0.0
      %2010 = vmatmul.mubr.f32.gmra.mrb[0].mxu0 %v1740
      %v2011 = vpop.f32.mrb[0].mxu0
      %v2012 = vadd.f32 %v1716, %v2011
      %v2013 = vpop.f32.mrb[0].mxu0
      %2014 = vmatprep.mubr.f32.mxu0 0.0
      %2015 = vmatmul.mubr.f32.gmra.mrb[0].mxu0 %v1743
      %v2016 = vpop.f32.mrb[0].mxu0
      %v2017 = vadd.f32 %v1716, %v2016
      %v2018 = vpop.f32.mrb[0].mxu0
      %2019 = vmatprep.mubr.f32.mxu0 0.0
      %2020 = vmatmul.mubr.f32.gmra.mrb[0].mxu0 %v1746
      %v2021 = vpop.f32.mrb[0].mxu0
      %v2022 = vadd.f32 %v1716, %v2021
      %v2023 = vpop.f32.mrb[0].mxu0
      %2024 = vmatprep.mubr.f32.mxu0 0.0
      %2025 = vmatmul.mubr.f32.gmra.mrb[0].mxu0 %v1749
      %v2026 = vpop.f32.mrb[0].mxu0
      %v2027 = vadd.f32 %v1716, %v2026
      %v2028 = vpop.f32.mrb[0].mxu0
      %2029 = vmatprep.mubr.f32.mxu0 0.0
      %2030 = vmatmul.mubr.f32.gmra.mrb[0].mxu0 %v1752
      %v2031 = vpop.f32.mrb[0].mxu0
      %v2032 = vadd.f32 %v1716, %v2031
      %v2033 = vpop.f32.mrb[0].mxu0
      %2034 = vmatprep.mubr.f32.mxu0 0.0
      %2035 = vmatmul.mubr.f32.gmra.mrb[0].mxu0 %v1755
      %v2036 = vpop.f32.mrb[0].mxu0
      %v2037 = vadd.f32 %v1716, %v2036
      %v2038 = vpop.f32.mrb[0].mxu0
      %2039 = vmatprep.mubr.f32.mxu0 0.0
      %2040 = vmatmul.mubr.f32.gmra.mrb[0].mxu0 %v1758
      %v2041 = vpop.f32.mrb[0].mxu0
      %v2042 = vadd.f32 %v1716, %v2041
      %v2043 = vpop.f32.mrb[0].mxu0
      %2044 = vmatprep.mubr.f32.mxu0 0.0
      %2045 = vmatmul.mubr.f32.gmra.mrb[0].mxu0 %v1761
      %v2046 = vpop.f32.mrb[0].mxu0
      %v2047 = vadd.f32 %v1716, %v2046
      %v2048 = vpop.f32.mrb[0].mxu0
      %2049 = vmatprep.mubr.f32.mxu0 0.0
      %2050 = vmatmul.mubr.f32.gmra.mrb[0].mxu0 %v1764
      %v2051 = vpop.f32.mrb[0].mxu0
      %v2052 = vadd.f32 %v1716, %v2051
      %v2053 = vpop.f32.mrb[0].mxu0
      %2054 = vmatprep.mubr.f32.mxu0 0.0
      %2055 = vmatmul.mubr.f32.gmra.mrb[0].mxu0 %v1767
      %v2056 = vpop.f32.mrb[0].mxu0
      %v2057 = vadd.f32 %v1716, %v2056
      %v2058 = vpop.f32.mrb[0].mxu0
      %2059 = vmatprep.mubr.f32.mxu0 0.0
      %2060 = vmatmul.mubr.f32.gmra.mrb[0].mxu0 %v1770
      %v2061 = vpop.f32.mrb[0].mxu0
      %v2062 = vadd.f32 %v1716, %v2061
      %v2063 = vpop.f32.mrb[0].mxu0
      %2064 = vmatprep.mubr.f32.mxu0 0.0
      %2065 = vmatmul.mubr.f32.gmra.mrb[0].mxu0 %v1773
      %v2066 = vpop.f32.mrb[0].mxu0
      %v2067 = vadd.f32 %v1716, %v2066
      %v2068 = vpop.f32.mrb[0].mxu0
      %2069 = vmatprep.mubr.f32.mxu0 0.0
      %2070 = vmatmul.mubr.f32.gmra.mrb[0].mxu0 %v1776
      %v2071 = vpop.f32.mrb[0].mxu0
      %v2072 = vadd.f32 %v1716, %v2071
      %v2073 = vpop.f32.mrb[0].mxu0
      %2074 = vmatprep.mubr.f32.mxu0 0.0
      %2075 = vmatmul.mubr.f32.gmra.mrb[0].mxu0 %v1779
      %v2076 = vpop.f32.mrb[0].mxu0
      %v2077 = vadd.f32 %v1716, %v2076
      %v2078 = vpop.f32.mrb[0].mxu0
      %2079 = vmatprep.mubr.f32.mxu0 0.0
      %2080 = vmatmul.mubr.f32.gmra.mrb[0].mxu0 %v1782
      %v2081 = vpop.f32.mrb[0].mxu0
      %v2082 = vadd.f32 %v1716, %v2081
      %v2083 = vpop.f32.mrb[0].mxu0
      %2084 = vmatprep.mubr.f32.mxu0 0.0
      %2085 = vmatmul.mubr.f32.gmra.mrb[0].mxu0 %v1785
      %v2086 = vpop.f32.mrb[0].mxu0
      %v2087 = vadd.f32 %v1716, %v2086
      %v2088 = vpop.f32.mrb[0].mxu0
      %2089 = vmatprep.mubr.f32.mxu0 0.0
      %2090 = vmatmul.mubr.f32.gmra.mrb[0].mxu0 %v1788
      %v2091 = vpop.f32.mrb[0].mxu0
      %v2092 = vadd.f32 %v1716, %v2091
      %v2093 = vpop.f32.mrb[0].mxu0
      %2094 = vmatprep.mubr.f32.mxu0 0.0
      %2095 = vmatmul.mubr.f32.gmra.mrb[0].mxu0 %v1791
      %v2096 = vpop.f32.mrb[0].mxu0
      %v2097 = vadd.f32 %v1716, %v2096
      %v2098 = vpop.f32.mrb[0].mxu0
      %2099 = vmatprep.mubr.f32.mxu0 0.0
      %2100 = vmatmul.mubr.f32.gmra.mrb[0].mxu0 %v1794
      %v2101 = vpop.f32.mrb[0].mxu0
      %v2102 = vadd.f32 %v1716, %v2101
      %v2103 = vpop.f32.mrb[0].mxu0
      %2104 = vmatprep.mubr.f32.mxu0 0.0
      %2105 = vmatmul.mubr.f32.gmra.mrb[0].mxu0 %v1797
      %v2106 = vpop.f32.mrb[0].mxu0
      %v2107 = vadd.f32 %v1716, %v2106
      %v2108 = vpop.f32.mrb[0].mxu0
      %2109 = vmatprep.mubr.f32.mxu0 0.0
      %2110 = vmatmul.mubr.f32.gmra.mrb[0].mxu0 %v1800
      %v2111 = vpop.f32.mrb[0].mxu0
      %v2112 = vadd.f32 %v1716, %v2111
      %v2113 = vpop.f32.mrb[0].mxu0
      %2114 = vmatprep.mubr.f32.mxu0 0.0
      %2115 = vmatmul.mubr.f32.gmra.mrb[0].mxu0 %v1803
      %v2116 = vpop.f32.mrb[0].mxu0
      %v2117 = vadd.f32 %v1716, %v2116
      %v2118 = vpop.f32.mrb[0].mxu0
      %2119 = vmatprep.mubr.f32.mxu0 0.0
      %2120 = vmatmul.mubr.f32.gmra.mrb[0].mxu0 %v1806
      %v2121 = vpop.f32.mrb[0].mxu0
      %v2122 = vadd.f32 %v1716, %v2121
      %v2123 = vpop.f32.mrb[0].mxu0
      %2124 = vmatprep.mubr.f32.mxu0 0.0
      %2125 = vmatmul.mubr.f32.gmra.mrb[0].mxu0 %v1809
      %v2126 = vpop.f32.mrb[0].mxu0
      %v2127 = vadd.f32 %v1716, %v2126
      %v2128 = vpop.f32.mrb[0].mxu0
      %2129 = vmatprep.mubr.f32.mxu0 0.0
      %2130 = vmatmul.mubr.f32.gmra.mrb[0].mxu0 %v1812
      %v2131 = vpop.f32.mrb[0].mxu0
      %v2132 = vadd.f32 %v1716, %v2131
      %v2133 = vpop.f32.mrb[0].mxu0
      %2134 = vmatprep.mubr.f32.mxu0 0.0
      %2135 = vmatmul.mubr.f32.gmra.mrb[0].mxu0 %v1815
      %v2136 = vpop.f32.mrb[0].mxu0
      %v2137 = vadd.f32 %v1716, %v2136
      %v2138 = vpop.f32.mrb[0].mxu0
      %2139 = vmatprep.mubr.f32.mxu0 0.0
      %2140 = vmatmul.mubr.f32.gmra.mrb[0].mxu0 %v1818
      %v2141 = vpop.f32.mrb[0].mxu0
      %v2142 = vadd.f32 %v1716, %v2141
      %v2143 = vpop.f32.mrb[0].mxu0
      %2144 = vmatprep.mubr.f32.mxu0 0.0
      %2145 = vmatmul.mubr.f32.gmra.mrb[0].mxu0 %v1821
      %v2146 = vpop.f32.mrb[0].mxu0
      %v2147 = vadd.f32 %v1716, %v2146
      %v2148 = vpop.f32.mrb[0].mxu0
      %2149 = vmatprep.mubr.f32.mxu0 0.0
      %2150 = vmatmul.mubr.f32.gmra.mrb[0].mxu0 %v1824
      %v2151 = vpop.f32.mrb[0].mxu0
      %v2152 = vadd.f32 %v1716, %v2151
      %v2153 = vpop.f32.mrb[0].mxu0
      %2154 = vmatprep.mubr.f32.mxu0 0.0
      %2155 = vmatmul.mubr.f32.gmra.mrb[0].mxu0 %v1827
      %v2156 = vpop.f32.mrb[0].mxu0
      %v2157 = vadd.f32 %v1716, %v2156
      %v2158 = vpop.f32.mrb[0].mxu0
      %2159 = vmatprep.mubr.f32.mxu0 0.0
      %2160 = vmatmul.mubr.f32.gmra.mrb[0].mxu0 %v1830
      %v2161 = vpop.f32.mrb[0].mxu0
      %v2162 = vadd.f32 %v1716, %v2161
      %v2163 = vpop.f32.mrb[0].mxu0
      %2164 = vmatprep.mubr.f32.mxu0 0.0
      %2165 = vmatmul.mubr.f32.gmra.mrb[0].mxu0 %v1833
      %v2166 = vpop.f32.mrb[0].mxu0
      %v2167 = vadd.f32 %v1716, %v2166
      %v2168 = vpop.f32.mrb[0].mxu0
      %2169 = vmatprep.mubr.f32.mxu0 0.0
      %2170 = vmatmul.mubr.f32.gmra.mrb[0].mxu0 %v1836
      %v2171 = vpop.f32.mrb[0].mxu0
      %v2172 = vadd.f32 %v1716, %v2171
      %v2173 = vpop.f32.mrb[0].mxu0
      %2174 = vmatprep.mubr.f32.mxu0 0.0
      %2175 = vmatmul.mubr.f32.gmra.mrb[0].mxu0 %v1839
      %v2176 = vpop.f32.mrb[0].mxu0
      %v2177 = vadd.f32 %v1716, %v2176
      %v2178 = vpop.f32.mrb[0].mxu0
      %2179 = vmatprep.mubr.f32.mxu0 0.0
      %2180 = vmatmul.mubr.f32.gmra.mrb[0].mxu0 %v1842
      %v2181 = vpop.f32.mrb[0].mxu0
      %v2182 = vadd.f32 %v1716, %v2181
      %v2183 = vpop.f32.mrb[0].mxu0
      %2184 = vmatprep.mubr.f32.mxu0 0.0
      %2185 = vmatmul.mubr.f32.gmra.mrb[0].mxu0 %v1845
      %v2186 = vpop.f32.mrb[0].mxu0
      %v2187 = vadd.f32 %v1716, %v2186
      %v2188 = vpop.f32.mrb[0].mxu0
      %2189 = vmatprep.mubr.f32.mxu0 0.0
      %2190 = vmatmul.mubr.f32.gmra.mrb[0].mxu0 %v1848
      %v2191 = vpop.f32.mrb[0].mxu0
      %v2192 = vadd.f32 %v1716, %v2191
      %v2193 = vpop.f32.mrb[0].mxu0
      %2194 = vmatprep.mubr.f32.mxu0 0.0
      %2195 = vmatmul.mubr.f32.gmra.mrb[0].mxu0 %v1851
      %v2196 = vpop.f32.mrb[0].mxu0
      %v2197 = vadd.f32 %v1716, %v2196
      %v2198 = vpop.f32.mrb[0].mxu0
      %2199 = vmatprep.mubr.f32.mxu0 0.0
      %2200 = vmatmul.mubr.f32.gmra.mrb[0].mxu0 %v1854
      %v2201 = vpop.f32.mrb[0].mxu0
      %v2202 = vadd.f32 %v1716, %v2201
      %v2203 = vpop.f32.mrb[0].mxu0
      %2204 = vmatprep.mubr.f32.mxu0 0.0
      %2205 = vmatmul.mubr.f32.gmra.mrb[0].mxu0 %v1857
      %v2206 = vpop.f32.mrb[0].mxu0
      %v2207 = vadd.f32 %v1716, %v2206
      %v2208 = vpop.f32.mrb[0].mxu0
      %2209 = vmatprep.mubr.f32.mxu0 0.0
      %2210 = vmatmul.mubr.f32.gmra.mrb[0].mxu0 %v1860
      %v2211 = vpop.f32.mrb[0].mxu0
      %v2212 = vadd.f32 %v1716, %v2211
      %v2213 = vpop.f32.mrb[0].mxu0
      %2214 = vmatprep.mubr.f32.mxu0 0.0
      %2215 = vmatmul.mubr.f32.gmra.mrb[0].mxu0 %v1863
      %v2216 = vpop.f32.mrb[0].mxu0
      %v2217 = vadd.f32 %v1716, %v2216
      %v2218 = vpop.f32.mrb[0].mxu0
      %2219 = vmatprep.mubr.f32.mxu0 0.0
      %2220 = vmatmul.mubr.f32.gmra.mrb[0].mxu0 %v1866
      %v2221 = vpop.f32.mrb[0].mxu0
      %v2222 = vadd.f32 %v1716, %v2221
      %v2223 = vpop.f32.mrb[0].mxu0
      %2224 = vmatprep.mubr.f32.mxu0 0.0
      %2225 = vmatmul.mubr.f32.gmra.mrb[0].mxu0 %v1869
      %v2226 = vpop.f32.mrb[0].mxu0
      %v2227 = vadd.f32 %v1716, %v2226
      %v2228 = vpop.f32.mrb[0].mxu0
      %2229 = vmatprep.mubr.f32.mxu0 0.0
      %2230 = vmatmul.mubr.f32.gmra.mrb[0].mxu0 %v1872
      %v2231 = vpop.f32.mrb[0].mxu0
      %v2232 = vadd.f32 %v1716, %v2231
      %v2233 = vpop.f32.mrb[0].mxu0
      %2234 = vmatprep.mubr.f32.mxu0 0.0
      %2235 = vmatmul.mubr.f32.gmra.mrb[0].mxu0 %v1875
      %v2236 = vpop.f32.mrb[0].mxu0
      %v2237 = vadd.f32 %v1716, %v2236
      %v2238 = vpop.f32.mrb[0].mxu0
      %2239 = vmatprep.mubr.f32.mxu0 0.0
      %2240 = vmatmul.mubr.f32.gmra.mrb[0].mxu0 %v1878
      %v2241 = vpop.f32.mrb[0].mxu0
      %v2242 = vadd.f32 %v1716, %v2241
      %v2243 = vpop.f32.mrb[0].mxu0
      %2244 = vmatprep.mubr.f32.mxu0 0.0
      %2245 = vmatmul.mubr.f32.gmra.mrb[0].mxu0 %v1881
      %v2246 = vpop.f32.mrb[0].mxu0
      %v2247 = vadd.f32 %v1716, %v2246
      %v2248 = vpop.f32.mrb[0].mxu0
      %2249 = vmatprep.mubr.f32.mxu0 0.0
      %2250 = vmatmul.mubr.f32.gmra.mrb[0].mxu0 %v1884
      %v2251 = vpop.f32.mrb[0].mxu0
      %v2252 = vadd.f32 %v1716, %v2251
      %v2253 = vpop.f32.mrb[0].mxu0
      %2254 = vmatprep.mubr.f32.mxu0 0.0
      %2255 = vmatmul.mubr.f32.gmra.mrb[0].mxu0 %v1887
      %v2256 = vpop.f32.mrb[0].mxu0
      %v2257 = vadd.f32 %v1716, %v2256
      %v2258 = vpop.f32.mrb[0].mxu0
      %2259 = vmatprep.mubr.f32.mxu0 0.0
      %2260 = vmatmul.mubr.f32.gmra.mrb[0].mxu0 %v1890
      %v2261 = vpop.f32.mrb[0].mxu0
      %v2262 = vadd.f32 %v1716, %v2261
      %v2263 = vpop.f32.mrb[0].mxu0
      %2264 = vmatprep.mubr.f32.mxu0 0.0
      %2265 = vmatmul.mubr.f32.gmra.mrb[0].mxu0 %v1893
      %v2266 = vpop.f32.mrb[0].mxu0
      %v2267 = vadd.f32 %v1716, %v2266
      %v2268 = vpop.f32.mrb[0].mxu0
      %2269 = vmatprep.mubr.f32.mxu0 0.0
      %2270 = vmatmul.mubr.f32.gmra.mrb[0].mxu0 %v1896
      %v2271 = vpop.f32.mrb[0].mxu0
      %v2272 = vadd.f32 %v1716, %v2271
      %v2273 = vpop.f32.mrb[0].mxu0
      %2274 = vmatprep.mubr.f32.mxu0 0.0
      %2275 = vmatmul.mubr.f32.gmra.mrb[0].mxu0 %v1899
      %v2276 = vpop.f32.mrb[0].mxu0
      %v2277 = vadd.f32 %v1716, %v2276
      %v2278 = vpop.f32.mrb[0].mxu0
      %2279 = vmatprep.mubr.f32.mxu0 0.0
      %2280 = vmatmul.mubr.f32.gmra.mrb[0].mxu0 %v1902
      %v2281 = vpop.f32.mrb[0].mxu0
      %v2282 = vadd.f32 %v1716, %v2281
      %v2283 = vpop.f32.mrb[0].mxu0
      %2284 = vmatprep.mubr.f32.mxu0 0.0
      %2285 = vmatmul.mubr.f32.gmra.mrb[0].mxu0 %v1905
      %v2286 = vpop.f32.mrb[0].mxu0
      %v2287 = vadd.f32 %v1716, %v2286
      %v2288 = vpop.f32.mrb[0].mxu0
      %2289 = vmatprep.mubr.f32.mxu0 0.0
      %2290 = vmatmul.mubr.f32.gmra.mrb[0].mxu0 %v1908
      %v2291 = vpop.f32.mrb[0].mxu0
      %v2292 = vadd.f32 %v1716, %v2291
      %v2293 = vpop.f32.mrb[0].mxu0
      %2294 = vdwg.mxu0
      %v2295 = vmax.f32 %v1977, 0.0
      %v2296 = vmax.f32 %v1982, 0.0
      %v2297 = vmax.f32 %v1987, 0.0
      %v2298 = vmax.f32 %v1992, 0.0
      %v2299 = vmax.f32 %v1997, 0.0
      %v2300 = vmax.f32 %v2002, 0.0
      %v2301 = vmax.f32 %v2007, 0.0
      %v2302 = vmax.f32 %v2012, 0.0
      %v2303 = vmax.f32 %v2017, 0.0
      %v2304 = vmax.f32 %v2022, 0.0
      %v2305 = vmax.f32 %v2027, 0.0
      %v2306 = vmax.f32 %v2032, 0.0
      %v2307 = vmax.f32 %v2037, 0.0
      %v2308 = vmax.f32 %v2042, 0.0
      %v2309 = vmax.f32 %v2047, 0.0
      %v2310 = vmax.f32 %v2052, 0.0
      %v2311 = vmax.f32 %v2057, 0.0
      %v2312 = vmax.f32 %v2062, 0.0
      %v2313 = vmax.f32 %v2067, 0.0
      %v2314 = vmax.f32 %v2072, 0.0
      %v2315 = vmax.f32 %v2077, 0.0
      %v2316 = vmax.f32 %v2082, 0.0
      %v2317 = vmax.f32 %v2087, 0.0
      %v2318 = vmax.f32 %v2092, 0.0
      %v2319 = vmax.f32 %v2097, 0.0
      %v2320 = vmax.f32 %v2102, 0.0
      %v2321 = vmax.f32 %v2107, 0.0
      %v2322 = vmax.f32 %v2112, 0.0
      %v2323 = vmax.f32 %v2117, 0.0
      %v2324 = vmax.f32 %v2122, 0.0
      %v2325 = vmax.f32 %v2127, 0.0
      %v2326 = vmax.f32 %v2132, 0.0
      %v2327 = vmax.f32 %v2137, 0.0
      %v2328 = vmax.f32 %v2142, 0.0
      %v2329 = vmax.f32 %v2147, 0.0
      %v2330 = vmax.f32 %v2152, 0.0
      %v2331 = vmax.f32 %v2157, 0.0
      %v2332 = vmax.f32 %v2162, 0.0
      %v2333 = vmax.f32 %v2167, 0.0
      %v2334 = vmax.f32 %v2172, 0.0
      %v2335 = vmax.f32 %v2177, 0.0
      %v2336 = vmax.f32 %v2182, 0.0
      %v2337 = vmax.f32 %v2187, 0.0
      %v2338 = vmax.f32 %v2192, 0.0
      %v2339 = vmax.f32 %v2197, 0.0
      %v2340 = vmax.f32 %v2202, 0.0
      %v2341 = vmax.f32 %v2207, 0.0
      %v2342 = vmax.f32 %v2212, 0.0
      %v2343 = vmax.f32 %v2217, 0.0
      %v2344 = vmax.f32 %v2222, 0.0
      %v2345 = vmax.f32 %v2227, 0.0
      %v2346 = vmax.f32 %v2232, 0.0
      %v2347 = vmax.f32 %v2237, 0.0
      %v2348 = vmax.f32 %v2242, 0.0
      %v2349 = vmax.f32 %v2247, 0.0
      %v2350 = vmax.f32 %v2252, 0.0
      %v2351 = vmax.f32 %v2257, 0.0
      %v2352 = vmax.f32 %v2262, 0.0
      %v2353 = vmax.f32 %v2267, 0.0
      %v2354 = vmax.f32 %v2272, 0.0
      %v2355 = vmax.f32 %v2277, 0.0
      %v2356 = vmax.f32 %v2282, 0.0
      %v2357 = vmax.f32 %v2287, 0.0
      %v2358 = vmax.f32 %v2292, 0.0
      %2423 = vrot.lane.b32.xlu0 %v1977, 127
      %v2424 = vpop.permute.xlu0 %2423
      %2425 = vrot.lane.b32.xlu0 %v1982, 127
      %v2426 = vpop.permute.xlu0 %2425
      %2427 = vrot.lane.b32.xlu0 %v1987, 127
      %v2428 = vpop.permute.xlu0 %2427
      %2429 = vrot.lane.b32.xlu0 %v1992, 127
      %v2430 = vpop.permute.xlu0 %2429
      %2431 = vrot.lane.b32.xlu0 %v1997, 127
      %v2432 = vpop.permute.xlu0 %2431
      %2433 = vrot.lane.b32.xlu0 %v2002, 127
      %v2434 = vpop.permute.xlu0 %2433
      %2435 = vrot.lane.b32.xlu0 %v2007, 127
      %v2436 = vpop.permute.xlu0 %2435
      %2437 = vrot.lane.b32.xlu0 %v2012, 127
      %v2438 = vpop.permute.xlu0 %2437
      %2439 = vrot.lane.b32.xlu0 %v2017, 127
      %v2440 = vpop.permute.xlu0 %2439
      %2441 = vrot.lane.b32.xlu0 %v2022, 127
      %v2442 = vpop.permute.xlu0 %2441
      %2443 = vrot.lane.b32.xlu0 %v2027, 127
      %v2444 = vpop.permute.xlu0 %2443
      %2445 = vrot.lane.b32.xlu0 %v2032, 127
      %v2446 = vpop.permute.xlu0 %2445
      %2447 = vrot.lane.b32.xlu0 %v2037, 127
      %v2448 = vpop.permute.xlu0 %2447
      %2449 = vrot.lane.b32.xlu0 %v2042, 127
      %v2450 = vpop.permute.xlu0 %2449
      %2451 = vrot.lane.b32.xlu0 %v2047, 127
      %v2452 = vpop.permute.xlu0 %2451
      %2453 = vrot.lane.b32.xlu0 %v2052, 127
      %v2454 = vpop.permute.xlu0 %2453
      %2455 = vrot.lane.b32.xlu0 %v2057, 127
      %v2456 = vpop.permute.xlu0 %2455
      %2457 = vrot.lane.b32.xlu0 %v2062, 127
      %v2458 = vpop.permute.xlu0 %2457
      %2459 = vrot.lane.b32.xlu0 %v2067, 127
      %v2460 = vpop.permute.xlu0 %2459
      %2461 = vrot.lane.b32.xlu0 %v2072, 127
      %v2462 = vpop.permute.xlu0 %2461
      %2463 = vrot.lane.b32.xlu0 %v2077, 127
      %v2464 = vpop.permute.xlu0 %2463
      %2465 = vrot.lane.b32.xlu0 %v2082, 127
      %v2466 = vpop.permute.xlu0 %2465
      %2467 = vrot.lane.b32.xlu0 %v2087, 127
      %v2468 = vpop.permute.xlu0 %2467
      %2469 = vrot.lane.b32.xlu0 %v2092, 127
      %v2470 = vpop.permute.xlu0 %2469
      %2471 = vrot.lane.b32.xlu0 %v2097, 127
      %v2472 = vpop.permute.xlu0 %2471
      %2473 = vrot.lane.b32.xlu0 %v2102, 127
      %v2474 = vpop.permute.xlu0 %2473
      %2475 = vrot.lane.b32.xlu0 %v2107, 127
      %v2476 = vpop.permute.xlu0 %2475
      %2477 = vrot.lane.b32.xlu0 %v2112, 127
      %v2478 = vpop.permute.xlu0 %2477
      %2479 = vrot.lane.b32.xlu0 %v2117, 127
      %v2480 = vpop.permute.xlu0 %2479
      %2481 = vrot.lane.b32.xlu0 %v2122, 127
      %v2482 = vpop.permute.xlu0 %2481
      %2483 = vrot.lane.b32.xlu0 %v2127, 127
      %v2484 = vpop.permute.xlu0 %2483
      %2485 = vrot.lane.b32.xlu0 %v2132, 127
      %v2486 = vpop.permute.xlu0 %2485
      %2487 = vrot.lane.b32.xlu0 %v2137, 127
      %v2488 = vpop.permute.xlu0 %2487
      %2489 = vrot.lane.b32.xlu0 %v2142, 127
      %v2490 = vpop.permute.xlu0 %2489
      %2491 = vrot.lane.b32.xlu0 %v2147, 127
      %v2492 = vpop.permute.xlu0 %2491
      %2493 = vrot.lane.b32.xlu0 %v2152, 127
      %v2494 = vpop.permute.xlu0 %2493
      %2495 = vrot.lane.b32.xlu0 %v2157, 127
      %v2496 = vpop.permute.xlu0 %2495
      %2497 = vrot.lane.b32.xlu0 %v2162, 127
      %v2498 = vpop.permute.xlu0 %2497
      %2499 = vrot.lane.b32.xlu0 %v2167, 127
      %v2500 = vpop.permute.xlu0 %2499
      %2501 = vrot.lane.b32.xlu0 %v2172, 127
      %v2502 = vpop.permute.xlu0 %2501
      %2503 = vrot.lane.b32.xlu0 %v2177, 127
      %v2504 = vpop.permute.xlu0 %2503
      %2505 = vrot.lane.b32.xlu0 %v2182, 127
      %v2506 = vpop.permute.xlu0 %2505
      %2507 = vrot.lane.b32.xlu0 %v2187, 127
      %v2508 = vpop.permute.xlu0 %2507
      %2509 = vrot.lane.b32.xlu0 %v2192, 127
      %v2510 = vpop.permute.xlu0 %2509
      %2511 = vrot.lane.b32.xlu0 %v2197, 127
      %v2512 = vpop.permute.xlu0 %2511
      %2513 = vrot.lane.b32.xlu0 %v2202, 127
      %v2514 = vpop.permute.xlu0 %2513
      %2515 = vrot.lane.b32.xlu0 %v2207, 127
      %v2516 = vpop.permute.xlu0 %2515
      %2517 = vrot.lane.b32.xlu0 %v2212, 127
      %v2518 = vpop.permute.xlu0 %2517
      %2519 = vrot.lane.b32.xlu0 %v2217, 127
      %v2520 = vpop.permute.xlu0 %2519
      %2521 = vrot.lane.b32.xlu0 %v2222, 127
      %v2522 = vpop.permute.xlu0 %2521
      %2523 = vrot.lane.b32.xlu0 %v2227, 127
      %v2524 = vpop.permute.xlu0 %2523
      %2525 = vrot.lane.b32.xlu0 %v2232, 127
      %v2526 = vpop.permute.xlu0 %2525
      %2527 = vrot.lane.b32.xlu0 %v2237, 127
      %v2528 = vpop.permute.xlu0 %2527
      %2529 = vrot.lane.b32.xlu0 %v2242, 127
      %v2530 = vpop.permute.xlu0 %2529
      %2531 = vrot.lane.b32.xlu0 %v2247, 127
      %v2532 = vpop.permute.xlu0 %2531
      %2533 = vrot.lane.b32.xlu0 %v2252, 127
      %v2534 = vpop.permute.xlu0 %2533
      %2535 = vrot.lane.b32.xlu0 %v2257, 127
      %v2536 = vpop.permute.xlu0 %2535
      %2537 = vrot.lane.b32.xlu0 %v2262, 127
      %v2538 = vpop.permute.xlu0 %2537
      %2539 = vrot.lane.b32.xlu0 %v2267, 127
      %v2540 = vpop.permute.xlu0 %2539
      %2541 = vrot.lane.b32.xlu0 %v2272, 127
      %v2542 = vpop.permute.xlu0 %2541
      %2543 = vrot.lane.b32.xlu0 %v2277, 127
      %v2544 = vpop.permute.xlu0 %2543
      %2545 = vrot.lane.b32.xlu0 %v2282, 127
      %v2546 = vpop.permute.xlu0 %2545
      %2547 = vrot.lane.b32.xlu0 %v2287, 127
      %v2548 = vpop.permute.xlu0 %2547
      %2549 = vrot.lane.b32.xlu0 %v2292, 127
      %v2550 = vpop.permute.xlu0 %2549
      %v2615 = vadd.f32 %v331, %v2424
      %v2616 = vadd.f32 %v332, %v2426
      %v2617 = vadd.f32 %v333, %v2428
      %v2618 = vadd.f32 %v334, %v2430
      %v2619 = vadd.f32 %v335, %v2432
      %v2620 = vadd.f32 %v336, %v2434
      %v2621 = vadd.f32 %v337, %v2436
      %v2622 = vadd.f32 %v338, %v2438
      %v2623 = vadd.f32 %v339, %v2440
      %v2624 = vadd.f32 %v340, %v2442
      %v2625 = vadd.f32 %v341, %v2444
      %v2626 = vadd.f32 %v342, %v2446
      %v2627 = vadd.f32 %v343, %v2448
      %v2628 = vadd.f32 %v344, %v2450
      %v2629 = vadd.f32 %v345, %v2452
      %v2630 = vadd.f32 %v346, %v2454
      %v2631 = vadd.f32 %v347, %v2456
      %v2632 = vadd.f32 %v348, %v2458
      %v2633 = vadd.f32 %v349, %v2460
      %v2634 = vadd.f32 %v350, %v2462
      %v2635 = vadd.f32 %v351, %v2464
      %v2636 = vadd.f32 %v352, %v2466
      %v2637 = vadd.f32 %v353, %v2468
      %v2638 = vadd.f32 %v354, %v2470
      %v2639 = vadd.f32 %v355, %v2472
      %v2640 = vadd.f32 %v356, %v2474
      %v2641 = vadd.f32 %v357, %v2476
      %v2642 = vadd.f32 %v358, %v2478
      %v2643 = vadd.f32 %v359, %v2480
      %v2644 = vadd.f32 %v360, %v2482
      %v2645 = vadd.f32 %v361, %v2484
      %v2646 = vadd.f32 %v362, %v2486
      %v2647 = vadd.f32 %v363, %v2488
      %v2648 = vadd.f32 %v364, %v2490
      %v2649 = vadd.f32 %v365, %v2492
      %v2650 = vadd.f32 %v366, %v2494
      %v2651 = vadd.f32 %v367, %v2496
      %v2652 = vadd.f32 %v368, %v2498
      %v2653 = vadd.f32 %v369, %v2500
      %v2654 = vadd.f32 %v370, %v2502
      %v2655 = vadd.f32 %v371, %v2504
      %v2656 = vadd.f32 %v372, %v2506
      %v2657 = vadd.f32 %v373, %v2508
      %v2658 = vadd.f32 %v374, %v2510
      %v2659 = vadd.f32 %v375, %v2512
      %v2660 = vadd.f32 %v376, %v2514
      %v2661 = vadd.f32 %v377, %v2516
      %v2662 = vadd.f32 %v378, %v2518
      %v2663 = vadd.f32 %v379, %v2520
      %v2664 = vadd.f32 %v380, %v2522
      %v2665 = vadd.f32 %v381, %v2524
      %v2666 = vadd.f32 %v382, %v2526
      %v2667 = vadd.f32 %v383, %v2528
      %v2668 = vadd.f32 %v384, %v2530
      %v2669 = vadd.f32 %v385, %v2532
      %v2670 = vadd.f32 %v386, %v2534
      %v2671 = vadd.f32 %v387, %v2536
      %v2672 = vadd.f32 %v388, %v2538
      %v2673 = vadd.f32 %v389, %v2540
      %v2674 = vadd.f32 %v390, %v2542
      %v2675 = vadd.f32 %v391, %v2544
      %v2676 = vadd.f32 %v392, %v2546
      %v2677 = vadd.f32 %v393, %v2548
      %v2678 = vadd.f32 %v394, %v2550
      %v2679 = vld [vmem:[%s323] sm:$0xff]
      %v2680 = vld [vmem:[%s323 + $0x8] sm:$0xff]
      %v2681 = vld [vmem:[%s323 + $0x10] sm:$0xff]
      %v2682 = vld [vmem:[%s323 + $0x18] sm:$0xff]
      %v2683 = vld [vmem:[%s323 + $0x20] sm:$0xff]
      %v2684 = vld [vmem:[%s323 + $0x28] sm:$0xff]
      %v2685 = vld [vmem:[%s323 + $0x30] sm:$0xff]
      %v2686 = vld [vmem:[%s323 + $0x38] sm:$0xff]
      %v2695 = vlaneseq
      %v2696 = vshrl.u32 %v2695, 7
      %v2697 = vsub.s32 0, %v2696
      %v2698 = vrot.slane %v2679, %v2697
      %2700 = vbcast.lane.b32.xlu0 %v2698, 256
      %v2701 = vpop.permute.xlu0 %2700
      %v2702 = vlaneseq
      %v2703 = vshrl.u32 %v2702, 7
      %v2704 = vsub.s32 1, %v2703
      %v2705 = vrot.slane %v2679, %v2704
      %2707 = vbcast.lane.b32.xlu0 %v2705, 256
      %v2708 = vpop.permute.xlu0 %2707
      %v2709 = vlaneseq
      %v2710 = vshrl.u32 %v2709, 7
      %v2711 = vsub.s32 2, %v2710
      %v2712 = vrot.slane %v2679, %v2711
      %2714 = vbcast.lane.b32.xlu0 %v2712, 256
      %v2715 = vpop.permute.xlu0 %2714
      %v2716 = vlaneseq
      %v2717 = vshrl.u32 %v2716, 7
      %v2718 = vsub.s32 3, %v2717
      %v2719 = vrot.slane %v2679, %v2718
      %2721 = vbcast.lane.b32.xlu0 %v2719, 256
      %v2722 = vpop.permute.xlu0 %2721
      %v2723 = vlaneseq
      %v2724 = vshrl.u32 %v2723, 7
      %v2725 = vsub.s32 4, %v2724
      %v2726 = vrot.slane %v2679, %v2725
      %2728 = vbcast.lane.b32.xlu0 %v2726, 256
      %v2729 = vpop.permute.xlu0 %2728
      %v2730 = vlaneseq
      %v2731 = vshrl.u32 %v2730, 7
      %v2732 = vsub.s32 5, %v2731
      %v2733 = vrot.slane %v2679, %v2732
      %2735 = vbcast.lane.b32.xlu0 %v2733, 256
      %v2736 = vpop.permute.xlu0 %2735
      %v2737 = vlaneseq
      %v2738 = vshrl.u32 %v2737, 7
      %v2739 = vsub.s32 6, %v2738
      %v2740 = vrot.slane %v2679, %v2739
      %2742 = vbcast.lane.b32.xlu0 %v2740, 256
      %v2743 = vpop.permute.xlu0 %2742
      %v2744 = vlaneseq
      %v2745 = vshrl.u32 %v2744, 7
      %v2746 = vsub.s32 7, %v2745
      %v2747 = vrot.slane %v2679, %v2746
      %2749 = vbcast.lane.b32.xlu0 %v2747, 256
      %v2750 = vpop.permute.xlu0 %2749
      %v2751 = vlaneseq
      %v2752 = vshrl.u32 %v2751, 7
      %v2753 = vsub.s32 0, %v2752
      %v2754 = vrot.slane %v2680, %v2753
      %2756 = vbcast.lane.b32.xlu0 %v2754, 256
      %v2757 = vpop.permute.xlu0 %2756
      %v2758 = vlaneseq
      %v2759 = vshrl.u32 %v2758, 7
      %v2760 = vsub.s32 1, %v2759
      %v2761 = vrot.slane %v2680, %v2760
      %2763 = vbcast.lane.b32.xlu0 %v2761, 256
      %v2764 = vpop.permute.xlu0 %2763
      %v2765 = vlaneseq
      %v2766 = vshrl.u32 %v2765, 7
      %v2767 = vsub.s32 2, %v2766
      %v2768 = vrot.slane %v2680, %v2767
      %2770 = vbcast.lane.b32.xlu0 %v2768, 256
      %v2771 = vpop.permute.xlu0 %2770
      %v2772 = vlaneseq
      %v2773 = vshrl.u32 %v2772, 7
      %v2774 = vsub.s32 3, %v2773
      %v2775 = vrot.slane %v2680, %v2774
      %2777 = vbcast.lane.b32.xlu0 %v2775, 256
      %v2778 = vpop.permute.xlu0 %2777
      %v2779 = vlaneseq
      %v2780 = vshrl.u32 %v2779, 7
      %v2781 = vsub.s32 4, %v2780
      %v2782 = vrot.slane %v2680, %v2781
      %2784 = vbcast.lane.b32.xlu0 %v2782, 256
      %v2785 = vpop.permute.xlu0 %2784
      %v2786 = vlaneseq
      %v2787 = vshrl.u32 %v2786, 7
      %v2788 = vsub.s32 5, %v2787
      %v2789 = vrot.slane %v2680, %v2788
      %2791 = vbcast.lane.b32.xlu0 %v2789, 256
      %v2792 = vpop.permute.xlu0 %2791
      %v2793 = vlaneseq
      %v2794 = vshrl.u32 %v2793, 7
      %v2795 = vsub.s32 6, %v2794
      %v2796 = vrot.slane %v2680, %v2795
      %2798 = vbcast.lane.b32.xlu0 %v2796, 256
      %v2799 = vpop.permute.xlu0 %2798
      %v2800 = vlaneseq
      %v2801 = vshrl.u32 %v2800, 7
      %v2802 = vsub.s32 7, %v2801
      %v2803 = vrot.slane %v2680, %v2802
      %2805 = vbcast.lane.b32.xlu0 %v2803, 256
      %v2806 = vpop.permute.xlu0 %2805
      %v2807 = vlaneseq
      %v2808 = vshrl.u32 %v2807, 7
      %v2809 = vsub.s32 0, %v2808
      %v2810 = vrot.slane %v2681, %v2809
      %2812 = vbcast.lane.b32.xlu0 %v2810, 256
      %v2813 = vpop.permute.xlu0 %2812
      %v2814 = vlaneseq
      %v2815 = vshrl.u32 %v2814, 7
      %v2816 = vsub.s32 1, %v2815
      %v2817 = vrot.slane %v2681, %v2816
      %2819 = vbcast.lane.b32.xlu0 %v2817, 256
      %v2820 = vpop.permute.xlu0 %2819
      %v2821 = vlaneseq
      %v2822 = vshrl.u32 %v2821, 7
      %v2823 = vsub.s32 2, %v2822
      %v2824 = vrot.slane %v2681, %v2823
      %2826 = vbcast.lane.b32.xlu0 %v2824, 256
      %v2827 = vpop.permute.xlu0 %2826
      %v2828 = vlaneseq
      %v2829 = vshrl.u32 %v2828, 7
      %v2830 = vsub.s32 3, %v2829
      %v2831 = vrot.slane %v2681, %v2830
      %2833 = vbcast.lane.b32.xlu0 %v2831, 256
      %v2834 = vpop.permute.xlu0 %2833
      %v2835 = vlaneseq
      %v2836 = vshrl.u32 %v2835, 7
      %v2837 = vsub.s32 4, %v2836
      %v2838 = vrot.slane %v2681, %v2837
      %2840 = vbcast.lane.b32.xlu0 %v2838, 256
      %v2841 = vpop.permute.xlu0 %2840
      %v2842 = vlaneseq
      %v2843 = vshrl.u32 %v2842, 7
      %v2844 = vsub.s32 5, %v2843
      %v2845 = vrot.slane %v2681, %v2844
      %2847 = vbcast.lane.b32.xlu0 %v2845, 256
      %v2848 = vpop.permute.xlu0 %2847
      %v2849 = vlaneseq
      %v2850 = vshrl.u32 %v2849, 7
      %v2851 = vsub.s32 6, %v2850
      %v2852 = vrot.slane %v2681, %v2851
      %2854 = vbcast.lane.b32.xlu0 %v2852, 256
      %v2855 = vpop.permute.xlu0 %2854
      %v2856 = vlaneseq
      %v2857 = vshrl.u32 %v2856, 7
      %v2858 = vsub.s32 7, %v2857
      %v2859 = vrot.slane %v2681, %v2858
      %2861 = vbcast.lane.b32.xlu0 %v2859, 256
      %v2862 = vpop.permute.xlu0 %2861
      %v2863 = vlaneseq
      %v2864 = vshrl.u32 %v2863, 7
      %v2865 = vsub.s32 0, %v2864
      %v2866 = vrot.slane %v2682, %v2865
      %2868 = vbcast.lane.b32.xlu0 %v2866, 256
      %v2869 = vpop.permute.xlu0 %2868
      %v2870 = vlaneseq
      %v2871 = vshrl.u32 %v2870, 7
      %v2872 = vsub.s32 1, %v2871
      %v2873 = vrot.slane %v2682, %v2872
      %2875 = vbcast.lane.b32.xlu0 %v2873, 256
      %v2876 = vpop.permute.xlu0 %2875
      %v2877 = vlaneseq
      %v2878 = vshrl.u32 %v2877, 7
      %v2879 = vsub.s32 2, %v2878
      %v2880 = vrot.slane %v2682, %v2879
      %2882 = vbcast.lane.b32.xlu0 %v2880, 256
      %v2883 = vpop.permute.xlu0 %2882
      %v2884 = vlaneseq
      %v2885 = vshrl.u32 %v2884, 7
      %v2886 = vsub.s32 3, %v2885
      %v2887 = vrot.slane %v2682, %v2886
      %2889 = vbcast.lane.b32.xlu0 %v2887, 256
      %v2890 = vpop.permute.xlu0 %2889
      %v2891 = vlaneseq
      %v2892 = vshrl.u32 %v2891, 7
      %v2893 = vsub.s32 4, %v2892
      %v2894 = vrot.slane %v2682, %v2893
      %2896 = vbcast.lane.b32.xlu0 %v2894, 256
      %v2897 = vpop.permute.xlu0 %2896
      %v2898 = vlaneseq
      %v2899 = vshrl.u32 %v2898, 7
      %v2900 = vsub.s32 5, %v2899
      %v2901 = vrot.slane %v2682, %v2900
      %2903 = vbcast.lane.b32.xlu0 %v2901, 256
      %v2904 = vpop.permute.xlu0 %2903
      %v2905 = vlaneseq
      %v2906 = vshrl.u32 %v2905, 7
      %v2907 = vsub.s32 6, %v2906
      %v2908 = vrot.slane %v2682, %v2907
      %2910 = vbcast.lane.b32.xlu0 %v2908, 256
      %v2911 = vpop.permute.xlu0 %2910
      %v2912 = vlaneseq
      %v2913 = vshrl.u32 %v2912, 7
      %v2914 = vsub.s32 7, %v2913
      %v2915 = vrot.slane %v2682, %v2914
      %2917 = vbcast.lane.b32.xlu0 %v2915, 256
      %v2918 = vpop.permute.xlu0 %2917
      %v2919 = vlaneseq
      %v2920 = vshrl.u32 %v2919, 7
      %v2921 = vsub.s32 0, %v2920
      %v2922 = vrot.slane %v2683, %v2921
      %2924 = vbcast.lane.b32.xlu0 %v2922, 256
      %v2925 = vpop.permute.xlu0 %2924
      %v2926 = vlaneseq
      %v2927 = vshrl.u32 %v2926, 7
      %v2928 = vsub.s32 1, %v2927
      %v2929 = vrot.slane %v2683, %v2928
      %2931 = vbcast.lane.b32.xlu0 %v2929, 256
      %v2932 = vpop.permute.xlu0 %2931
      %v2933 = vlaneseq
      %v2934 = vshrl.u32 %v2933, 7
      %v2935 = vsub.s32 2, %v2934
      %v2936 = vrot.slane %v2683, %v2935
      %2938 = vbcast.lane.b32.xlu0 %v2936, 256
      %v2939 = vpop.permute.xlu0 %2938
      %v2940 = vlaneseq
      %v2941 = vshrl.u32 %v2940, 7
      %v2942 = vsub.s32 3, %v2941
      %v2943 = vrot.slane %v2683, %v2942
      %2945 = vbcast.lane.b32.xlu0 %v2943, 256
      %v2946 = vpop.permute.xlu0 %2945
      %v2947 = vlaneseq
      %v2948 = vshrl.u32 %v2947, 7
      %v2949 = vsub.s32 4, %v2948
      %v2950 = vrot.slane %v2683, %v2949
      %2952 = vbcast.lane.b32.xlu0 %v2950, 256
      %v2953 = vpop.permute.xlu0 %2952
      %v2954 = vlaneseq
      %v2955 = vshrl.u32 %v2954, 7
      %v2956 = vsub.s32 5, %v2955
      %v2957 = vrot.slane %v2683, %v2956
      %2959 = vbcast.lane.b32.xlu0 %v2957, 256
      %v2960 = vpop.permute.xlu0 %2959
      %v2961 = vlaneseq
      %v2962 = vshrl.u32 %v2961, 7
      %v2963 = vsub.s32 6, %v2962
      %v2964 = vrot.slane %v2683, %v2963
      %2966 = vbcast.lane.b32.xlu0 %v2964, 256
      %v2967 = vpop.permute.xlu0 %2966
      %v2968 = vlaneseq
      %v2969 = vshrl.u32 %v2968, 7
      %v2970 = vsub.s32 7, %v2969
      %v2971 = vrot.slane %v2683, %v2970
      %2973 = vbcast.lane.b32.xlu0 %v2971, 256
      %v2974 = vpop.permute.xlu0 %2973
      %v2975 = vlaneseq
      %v2976 = vshrl.u32 %v2975, 7
      %v2977 = vsub.s32 0, %v2976
      %v2978 = vrot.slane %v2684, %v2977
      %2980 = vbcast.lane.b32.xlu0 %v2978, 256
      %v2981 = vpop.permute.xlu0 %2980
      %v2982 = vlaneseq
      %v2983 = vshrl.u32 %v2982, 7
      %v2984 = vsub.s32 1, %v2983
      %v2985 = vrot.slane %v2684, %v2984
      %2987 = vbcast.lane.b32.xlu0 %v2985, 256
      %v2988 = vpop.permute.xlu0 %2987
      %v2989 = vlaneseq
      %v2990 = vshrl.u32 %v2989, 7
      %v2991 = vsub.s32 2, %v2990
      %v2992 = vrot.slane %v2684, %v2991
      %2994 = vbcast.lane.b32.xlu0 %v2992, 256
      %v2995 = vpop.permute.xlu0 %2994
      %v2996 = vlaneseq
      %v2997 = vshrl.u32 %v2996, 7
      %v2998 = vsub.s32 3, %v2997
      %v2999 = vrot.slane %v2684, %v2998
      %3001 = vbcast.lane.b32.xlu0 %v2999, 256
      %v3002 = vpop.permute.xlu0 %3001
      %v3003 = vlaneseq
      %v3004 = vshrl.u32 %v3003, 7
      %v3005 = vsub.s32 4, %v3004
      %v3006 = vrot.slane %v2684, %v3005
      %3008 = vbcast.lane.b32.xlu0 %v3006, 256
      %v3009 = vpop.permute.xlu0 %3008
      %v3010 = vlaneseq
      %v3011 = vshrl.u32 %v3010, 7
      %v3012 = vsub.s32 5, %v3011
      %v3013 = vrot.slane %v2684, %v3012
      %3015 = vbcast.lane.b32.xlu0 %v3013, 256
      %v3016 = vpop.permute.xlu0 %3015
      %v3017 = vlaneseq
      %v3018 = vshrl.u32 %v3017, 7
      %v3019 = vsub.s32 6, %v3018
      %v3020 = vrot.slane %v2684, %v3019
      %3022 = vbcast.lane.b32.xlu0 %v3020, 256
      %v3023 = vpop.permute.xlu0 %3022
      %v3024 = vlaneseq
      %v3025 = vshrl.u32 %v3024, 7
      %v3026 = vsub.s32 7, %v3025
      %v3027 = vrot.slane %v2684, %v3026
      %3029 = vbcast.lane.b32.xlu0 %v3027, 256
      %v3030 = vpop.permute.xlu0 %3029
      %v3031 = vlaneseq
      %v3032 = vshrl.u32 %v3031, 7
      %v3033 = vsub.s32 0, %v3032
      %v3034 = vrot.slane %v2685, %v3033
      %3036 = vbcast.lane.b32.xlu0 %v3034, 256
      %v3037 = vpop.permute.xlu0 %3036
      %v3038 = vlaneseq
      %v3039 = vshrl.u32 %v3038, 7
      %v3040 = vsub.s32 1, %v3039
      %v3041 = vrot.slane %v2685, %v3040
      %3043 = vbcast.lane.b32.xlu0 %v3041, 256
      %v3044 = vpop.permute.xlu0 %3043
      %v3045 = vlaneseq
      %v3046 = vshrl.u32 %v3045, 7
      %v3047 = vsub.s32 2, %v3046
      %v3048 = vrot.slane %v2685, %v3047
      %3050 = vbcast.lane.b32.xlu0 %v3048, 256
      %v3051 = vpop.permute.xlu0 %3050
      %v3052 = vlaneseq
      %v3053 = vshrl.u32 %v3052, 7
      %v3054 = vsub.s32 3, %v3053
      %v3055 = vrot.slane %v2685, %v3054
      %3057 = vbcast.lane.b32.xlu0 %v3055, 256
      %v3058 = vpop.permute.xlu0 %3057
      %v3059 = vlaneseq
      %v3060 = vshrl.u32 %v3059, 7
      %v3061 = vsub.s32 4, %v3060
      %v3062 = vrot.slane %v2685, %v3061
      %3064 = vbcast.lane.b32.xlu0 %v3062, 256
      %v3065 = vpop.permute.xlu0 %3064
      %v3066 = vlaneseq
      %v3067 = vshrl.u32 %v3066, 7
      %v3068 = vsub.s32 5, %v3067
      %v3069 = vrot.slane %v2685, %v3068
      %3071 = vbcast.lane.b32.xlu0 %v3069, 256
      %v3072 = vpop.permute.xlu0 %3071
      %v3073 = vlaneseq
      %v3074 = vshrl.u32 %v3073, 7
      %v3075 = vsub.s32 6, %v3074
      %v3076 = vrot.slane %v2685, %v3075
      %3078 = vbcast.lane.b32.xlu0 %v3076, 256
      %v3079 = vpop.permute.xlu0 %3078
      %v3080 = vlaneseq
      %v3081 = vshrl.u32 %v3080, 7
      %v3082 = vsub.s32 7, %v3081
      %v3083 = vrot.slane %v2685, %v3082
      %3085 = vbcast.lane.b32.xlu0 %v3083, 256
      %v3086 = vpop.permute.xlu0 %3085
      %v3087 = vlaneseq
      %v3088 = vshrl.u32 %v3087, 7
      %v3089 = vsub.s32 0, %v3088
      %v3090 = vrot.slane %v2686, %v3089
      %3092 = vbcast.lane.b32.xlu0 %v3090, 256
      %v3093 = vpop.permute.xlu0 %3092
      %v3094 = vlaneseq
      %v3095 = vshrl.u32 %v3094, 7
      %v3096 = vsub.s32 1, %v3095
      %v3097 = vrot.slane %v2686, %v3096
      %3099 = vbcast.lane.b32.xlu0 %v3097, 256
      %v3100 = vpop.permute.xlu0 %3099
      %v3101 = vlaneseq
      %v3102 = vshrl.u32 %v3101, 7
      %v3103 = vsub.s32 2, %v3102
      %v3104 = vrot.slane %v2686, %v3103
      %3106 = vbcast.lane.b32.xlu0 %v3104, 256
      %v3107 = vpop.permute.xlu0 %3106
      %v3108 = vlaneseq
      %v3109 = vshrl.u32 %v3108, 7
      %v3110 = vsub.s32 3, %v3109
      %v3111 = vrot.slane %v2686, %v3110
      %3113 = vbcast.lane.b32.xlu0 %v3111, 256
      %v3114 = vpop.permute.xlu0 %3113
      %v3115 = vlaneseq
      %v3116 = vshrl.u32 %v3115, 7
      %v3117 = vsub.s32 4, %v3116
      %v3118 = vrot.slane %v2686, %v3117
      %3120 = vbcast.lane.b32.xlu0 %v3118, 256
      %v3121 = vpop.permute.xlu0 %3120
      %v3122 = vlaneseq
      %v3123 = vshrl.u32 %v3122, 7
      %v3124 = vsub.s32 5, %v3123
      %v3125 = vrot.slane %v2686, %v3124
      %3127 = vbcast.lane.b32.xlu0 %v3125, 256
      %v3128 = vpop.permute.xlu0 %3127
      %v3129 = vlaneseq
      %v3130 = vshrl.u32 %v3129, 7
      %v3131 = vsub.s32 6, %v3130
      %v3132 = vrot.slane %v2686, %v3131
      %3134 = vbcast.lane.b32.xlu0 %v3132, 256
      %v3135 = vpop.permute.xlu0 %3134
      %v3136 = vlaneseq
      %v3137 = vshrl.u32 %v3136, 7
      %v3138 = vsub.s32 7, %v3137
      %v3139 = vrot.slane %v2686, %v3138
      %3141 = vbcast.lane.b32.xlu0 %v3139, 256
      %v3142 = vpop.permute.xlu0 %3141
      %v3207 = vmul.f32 %v2295, %v2701
      %v3208 = vmul.f32 %v2296, %v2708
      %v3209 = vmul.f32 %v2297, %v2715
      %v3210 = vmul.f32 %v2298, %v2722
      %v3211 = vmul.f32 %v2299, %v2729
      %v3212 = vmul.f32 %v2300, %v2736
      %v3213 = vmul.f32 %v2301, %v2743
      %v3214 = vmul.f32 %v2302, %v2750
      %v3215 = vmul.f32 %v2303, %v2757
      %v3216 = vmul.f32 %v2304, %v2764
      %v3217 = vmul.f32 %v2305, %v2771
      %v3218 = vmul.f32 %v2306, %v2778
      %v3219 = vmul.f32 %v2307, %v2785
      %v3220 = vmul.f32 %v2308, %v2792
      %v3221 = vmul.f32 %v2309, %v2799
      %v3222 = vmul.f32 %v2310, %v2806
      %v3223 = vmul.f32 %v2311, %v2813
      %v3224 = vmul.f32 %v2312, %v2820
      %v3225 = vmul.f32 %v2313, %v2827
      %v3226 = vmul.f32 %v2314, %v2834
      %v3227 = vmul.f32 %v2315, %v2841
      %v3228 = vmul.f32 %v2316, %v2848
      %v3229 = vmul.f32 %v2317, %v2855
      %v3230 = vmul.f32 %v2318, %v2862
      %v3231 = vmul.f32 %v2319, %v2869
      %v3232 = vmul.f32 %v2320, %v2876
      %v3233 = vmul.f32 %v2321, %v2883
      %v3234 = vmul.f32 %v2322, %v2890
      %v3235 = vmul.f32 %v2323, %v2897
      %v3236 = vmul.f32 %v2324, %v2904
      %v3237 = vmul.f32 %v2325, %v2911
      %v3238 = vmul.f32 %v2326, %v2918
      %v3239 = vmul.f32 %v2327, %v2925
      %v3240 = vmul.f32 %v2328, %v2932
      %v3241 = vmul.f32 %v2329, %v2939
      %v3242 = vmul.f32 %v2330, %v2946
      %v3243 = vmul.f32 %v2331, %v2953
      %v3244 = vmul.f32 %v2332, %v2960
      %v3245 = vmul.f32 %v2333, %v2967
      %v3246 = vmul.f32 %v2334, %v2974
      %v3247 = vmul.f32 %v2335, %v2981
      %v3248 = vmul.f32 %v2336, %v2988
      %v3249 = vmul.f32 %v2337, %v2995
      %v3250 = vmul.f32 %v2338, %v3002
      %v3251 = vmul.f32 %v2339, %v3009
      %v3252 = vmul.f32 %v2340, %v3016
      %v3253 = vmul.f32 %v2341, %v3023
      %v3254 = vmul.f32 %v2342, %v3030
      %v3255 = vmul.f32 %v2343, %v3037
      %v3256 = vmul.f32 %v2344, %v3044
      %v3257 = vmul.f32 %v2345, %v3051
      %v3258 = vmul.f32 %v2346, %v3058
      %v3259 = vmul.f32 %v2347, %v3065
      %v3260 = vmul.f32 %v2348, %v3072
      %v3261 = vmul.f32 %v2349, %v3079
      %v3262 = vmul.f32 %v2350, %v3086
      %v3263 = vmul.f32 %v2351, %v3093
      %v3264 = vmul.f32 %v2352, %v3100
      %v3265 = vmul.f32 %v2353, %v3107
      %v3266 = vmul.f32 %v2354, %v3114
      %v3267 = vmul.f32 %v2355, %v3121
      %v3268 = vmul.f32 %v2356, %v3128
      %v3269 = vmul.f32 %v2357, %v3135
      %v3270 = vmul.f32 %v2358, %v3142
      %v3271 = vlaneseq
      %v3272 = vshrl.u32 %v3271, 7
      %v3273 = vlaneseq
      %v3274 = vand.u32 %v3273, 127
      %vm3275 = vcmp.le.s32.totalorder %v3272, %v3274
      %v3276 = vsel %vm3275, 1, 0
      %v3277 = vcvt.s32.f32 %v3276
      %3342 = vset.pattern.permute.xlu0 0
      %3343 = vperm.xlu0 %3342, %v3207
      %v3344 = vpop.permute.xlu0 %3343
      %3345 = vset.pattern.permute.xlu0 0
      %3346 = vperm.xlu0 %3345, %v3208
      %v3347 = vpop.permute.xlu0 %3346
      %3348 = vset.pattern.permute.xlu0 0
      %3349 = vperm.xlu0 %3348, %v3209
      %v3350 = vpop.permute.xlu0 %3349
      %3351 = vset.pattern.permute.xlu0 0
      %3352 = vperm.xlu0 %3351, %v3210
      %v3353 = vpop.permute.xlu0 %3352
      %3354 = vset.pattern.permute.xlu0 0
      %3355 = vperm.xlu0 %3354, %v3211
      %v3356 = vpop.permute.xlu0 %3355
      %3357 = vset.pattern.permute.xlu0 0
      %3358 = vperm.xlu0 %3357, %v3212
      %v3359 = vpop.permute.xlu0 %3358
      %3360 = vset.pattern.permute.xlu0 0
      %3361 = vperm.xlu0 %3360, %v3213
      %v3362 = vpop.permute.xlu0 %3361
      %3363 = vset.pattern.permute.xlu0 0
      %3364 = vperm.xlu0 %3363, %v3214
      %v3365 = vpop.permute.xlu0 %3364
      %3366 = vset.pattern.permute.xlu0 0
      %3367 = vperm.xlu0 %3366, %v3215
      %v3368 = vpop.permute.xlu0 %3367
      %3369 = vset.pattern.permute.xlu0 0
      %3370 = vperm.xlu0 %3369, %v3216
      %v3371 = vpop.permute.xlu0 %3370
      %3372 = vset.pattern.permute.xlu0 0
      %3373 = vperm.xlu0 %3372, %v3217
      %v3374 = vpop.permute.xlu0 %3373
      %3375 = vset.pattern.permute.xlu0 0
      %3376 = vperm.xlu0 %3375, %v3218
      %v3377 = vpop.permute.xlu0 %3376
      %3378 = vset.pattern.permute.xlu0 0
      %3379 = vperm.xlu0 %3378, %v3219
      %v3380 = vpop.permute.xlu0 %3379
      %3381 = vset.pattern.permute.xlu0 0
      %3382 = vperm.xlu0 %3381, %v3220
      %v3383 = vpop.permute.xlu0 %3382
      %3384 = vset.pattern.permute.xlu0 0
      %3385 = vperm.xlu0 %3384, %v3221
      %v3386 = vpop.permute.xlu0 %3385
      %3387 = vset.pattern.permute.xlu0 0
      %3388 = vperm.xlu0 %3387, %v3222
      %v3389 = vpop.permute.xlu0 %3388
      %3390 = vset.pattern.permute.xlu0 0
      %3391 = vperm.xlu0 %3390, %v3223
      %v3392 = vpop.permute.xlu0 %3391
      %3393 = vset.pattern.permute.xlu0 0
      %3394 = vperm.xlu0 %3393, %v3224
      %v3395 = vpop.permute.xlu0 %3394
      %3396 = vset.pattern.permute.xlu0 0
      %3397 = vperm.xlu0 %3396, %v3225
      %v3398 = vpop.permute.xlu0 %3397
      %3399 = vset.pattern.permute.xlu0 0
      %3400 = vperm.xlu0 %3399, %v3226
      %v3401 = vpop.permute.xlu0 %3400
      %3402 = vset.pattern.permute.xlu0 0
      %3403 = vperm.xlu0 %3402, %v3227
      %v3404 = vpop.permute.xlu0 %3403
      %3405 = vset.pattern.permute.xlu0 0
      %3406 = vperm.xlu0 %3405, %v3228
      %v3407 = vpop.permute.xlu0 %3406
      %3408 = vset.pattern.permute.xlu0 0
      %3409 = vperm.xlu0 %3408, %v3229
      %v3410 = vpop.permute.xlu0 %3409
      %3411 = vset.pattern.permute.xlu0 0
      %3412 = vperm.xlu0 %3411, %v3230
      %v3413 = vpop.permute.xlu0 %3412
      %3414 = vset.pattern.permute.xlu0 0
      %3415 = vperm.xlu0 %3414, %v3231
      %v3416 = vpop.permute.xlu0 %3415
      %3417 = vset.pattern.permute.xlu0 0
      %3418 = vperm.xlu0 %3417, %v3232
      %v3419 = vpop.permute.xlu0 %3418
      %3420 = vset.pattern.permute.xlu0 0
      %3421 = vperm.xlu0 %3420, %v3233
      %v3422 = vpop.permute.xlu0 %3421
      %3423 = vset.pattern.permute.xlu0 0
      %3424 = vperm.xlu0 %3423, %v3234
      %v3425 = vpop.permute.xlu0 %3424
      %3426 = vset.pattern.permute.xlu0 0
      %3427 = vperm.xlu0 %3426, %v3235
      %v3428 = vpop.permute.xlu0 %3427
      %3429 = vset.pattern.permute.xlu0 0
      %3430 = vperm.xlu0 %3429, %v3236
      %v3431 = vpop.permute.xlu0 %3430
      %3432 = vset.pattern.permute.xlu0 0
      %3433 = vperm.xlu0 %3432, %v3237
      %v3434 = vpop.permute.xlu0 %3433
      %3435 = vset.pattern.permute.xlu0 0
      %3436 = vperm.xlu0 %3435, %v3238
      %v3437 = vpop.permute.xlu0 %3436
      %3438 = vset.pattern.permute.xlu0 0
      %3439 = vperm.xlu0 %3438, %v3239
      %v3440 = vpop.permute.xlu0 %3439
      %3441 = vset.pattern.permute.xlu0 0
      %3442 = vperm.xlu0 %3441, %v3240
      %v3443 = vpop.permute.xlu0 %3442
      %3444 = vset.pattern.permute.xlu0 0
      %3445 = vperm.xlu0 %3444, %v3241
      %v3446 = vpop.permute.xlu0 %3445
      %3447 = vset.pattern.permute.xlu0 0
      %3448 = vperm.xlu0 %3447, %v3242
      %v3449 = vpop.permute.xlu0 %3448
      %3450 = vset.pattern.permute.xlu0 0
      %3451 = vperm.xlu0 %3450, %v3243
      %v3452 = vpop.permute.xlu0 %3451
      %3453 = vset.pattern.permute.xlu0 0
      %3454 = vperm.xlu0 %3453, %v3244
      %v3455 = vpop.permute.xlu0 %3454
      %3456 = vset.pattern.permute.xlu0 0
      %3457 = vperm.xlu0 %3456, %v3245
      %v3458 = vpop.permute.xlu0 %3457
      %3459 = vset.pattern.permute.xlu0 0
      %3460 = vperm.xlu0 %3459, %v3246
      %v3461 = vpop.permute.xlu0 %3460
      %3462 = vset.pattern.permute.xlu0 0
      %3463 = vperm.xlu0 %3462, %v3247
      %v3464 = vpop.permute.xlu0 %3463
      %3465 = vset.pattern.permute.xlu0 0
      %3466 = vperm.xlu0 %3465, %v3248
      %v3467 = vpop.permute.xlu0 %3466
      %3468 = vset.pattern.permute.xlu0 0
      %3469 = vperm.xlu0 %3468, %v3249
      %v3470 = vpop.permute.xlu0 %3469
      %3471 = vset.pattern.permute.xlu0 0
      %3472 = vperm.xlu0 %3471, %v3250
      %v3473 = vpop.permute.xlu0 %3472
      %3474 = vset.pattern.permute.xlu0 0
      %3475 = vperm.xlu0 %3474, %v3251
      %v3476 = vpop.permute.xlu0 %3475
      %3477 = vset.pattern.permute.xlu0 0
      %3478 = vperm.xlu0 %3477, %v3252
      %v3479 = vpop.permute.xlu0 %3478
      %3480 = vset.pattern.permute.xlu0 0
      %3481 = vperm.xlu0 %3480, %v3253
      %v3482 = vpop.permute.xlu0 %3481
      %3483 = vset.pattern.permute.xlu0 0
      %3484 = vperm.xlu0 %3483, %v3254
      %v3485 = vpop.permute.xlu0 %3484
      %3486 = vset.pattern.permute.xlu0 0
      %3487 = vperm.xlu0 %3486, %v3255
      %v3488 = vpop.permute.xlu0 %3487
      %3489 = vset.pattern.permute.xlu0 0
      %3490 = vperm.xlu0 %3489, %v3256
      %v3491 = vpop.permute.xlu0 %3490
      %3492 = vset.pattern.permute.xlu0 0
      %3493 = vperm.xlu0 %3492, %v3257
      %v3494 = vpop.permute.xlu0 %3493
      %3495 = vset.pattern.permute.xlu0 0
      %3496 = vperm.xlu0 %3495, %v3258
      %v3497 = vpop.permute.xlu0 %3496
      %3498 = vset.pattern.permute.xlu0 0
      %3499 = vperm.xlu0 %3498, %v3259
      %v3500 = vpop.permute.xlu0 %3499
      %3501 = vset.pattern.permute.xlu0 0
      %3502 = vperm.xlu0 %3501, %v3260
      %v3503 = vpop.permute.xlu0 %3502
      %3504 = vset.pattern.permute.xlu0 0
      %3505 = vperm.xlu0 %3504, %v3261
      %v3506 = vpop.permute.xlu0 %3505
      %3507 = vset.pattern.permute.xlu0 0
      %3508 = vperm.xlu0 %3507, %v3262
      %v3509 = vpop.permute.xlu0 %3508
      %3510 = vset.pattern.permute.xlu0 0
      %3511 = vperm.xlu0 %3510, %v3263
      %v3512 = vpop.permute.xlu0 %3511
      %3513 = vset.pattern.permute.xlu0 0
      %3514 = vperm.xlu0 %3513, %v3264
      %v3515 = vpop.permute.xlu0 %3514
      %3516 = vset.pattern.permute.xlu0 0
      %3517 = vperm.xlu0 %3516, %v3265
      %v3518 = vpop.permute.xlu0 %3517
      %3519 = vset.pattern.permute.xlu0 0
      %3520 = vperm.xlu0 %3519, %v3266
      %v3521 = vpop.permute.xlu0 %3520
      %3522 = vset.pattern.permute.xlu0 0
      %3523 = vperm.xlu0 %3522, %v3267
      %v3524 = vpop.permute.xlu0 %3523
      %3525 = vset.pattern.permute.xlu0 0
      %3526 = vperm.xlu0 %3525, %v3268
      %v3527 = vpop.permute.xlu0 %3526
      %3528 = vset.pattern.permute.xlu0 0
      %3529 = vperm.xlu0 %3528, %v3269
      %v3530 = vpop.permute.xlu0 %3529
      %3531 = vset.pattern.permute.xlu0 0
      %3532 = vperm.xlu0 %3531, %v3270
      %v3533 = vpop.permute.xlu0 %3532
      %v3534 = vlaneseq
      %v3535 = vshrl.u32 %v3534, 7
      %v3536 = vsub.s32 %v3274, %v3535
      %v3537 = vrot.slane %v3344, %v3536
      %v3538 = vlaneseq
      %v3539 = vshrl.u32 %v3538, 7
      %v3540 = vsub.s32 %v3274, %v3539
      %v3541 = vrot.slane %v3347, %v3540
      %v3542 = vlaneseq
      %v3543 = vshrl.u32 %v3542, 7
      %v3544 = vsub.s32 %v3274, %v3543
      %v3545 = vrot.slane %v3350, %v3544
      %v3546 = vlaneseq
      %v3547 = vshrl.u32 %v3546, 7
      %v3548 = vsub.s32 %v3274, %v3547
      %v3549 = vrot.slane %v3353, %v3548
      %v3550 = vlaneseq
      %v3551 = vshrl.u32 %v3550, 7
      %v3552 = vsub.s32 %v3274, %v3551
      %v3553 = vrot.slane %v3356, %v3552
      %v3554 = vlaneseq
      %v3555 = vshrl.u32 %v3554, 7
      %v3556 = vsub.s32 %v3274, %v3555
      %v3557 = vrot.slane %v3359, %v3556
      %v3558 = vlaneseq
      %v3559 = vshrl.u32 %v3558, 7
      %v3560 = vsub.s32 %v3274, %v3559
      %v3561 = vrot.slane %v3362, %v3560
      %v3562 = vlaneseq
      %v3563 = vshrl.u32 %v3562, 7
      %v3564 = vsub.s32 %v3274, %v3563
      %v3565 = vrot.slane %v3365, %v3564
      %v3566 = vlaneseq
      %v3567 = vshrl.u32 %v3566, 7
      %v3568 = vsub.s32 %v3274, %v3567
      %v3569 = vrot.slane %v3368, %v3568
      %v3570 = vlaneseq
      %v3571 = vshrl.u32 %v3570, 7
      %v3572 = vsub.s32 %v3274, %v3571
      %v3573 = vrot.slane %v3371, %v3572
      %v3574 = vlaneseq
      %v3575 = vshrl.u32 %v3574, 7
      %v3576 = vsub.s32 %v3274, %v3575
      %v3577 = vrot.slane %v3374, %v3576
      %v3578 = vlaneseq
      %v3579 = vshrl.u32 %v3578, 7
      %v3580 = vsub.s32 %v3274, %v3579
      %v3581 = vrot.slane %v3377, %v3580
      %v3582 = vlaneseq
      %v3583 = vshrl.u32 %v3582, 7
      %v3584 = vsub.s32 %v3274, %v3583
      %v3585 = vrot.slane %v3380, %v3584
      %v3586 = vlaneseq
      %v3587 = vshrl.u32 %v3586, 7
      %v3588 = vsub.s32 %v3274, %v3587
      %v3589 = vrot.slane %v3383, %v3588
      %v3590 = vlaneseq
      %v3591 = vshrl.u32 %v3590, 7
      %v3592 = vsub.s32 %v3274, %v3591
      %v3593 = vrot.slane %v3386, %v3592
      %v3594 = vlaneseq
      %v3595 = vshrl.u32 %v3594, 7
      %v3596 = vsub.s32 %v3274, %v3595
      %v3597 = vrot.slane %v3389, %v3596
      %v3598 = vlaneseq
      %v3599 = vshrl.u32 %v3598, 7
      %v3600 = vsub.s32 %v3274, %v3599
      %v3601 = vrot.slane %v3392, %v3600
      %v3602 = vlaneseq
      %v3603 = vshrl.u32 %v3602, 7
      %v3604 = vsub.s32 %v3274, %v3603
      %v3605 = vrot.slane %v3395, %v3604
      %v3606 = vlaneseq
      %v3607 = vshrl.u32 %v3606, 7
      %v3608 = vsub.s32 %v3274, %v3607
      %v3609 = vrot.slane %v3398, %v3608
      %v3610 = vlaneseq
      %v3611 = vshrl.u32 %v3610, 7
      %v3612 = vsub.s32 %v3274, %v3611
      %v3613 = vrot.slane %v3401, %v3612
      %v3614 = vlaneseq
      %v3615 = vshrl.u32 %v3614, 7
      %v3616 = vsub.s32 %v3274, %v3615
      %v3617 = vrot.slane %v3404, %v3616
      %v3618 = vlaneseq
      %v3619 = vshrl.u32 %v3618, 7
      %v3620 = vsub.s32 %v3274, %v3619
      %v3621 = vrot.slane %v3407, %v3620
      %v3622 = vlaneseq
      %v3623 = vshrl.u32 %v3622, 7
      %v3624 = vsub.s32 %v3274, %v3623
      %v3625 = vrot.slane %v3410, %v3624
      %v3626 = vlaneseq
      %v3627 = vshrl.u32 %v3626, 7
      %v3628 = vsub.s32 %v3274, %v3627
      %v3629 = vrot.slane %v3413, %v3628
      %v3630 = vlaneseq
      %v3631 = vshrl.u32 %v3630, 7
      %v3632 = vsub.s32 %v3274, %v3631
      %v3633 = vrot.slane %v3416, %v3632
      %v3634 = vlaneseq
      %v3635 = vshrl.u32 %v3634, 7
      %v3636 = vsub.s32 %v3274, %v3635
      %v3637 = vrot.slane %v3419, %v3636
      %v3638 = vlaneseq
      %v3639 = vshrl.u32 %v3638, 7
      %v3640 = vsub.s32 %v3274, %v3639
      %v3641 = vrot.slane %v3422, %v3640
      %v3642 = vlaneseq
      %v3643 = vshrl.u32 %v3642, 7
      %v3644 = vsub.s32 %v3274, %v3643
      %v3645 = vrot.slane %v3425, %v3644
      %v3646 = vlaneseq
      %v3647 = vshrl.u32 %v3646, 7
      %v3648 = vsub.s32 %v3274, %v3647
      %v3649 = vrot.slane %v3428, %v3648
      %v3650 = vlaneseq
      %v3651 = vshrl.u32 %v3650, 7
      %v3652 = vsub.s32 %v3274, %v3651
      %v3653 = vrot.slane %v3431, %v3652
      %v3654 = vlaneseq
      %v3655 = vshrl.u32 %v3654, 7
      %v3656 = vsub.s32 %v3274, %v3655
      %v3657 = vrot.slane %v3434, %v3656
      %v3658 = vlaneseq
      %v3659 = vshrl.u32 %v3658, 7
      %v3660 = vsub.s32 %v3274, %v3659
      %v3661 = vrot.slane %v3437, %v3660
      %v3662 = vlaneseq
      %v3663 = vshrl.u32 %v3662, 7
      %v3664 = vsub.s32 %v3274, %v3663
      %v3665 = vrot.slane %v3440, %v3664
      %v3666 = vlaneseq
      %v3667 = vshrl.u32 %v3666, 7
      %v3668 = vsub.s32 %v3274, %v3667
      %v3669 = vrot.slane %v3443, %v3668
      %v3670 = vlaneseq
      %v3671 = vshrl.u32 %v3670, 7
      %v3672 = vsub.s32 %v3274, %v3671
      %v3673 = vrot.slane %v3446, %v3672
      %v3674 = vlaneseq
      %v3675 = vshrl.u32 %v3674, 7
      %v3676 = vsub.s32 %v3274, %v3675
      %v3677 = vrot.slane %v3449, %v3676
      %v3678 = vlaneseq
      %v3679 = vshrl.u32 %v3678, 7
      %v3680 = vsub.s32 %v3274, %v3679
      %v3681 = vrot.slane %v3452, %v3680
      %v3682 = vlaneseq
      %v3683 = vshrl.u32 %v3682, 7
      %v3684 = vsub.s32 %v3274, %v3683
      %v3685 = vrot.slane %v3455, %v3684
      %v3686 = vlaneseq
      %v3687 = vshrl.u32 %v3686, 7
      %v3688 = vsub.s32 %v3274, %v3687
      %v3689 = vrot.slane %v3458, %v3688
      %v3690 = vlaneseq
      %v3691 = vshrl.u32 %v3690, 7
      %v3692 = vsub.s32 %v3274, %v3691
      %v3693 = vrot.slane %v3461, %v3692
      %v3694 = vlaneseq
      %v3695 = vshrl.u32 %v3694, 7
      %v3696 = vsub.s32 %v3274, %v3695
      %v3697 = vrot.slane %v3464, %v3696
      %v3698 = vlaneseq
      %v3699 = vshrl.u32 %v3698, 7
      %v3700 = vsub.s32 %v3274, %v3699
      %v3701 = vrot.slane %v3467, %v3700
      %v3702 = vlaneseq
      %v3703 = vshrl.u32 %v3702, 7
      %v3704 = vsub.s32 %v3274, %v3703
      %v3705 = vrot.slane %v3470, %v3704
      %v3706 = vlaneseq
      %v3707 = vshrl.u32 %v3706, 7
      %v3708 = vsub.s32 %v3274, %v3707
      %v3709 = vrot.slane %v3473, %v3708
      %v3710 = vlaneseq
      %v3711 = vshrl.u32 %v3710, 7
      %v3712 = vsub.s32 %v3274, %v3711
      %v3713 = vrot.slane %v3476, %v3712
      %v3714 = vlaneseq
      %v3715 = vshrl.u32 %v3714, 7
      %v3716 = vsub.s32 %v3274, %v3715
      %v3717 = vrot.slane %v3479, %v3716
      %v3718 = vlaneseq
      %v3719 = vshrl.u32 %v3718, 7
      %v3720 = vsub.s32 %v3274, %v3719
      %v3721 = vrot.slane %v3482, %v3720
      %v3722 = vlaneseq
      %v3723 = vshrl.u32 %v3722, 7
      %v3724 = vsub.s32 %v3274, %v3723
      %v3725 = vrot.slane %v3485, %v3724
      %v3726 = vlaneseq
      %v3727 = vshrl.u32 %v3726, 7
      %v3728 = vsub.s32 %v3274, %v3727
      %v3729 = vrot.slane %v3488, %v3728
      %v3730 = vlaneseq
      %v3731 = vshrl.u32 %v3730, 7
      %v3732 = vsub.s32 %v3274, %v3731
      %v3733 = vrot.slane %v3491, %v3732
      %v3734 = vlaneseq
      %v3735 = vshrl.u32 %v3734, 7
      %v3736 = vsub.s32 %v3274, %v3735
      %v3737 = vrot.slane %v3494, %v3736
      %v3738 = vlaneseq
      %v3739 = vshrl.u32 %v3738, 7
      %v3740 = vsub.s32 %v3274, %v3739
      %v3741 = vrot.slane %v3497, %v3740
      %v3742 = vlaneseq
      %v3743 = vshrl.u32 %v3742, 7
      %v3744 = vsub.s32 %v3274, %v3743
      %v3745 = vrot.slane %v3500, %v3744
      %v3746 = vlaneseq
      %v3747 = vshrl.u32 %v3746, 7
      %v3748 = vsub.s32 %v3274, %v3747
      %v3749 = vrot.slane %v3503, %v3748
      %v3750 = vlaneseq
      %v3751 = vshrl.u32 %v3750, 7
      %v3752 = vsub.s32 %v3274, %v3751
      %v3753 = vrot.slane %v3506, %v3752
      %v3754 = vlaneseq
      %v3755 = vshrl.u32 %v3754, 7
      %v3756 = vsub.s32 %v3274, %v3755
      %v3757 = vrot.slane %v3509, %v3756
      %v3758 = vlaneseq
      %v3759 = vshrl.u32 %v3758, 7
      %v3760 = vsub.s32 %v3274, %v3759
      %v3761 = vrot.slane %v3512, %v3760
      %v3762 = vlaneseq
      %v3763 = vshrl.u32 %v3762, 7
      %v3764 = vsub.s32 %v3274, %v3763
      %v3765 = vrot.slane %v3515, %v3764
      %v3766 = vlaneseq
      %v3767 = vshrl.u32 %v3766, 7
      %v3768 = vsub.s32 %v3274, %v3767
      %v3769 = vrot.slane %v3518, %v3768
      %v3770 = vlaneseq
      %v3771 = vshrl.u32 %v3770, 7
      %v3772 = vsub.s32 %v3274, %v3771
      %v3773 = vrot.slane %v3521, %v3772
      %v3774 = vlaneseq
      %v3775 = vshrl.u32 %v3774, 7
      %v3776 = vsub.s32 %v3274, %v3775
      %v3777 = vrot.slane %v3524, %v3776
      %v3778 = vlaneseq
      %v3779 = vshrl.u32 %v3778, 7
      %v3780 = vsub.s32 %v3274, %v3779
      %v3781 = vrot.slane %v3527, %v3780
      %v3782 = vlaneseq
      %v3783 = vshrl.u32 %v3782, 7
      %v3784 = vsub.s32 %v3274, %v3783
      %v3785 = vrot.slane %v3530, %v3784
      %v3786 = vlaneseq
      %v3787 = vshrl.u32 %v3786, 7
      %v3788 = vsub.s32 %v3274, %v3787
      %v3789 = vrot.slane %v3533, %v3788
      %vm3790 = vcmask 1041409
      %v3791 = vsel %vm3790, %v3541, %v3537
      %vm3792 = vcmask 1042434
      %v3793 = vsel %vm3792, %v3545, %v3791
      %vm3794 = vcmask 1043459
      %v3795 = vsel %vm3794, %v3549, %v3793
      %vm3796 = vcmask 1044484
      %v3797 = vsel %vm3796, %v3553, %v3795
      %vm3798 = vcmask 1045509
      %v3799 = vsel %vm3798, %v3557, %v3797
      %vm3800 = vcmask 1046534
      %v3801 = vsel %vm3800, %v3561, %v3799
      %vm3802 = vcmask 1047559
      %v3803 = vsel %vm3802, %v3565, %v3801
      %v3804 = vsel %vm3790, %v3573, %v3569
      %v3805 = vsel %vm3792, %v3577, %v3804
      %v3806 = vsel %vm3794, %v3581, %v3805
      %v3807 = vsel %vm3796, %v3585, %v3806
      %v3808 = vsel %vm3798, %v3589, %v3807
      %v3809 = vsel %vm3800, %v3593, %v3808
      %v3810 = vsel %vm3802, %v3597, %v3809
      %v3811 = vsel %vm3790, %v3605, %v3601
      %v3812 = vsel %vm3792, %v3609, %v3811
      %v3813 = vsel %vm3794, %v3613, %v3812
      %v3814 = vsel %vm3796, %v3617, %v3813
      %v3815 = vsel %vm3798, %v3621, %v3814
      %v3816 = vsel %vm3800, %v3625, %v3815
      %v3817 = vsel %vm3802, %v3629, %v3816
      %v3818 = vsel %vm3790, %v3637, %v3633
      %v3819 = vsel %vm3792, %v3641, %v3818
      %v3820 = vsel %vm3794, %v3645, %v3819
      %v3821 = vsel %vm3796, %v3649, %v3820
      %v3822 = vsel %vm3798, %v3653, %v3821
      %v3823 = vsel %vm3800, %v3657, %v3822
      %v3824 = vsel %vm3802, %v3661, %v3823
      %v3825 = vsel %vm3790, %v3669, %v3665
      %v3826 = vsel %vm3792, %v3673, %v3825
      %v3827 = vsel %vm3794, %v3677, %v3826
      %v3828 = vsel %vm3796, %v3681, %v3827
      %v3829 = vsel %vm3798, %v3685, %v3828
      %v3830 = vsel %vm3800, %v3689, %v3829
      %v3831 = vsel %vm3802, %v3693, %v3830
      %v3832 = vsel %vm3790, %v3701, %v3697
      %v3833 = vsel %vm3792, %v3705, %v3832
      %v3834 = vsel %vm3794, %v3709, %v3833
      %v3835 = vsel %vm3796, %v3713, %v3834
      %v3836 = vsel %vm3798, %v3717, %v3835
      %v3837 = vsel %vm3800, %v3721, %v3836
      %v3838 = vsel %vm3802, %v3725, %v3837
      %v3839 = vsel %vm3790, %v3733, %v3729
      %v3840 = vsel %vm3792, %v3737, %v3839
      %v3841 = vsel %vm3794, %v3741, %v3840
      %v3842 = vsel %vm3796, %v3745, %v3841
      %v3843 = vsel %vm3798, %v3749, %v3842
      %v3844 = vsel %vm3800, %v3753, %v3843
      %v3845 = vsel %vm3802, %v3757, %v3844
      %v3846 = vsel %vm3790, %v3765, %v3761
      %v3847 = vsel %vm3792, %v3769, %v3846
      %v3848 = vsel %vm3794, %v3773, %v3847
      %v3849 = vsel %vm3796, %v3777, %v3848
      %v3850 = vsel %vm3798, %v3781, %v3849
      %v3851 = vsel %vm3800, %v3785, %v3850
      %v3852 = vsel %vm3802, %v3789, %v3851
      %vm3853 = vcmask 64512
      %v3854 = vsel %vm3853, %v3803, 0
      %v3856 = vsel %vm3853, %v3810, 0
      %v3858 = vsel %vm3853, %v3817, 0
      %v3860 = vsel %vm3853, %v3824, 0
      %v3862 = vsel %vm3853, %v3831, 0
      %v3864 = vsel %vm3853, %v3838, 0
      %v3866 = vsel %vm3853, %v3845, 0
      %v3868 = vsel %vm3853, %v3852, 0
      %3870 = vmatprep.subr.mxu0 0.0
      %3871 = vmatpush1.msra.mxu0 %v3277
      %3872 = vmatprep.subr.mxu0 0.0
      %3873 = vmatpush1.msra.mxu0 0.0
      %3874 = vmatprep.subr.mxu0 0.0
      %3875 = vmatpush1.msra.mxu0 0.0
      %3876 = vmatprep.subr.mxu0 0.0
      %3877 = vmatpush1.msra.mxu0 0.0
      %3878 = vmatprep.subr.mxu0 0.0
      %3879 = vmatpush1.msra.mxu0 0.0
      %3880 = vmatprep.subr.mxu0 0.0
      %3881 = vmatpush1.msra.mxu0 0.0
      %3882 = vmatprep.subr.mxu0 0.0
      %3883 = vmatpush1.msra.mxu0 0.0
      %3884 = vmatprep.subr.mxu0 0.0
      %3885 = vmatpush1.msra.mxu0 0.0
      %3886 = vmatprep.subr.mxu0 0.0
      %3887 = vmatpush1.msra.mxu0 0.0
      %3888 = vmatprep.subr.mxu0 0.0
      %3889 = vmatpush1.msra.mxu0 0.0
      %3890 = vmatprep.subr.mxu0 0.0
      %3891 = vmatpush1.msra.mxu0 0.0
      %3892 = vmatprep.subr.mxu0 0.0
      %3893 = vmatpush1.msra.mxu0 0.0
      %3894 = vmatprep.subr.mxu0 0.0
      %3895 = vmatpush1.msra.mxu0 0.0
      %3896 = vmatprep.subr.mxu0 0.0
      %3897 = vmatpush1.msra.mxu0 0.0
      %3898 = vmatprep.subr.mxu0 0.0
      %3899 = vmatpush1.msra.mxu0 0.0
      %3900 = vmatprep.subr.mxu0 0.0
      %3901 = vmatpush1.msra.mxu0 0.0
      %3902 = vmatprep.subr.mxu0 0.0
      %3903 = vmatpush1.msra.mxu0 0.0
      %3904 = vmatprep.subr.mxu0 0.0
      %3905 = vmatpush1.msra.mxu0 0.0
      %3906 = vmatprep.subr.mxu0 0.0
      %3907 = vmatpush1.msra.mxu0 0.0
      %3908 = vmatprep.subr.mxu0 0.0
      %3909 = vmatpush1.msra.mxu0 0.0
      %3910 = vmatprep.subr.mxu0 0.0
      %3911 = vmatpush1.msra.mxu0 0.0
      %3912 = vmatprep.subr.mxu0 0.0
      %3913 = vmatpush1.msra.mxu0 0.0
      %3914 = vmatprep.subr.mxu0 0.0
      %3915 = vmatpush1.msra.mxu0 0.0
      %3916 = vmatprep.subr.mxu0 0.0
      %3917 = vmatpush1.msra.mxu0 0.0
      %3918 = vmatprep.subr.mxu0 0.0
      %3919 = vmatpush1.msra.mxu0 0.0
      %3920 = vmatprep.subr.mxu0 0.0
      %3921 = vmatpush1.msra.mxu0 0.0
      %3922 = vmatprep.subr.mxu0 0.0
      %3923 = vmatpush1.msra.mxu0 0.0
      %3924 = vmatprep.subr.mxu0 0.0
      %3925 = vmatpush1.msra.mxu0 0.0
      %3926 = vmatprep.subr.mxu0 0.0
      %3927 = vmatpush1.msra.mxu0 0.0
      %3928 = vmatprep.subr.mxu0 0.0
      %3929 = vmatpush1.msra.mxu0 0.0
      %3930 = vmatprep.subr.mxu0 0.0
      %3931 = vmatpush1.msra.mxu0 0.0
      %3932 = vmatprep.subr.mxu0 0.0
      %3933 = vmatpush1.msra.mxu0 0.0
      %3934 = vmatprep.mubr.f32.mxu0 0.0
      %3935 = vmatmul.mubr.f32.gmra.mrb[0].mxu0 %v3854
      %v3936 = vpop.f32.mrb[0].mxu0
      %v3937 = vadd.f32 0.0, %v3936
      %v3938 = vpop.f32.mrb[0].mxu0
      %3939 = vmatprep.mubr.f32.mxu0 0.0
      %3940 = vmatmul.mubr.f32.gmra.mrb[0].mxu0 %v3856
      %v3941 = vpop.f32.mrb[0].mxu0
      %v3942 = vadd.f32 0.0, %v3941
      %v3943 = vpop.f32.mrb[0].mxu0
      %3944 = vmatprep.mubr.f32.mxu0 0.0
      %3945 = vmatmul.mubr.f32.gmra.mrb[0].mxu0 %v3858
      %v3946 = vpop.f32.mrb[0].mxu0
      %v3947 = vadd.f32 0.0, %v3946
      %v3948 = vpop.f32.mrb[0].mxu0
      %3949 = vmatprep.mubr.f32.mxu0 0.0
      %3950 = vmatmul.mubr.f32.gmra.mrb[0].mxu0 %v3860
      %v3951 = vpop.f32.mrb[0].mxu0
      %v3952 = vadd.f32 0.0, %v3951
      %v3953 = vpop.f32.mrb[0].mxu0
      %3954 = vmatprep.mubr.f32.mxu0 0.0
      %3955 = vmatmul.mubr.f32.gmra.mrb[0].mxu0 %v3862
      %v3956 = vpop.f32.mrb[0].mxu0
      %v3957 = vadd.f32 0.0, %v3956
      %v3958 = vpop.f32.mrb[0].mxu0
      %3959 = vmatprep.mubr.f32.mxu0 0.0
      %3960 = vmatmul.mubr.f32.gmra.mrb[0].mxu0 %v3864
      %v3961 = vpop.f32.mrb[0].mxu0
      %v3962 = vadd.f32 0.0, %v3961
      %v3963 = vpop.f32.mrb[0].mxu0
      %3964 = vmatprep.mubr.f32.mxu0 0.0
      %3965 = vmatmul.mubr.f32.gmra.mrb[0].mxu0 %v3866
      %v3966 = vpop.f32.mrb[0].mxu0
      %v3967 = vadd.f32 0.0, %v3966
      %v3968 = vpop.f32.mrb[0].mxu0
      %3969 = vmatprep.mubr.f32.mxu0 0.0
      %3970 = vmatmul.mubr.f32.gmra.mrb[0].mxu0 %v3868
      %v3971 = vpop.f32.mrb[0].mxu0
      %v3972 = vadd.f32 0.0, %v3971
      %v3973 = vpop.f32.mrb[0].mxu0
      %3974 = vdwg.mxu0
      %v3975 = vsub.f32 0.0, %v3207
      %v3976 = vsub.f32 0.0, %v3208
      %v3977 = vsub.f32 0.0, %v3209
      %v3978 = vsub.f32 0.0, %v3210
      %v3979 = vsub.f32 0.0, %v3211
      %v3980 = vsub.f32 0.0, %v3212
      %v3981 = vsub.f32 0.0, %v3213
      %v3982 = vsub.f32 0.0, %v3214
      %v3983 = vsub.f32 0.0, %v3215
      %v3984 = vsub.f32 0.0, %v3216
      %v3985 = vsub.f32 0.0, %v3217
      %v3986 = vsub.f32 0.0, %v3218
      %v3987 = vsub.f32 0.0, %v3219
      %v3988 = vsub.f32 0.0, %v3220
      %v3989 = vsub.f32 0.0, %v3221
      %v3990 = vsub.f32 0.0, %v3222
      %v3991 = vsub.f32 0.0, %v3223
      %v3992 = vsub.f32 0.0, %v3224
      %v3993 = vsub.f32 0.0, %v3225
      %v3994 = vsub.f32 0.0, %v3226
      %v3995 = vsub.f32 0.0, %v3227
      %v3996 = vsub.f32 0.0, %v3228
      %v3997 = vsub.f32 0.0, %v3229
      %v3998 = vsub.f32 0.0, %v3230
      %v3999 = vsub.f32 0.0, %v3231
      %v4000 = vsub.f32 0.0, %v3232
      %v4001 = vsub.f32 0.0, %v3233
      %v4002 = vsub.f32 0.0, %v3234
      %v4003 = vsub.f32 0.0, %v3235
      %v4004 = vsub.f32 0.0, %v3236
      %v4005 = vsub.f32 0.0, %v3237
      %v4006 = vsub.f32 0.0, %v3238
      %v4007 = vsub.f32 0.0, %v3239
      %v4008 = vsub.f32 0.0, %v3240
      %v4009 = vsub.f32 0.0, %v3241
      %v4010 = vsub.f32 0.0, %v3242
      %v4011 = vsub.f32 0.0, %v3243
      %v4012 = vsub.f32 0.0, %v3244
      %v4013 = vsub.f32 0.0, %v3245
      %v4014 = vsub.f32 0.0, %v3246
      %v4015 = vsub.f32 0.0, %v3247
      %v4016 = vsub.f32 0.0, %v3248
      %v4017 = vsub.f32 0.0, %v3249
      %v4018 = vsub.f32 0.0, %v3250
      %v4019 = vsub.f32 0.0, %v3251
      %v4020 = vsub.f32 0.0, %v3252
      %v4021 = vsub.f32 0.0, %v3253
      %v4022 = vsub.f32 0.0, %v3254
      %v4023 = vsub.f32 0.0, %v3255
      %v4024 = vsub.f32 0.0, %v3256
      %v4025 = vsub.f32 0.0, %v3257
      %v4026 = vsub.f32 0.0, %v3258
      %v4027 = vsub.f32 0.0, %v3259
      %v4028 = vsub.f32 0.0, %v3260
      %v4029 = vsub.f32 0.0, %v3261
      %v4030 = vsub.f32 0.0, %v3262
      %v4031 = vsub.f32 0.0, %v3263
      %v4032 = vsub.f32 0.0, %v3264
      %v4033 = vsub.f32 0.0, %v3265
      %v4034 = vsub.f32 0.0, %v3266
      %v4035 = vsub.f32 0.0, %v3267
      %v4036 = vsub.f32 0.0, %v3268
      %v4037 = vsub.f32 0.0, %v3269
      %v4038 = vsub.f32 0.0, %v3270
      %v4039 = vmul.f32 %v3975, 1.442695
      %v4040 = vpow.pop %v4039
      %v4041 = vmul.f32 %v3976, 1.442695
      %v4042 = vpow.pop %v4041
      %v4043 = vmul.f32 %v3977, 1.442695
      %v4044 = vpow.pop %v4043
      %v4045 = vmul.f32 %v3978, 1.442695
      %v4046 = vpow.pop %v4045
      %v4047 = vmul.f32 %v3979, 1.442695
      %v4048 = vpow.pop %v4047
      %v4049 = vmul.f32 %v3980, 1.442695
      %v4050 = vpow.pop %v4049
      %v4051 = vmul.f32 %v3981, 1.442695
      %v4052 = vpow.pop %v4051
      %v4053 = vmul.f32 %v3982, 1.442695
      %v4054 = vpow.pop %v4053
      %v4055 = vmul.f32 %v3983, 1.442695
      %v4056 = vpow.pop %v4055
      %v4057 = vmul.f32 %v3984, 1.442695
      %v4058 = vpow.pop %v4057
      %v4059 = vmul.f32 %v3985, 1.442695
      %v4060 = vpow.pop %v4059
      %v4061 = vmul.f32 %v3986, 1.442695
      %v4062 = vpow.pop %v4061
      %v4063 = vmul.f32 %v3987, 1.442695
      %v4064 = vpow.pop %v4063
      %v4065 = vmul.f32 %v3988, 1.442695
      %v4066 = vpow.pop %v4065
      %v4067 = vmul.f32 %v3989, 1.442695
      %v4068 = vpow.pop %v4067
      %v4069 = vmul.f32 %v3990, 1.442695
      %v4070 = vpow.pop %v4069
      %v4071 = vmul.f32 %v3991, 1.442695
      %v4072 = vpow.pop %v4071
      %v4073 = vmul.f32 %v3992, 1.442695
      %v4074 = vpow.pop %v4073
      %v4075 = vmul.f32 %v3993, 1.442695
      %v4076 = vpow.pop %v4075
      %v4077 = vmul.f32 %v3994, 1.442695
      %v4078 = vpow.pop %v4077
      %v4079 = vmul.f32 %v3995, 1.442695
      %v4080 = vpow.pop %v4079
      %v4081 = vmul.f32 %v3996, 1.442695
      %v4082 = vpow.pop %v4081
      %v4083 = vmul.f32 %v3997, 1.442695
      %v4084 = vpow.pop %v4083
      %v4085 = vmul.f32 %v3998, 1.442695
      %v4086 = vpow.pop %v4085
      %v4087 = vmul.f32 %v3999, 1.442695
      %v4088 = vpow.pop %v4087
      %v4089 = vmul.f32 %v4000, 1.442695
      %v4090 = vpow.pop %v4089
      %v4091 = vmul.f32 %v4001, 1.442695
      %v4092 = vpow.pop %v4091
      %v4093 = vmul.f32 %v4002, 1.442695
      %v4094 = vpow.pop %v4093
      %v4095 = vmul.f32 %v4003, 1.442695
      %v4096 = vpow.pop %v4095
      %v4097 = vmul.f32 %v4004, 1.442695
      %v4098 = vpow.pop %v4097
      %v4099 = vmul.f32 %v4005, 1.442695
      %v4100 = vpow.pop %v4099
      %v4101 = vmul.f32 %v4006, 1.442695
      %v4102 = vpow.pop %v4101
      %v4103 = vmul.f32 %v4007, 1.442695
      %v4104 = vpow.pop %v4103
      %v4105 = vmul.f32 %v4008, 1.442695
      %v4106 = vpow.pop %v4105
      %v4107 = vmul.f32 %v4009, 1.442695
      %v4108 = vpow.pop %v4107
      %v4109 = vmul.f32 %v4010, 1.442695
      %v4110 = vpow.pop %v4109
      %v4111 = vmul.f32 %v4011, 1.442695
      %v4112 = vpow.pop %v4111
      %v4113 = vmul.f32 %v4012, 1.442695
      %v4114 = vpow.pop %v4113
      %v4115 = vmul.f32 %v4013, 1.442695
      %v4116 = vpow.pop %v4115
      %v4117 = vmul.f32 %v4014, 1.442695
      %v4118 = vpow.pop %v4117
      %v4119 = vmul.f32 %v4015, 1.442695
      %v4120 = vpow.pop %v4119
      %v4121 = vmul.f32 %v4016, 1.442695
      %v4122 = vpow.pop %v4121
      %v4123 = vmul.f32 %v4017, 1.442695
      %v4124 = vpow.pop %v4123
      %v4125 = vmul.f32 %v4018, 1.442695
      %v4126 = vpow.pop %v4125
      %v4127 = vmul.f32 %v4019, 1.442695
      %v4128 = vpow.pop %v4127
      %v4129 = vmul.f32 %v4020, 1.442695
      %v4130 = vpow.pop %v4129
      %v4131 = vmul.f32 %v4021, 1.442695
      %v4132 = vpow.pop %v4131
      %v4133 = vmul.f32 %v4022, 1.442695
      %v4134 = vpow.pop %v4133
      %v4135 = vmul.f32 %v4023, 1.442695
      %v4136 = vpow.pop %v4135
      %v4137 = vmul.f32 %v4024, 1.442695
      %v4138 = vpow.pop %v4137
      %v4139 = vmul.f32 %v4025, 1.442695
      %v4140 = vpow.pop %v4139
      %v4141 = vmul.f32 %v4026, 1.442695
      %v4142 = vpow.pop %v4141
      %v4143 = vmul.f32 %v4027, 1.442695
      %v4144 = vpow.pop %v4143
      %v4145 = vmul.f32 %v4028, 1.442695
      %v4146 = vpow.pop %v4145
      %v4147 = vmul.f32 %v4029, 1.442695
      %v4148 = vpow.pop %v4147
      %v4149 = vmul.f32 %v4030, 1.442695
      %v4150 = vpow.pop %v4149
      %v4151 = vmul.f32 %v4031, 1.442695
      %v4152 = vpow.pop %v4151
      %v4153 = vmul.f32 %v4032, 1.442695
      %v4154 = vpow.pop %v4153
      %v4155 = vmul.f32 %v4033, 1.442695
      %v4156 = vpow.pop %v4155
      %v4157 = vmul.f32 %v4034, 1.442695
      %v4158 = vpow.pop %v4157
      %v4159 = vmul.f32 %v4035, 1.442695
      %v4160 = vpow.pop %v4159
      %v4161 = vmul.f32 %v4036, 1.442695
      %v4162 = vpow.pop %v4161
      %v4163 = vmul.f32 %v4037, 1.442695
      %v4164 = vpow.pop %v4163
      %v4165 = vmul.f32 %v4038, 1.442695
      %v4166 = vpow.pop %v4165
      %v4167 = vsub.f32 1.0, %v4040
      %v4168 = vsub.f32 1.0, %v4042
      %v4169 = vsub.f32 1.0, %v4044
      %v4170 = vsub.f32 1.0, %v4046
      %v4171 = vsub.f32 1.0, %v4048
      %v4172 = vsub.f32 1.0, %v4050
      %v4173 = vsub.f32 1.0, %v4052
      %v4174 = vsub.f32 1.0, %v4054
      %v4175 = vsub.f32 1.0, %v4056
      %v4176 = vsub.f32 1.0, %v4058
      %v4177 = vsub.f32 1.0, %v4060
      %v4178 = vsub.f32 1.0, %v4062
      %v4179 = vsub.f32 1.0, %v4064
      %v4180 = vsub.f32 1.0, %v4066
      %v4181 = vsub.f32 1.0, %v4068
      %v4182 = vsub.f32 1.0, %v4070
      %v4183 = vsub.f32 1.0, %v4072
      %v4184 = vsub.f32 1.0, %v4074
      %v4185 = vsub.f32 1.0, %v4076
      %v4186 = vsub.f32 1.0, %v4078
      %v4187 = vsub.f32 1.0, %v4080
      %v4188 = vsub.f32 1.0, %v4082
      %v4189 = vsub.f32 1.0, %v4084
      %v4190 = vsub.f32 1.0, %v4086
      %v4191 = vsub.f32 1.0, %v4088
      %v4192 = vsub.f32 1.0, %v4090
      %v4193 = vsub.f32 1.0, %v4092
      %v4194 = vsub.f32 1.0, %v4094
      %v4195 = vsub.f32 1.0, %v4096
      %v4196 = vsub.f32 1.0, %v4098
      %v4197 = vsub.f32 1.0, %v4100
      %v4198 = vsub.f32 1.0, %v4102
      %v4199 = vsub.f32 1.0, %v4104
      %v4200 = vsub.f32 1.0, %v4106
      %v4201 = vsub.f32 1.0, %v4108
      %v4202 = vsub.f32 1.0, %v4110
      %v4203 = vsub.f32 1.0, %v4112
      %v4204 = vsub.f32 1.0, %v4114
      %v4205 = vsub.f32 1.0, %v4116
      %v4206 = vsub.f32 1.0, %v4118
      %v4207 = vsub.f32 1.0, %v4120
      %v4208 = vsub.f32 1.0, %v4122
      %v4209 = vsub.f32 1.0, %v4124
      %v4210 = vsub.f32 1.0, %v4126
      %v4211 = vsub.f32 1.0, %v4128
      %v4212 = vsub.f32 1.0, %v4130
      %v4213 = vsub.f32 1.0, %v4132
      %v4214 = vsub.f32 1.0, %v4134
      %v4215 = vsub.f32 1.0, %v4136
      %v4216 = vsub.f32 1.0, %v4138
      %v4217 = vsub.f32 1.0, %v4140
      %v4218 = vsub.f32 1.0, %v4142
      %v4219 = vsub.f32 1.0, %v4144
      %v4220 = vsub.f32 1.0, %v4146
      %v4221 = vsub.f32 1.0, %v4148
      %v4222 = vsub.f32 1.0, %v4150
      %v4223 = vsub.f32 1.0, %v4152
      %v4224 = vsub.f32 1.0, %v4154
      %v4225 = vsub.f32 1.0, %v4156
      %v4226 = vsub.f32 1.0, %v4158
      %v4227 = vsub.f32 1.0, %v4160
      %v4228 = vsub.f32 1.0, %v4162
      %v4229 = vsub.f32 1.0, %v4164
      %v4230 = vsub.f32 1.0, %v4166
      %v4231 = vsub.f32 0.0, %v3937
      %v4232 = vsub.f32 0.0, %v3942
      %v4233 = vsub.f32 0.0, %v3947
      %v4234 = vsub.f32 0.0, %v3952
      %v4235 = vsub.f32 0.0, %v3957
      %v4236 = vsub.f32 0.0, %v3962
      %v4237 = vsub.f32 0.0, %v3967
      %v4238 = vsub.f32 0.0, %v3972
      %v4239 = vmul.f32 %v4231, 1.442695
      %v4240 = vpow.pop %v4239
      %v4241 = vmul.f32 %v4232, 1.442695
      %v4242 = vpow.pop %v4241
      %v4243 = vmul.f32 %v4233, 1.442695
      %v4244 = vpow.pop %v4243
      %v4245 = vmul.f32 %v4234, 1.442695
      %v4246 = vpow.pop %v4245
      %v4247 = vmul.f32 %v4235, 1.442695
      %v4248 = vpow.pop %v4247
      %v4249 = vmul.f32 %v4236, 1.442695
      %v4250 = vpow.pop %v4249
      %v4251 = vmul.f32 %v4237, 1.442695
      %v4252 = vpow.pop %v4251
      %v4253 = vmul.f32 %v4238, 1.442695
      %v4254 = vpow.pop %v4253
      %v4263 = vlaneseq
      %v4264 = vshrl.u32 %v4263, 7
      %v4265 = vsub.s32 0, %v4264
      %v4266 = vrot.slane %v4240, %v4265
      %4268 = vbcast.lane.b32.xlu0 %v4266, 256
      %v4269 = vpop.permute.xlu0 %4268
      %v4270 = vlaneseq
      %v4271 = vshrl.u32 %v4270, 7
      %v4272 = vsub.s32 1, %v4271
      %v4273 = vrot.slane %v4240, %v4272
      %4275 = vbcast.lane.b32.xlu0 %v4273, 256
      %v4276 = vpop.permute.xlu0 %4275
      %v4277 = vlaneseq
      %v4278 = vshrl.u32 %v4277, 7
      %v4279 = vsub.s32 2, %v4278
      %v4280 = vrot.slane %v4240, %v4279
      %4282 = vbcast.lane.b32.xlu0 %v4280, 256
      %v4283 = vpop.permute.xlu0 %4282
      %v4284 = vlaneseq
      %v4285 = vshrl.u32 %v4284, 7
      %v4286 = vsub.s32 3, %v4285
      %v4287 = vrot.slane %v4240, %v4286
      %4289 = vbcast.lane.b32.xlu0 %v4287, 256
      %v4290 = vpop.permute.xlu0 %4289
      %v4291 = vlaneseq
      %v4292 = vshrl.u32 %v4291, 7
      %v4293 = vsub.s32 4, %v4292
      %v4294 = vrot.slane %v4240, %v4293
      %4296 = vbcast.lane.b32.xlu0 %v4294, 256
      %v4297 = vpop.permute.xlu0 %4296
      %v4298 = vlaneseq
      %v4299 = vshrl.u32 %v4298, 7
      %v4300 = vsub.s32 5, %v4299
      %v4301 = vrot.slane %v4240, %v4300
      %4303 = vbcast.lane.b32.xlu0 %v4301, 256
      %v4304 = vpop.permute.xlu0 %4303
      %v4305 = vlaneseq
      %v4306 = vshrl.u32 %v4305, 7
      %v4307 = vsub.s32 6, %v4306
      %v4308 = vrot.slane %v4240, %v4307
      %4310 = vbcast.lane.b32.xlu0 %v4308, 256
      %v4311 = vpop.permute.xlu0 %4310
      %v4312 = vlaneseq
      %v4313 = vshrl.u32 %v4312, 7
      %v4314 = vsub.s32 7, %v4313
      %v4315 = vrot.slane %v4240, %v4314
      %4317 = vbcast.lane.b32.xlu0 %v4315, 256
      %v4318 = vpop.permute.xlu0 %4317
      %v4319 = vlaneseq
      %v4320 = vshrl.u32 %v4319, 7
      %v4321 = vsub.s32 0, %v4320
      %v4322 = vrot.slane %v4242, %v4321
      %4324 = vbcast.lane.b32.xlu0 %v4322, 256
      %v4325 = vpop.permute.xlu0 %4324
      %v4326 = vlaneseq
      %v4327 = vshrl.u32 %v4326, 7
      %v4328 = vsub.s32 1, %v4327
      %v4329 = vrot.slane %v4242, %v4328
      %4331 = vbcast.lane.b32.xlu0 %v4329, 256
      %v4332 = vpop.permute.xlu0 %4331
      %v4333 = vlaneseq
      %v4334 = vshrl.u32 %v4333, 7
      %v4335 = vsub.s32 2, %v4334
      %v4336 = vrot.slane %v4242, %v4335
      %4338 = vbcast.lane.b32.xlu0 %v4336, 256
      %v4339 = vpop.permute.xlu0 %4338
      %v4340 = vlaneseq
      %v4341 = vshrl.u32 %v4340, 7
      %v4342 = vsub.s32 3, %v4341
      %v4343 = vrot.slane %v4242, %v4342
      %4345 = vbcast.lane.b32.xlu0 %v4343, 256
      %v4346 = vpop.permute.xlu0 %4345
      %v4347 = vlaneseq
      %v4348 = vshrl.u32 %v4347, 7
      %v4349 = vsub.s32 4, %v4348
      %v4350 = vrot.slane %v4242, %v4349
      %4352 = vbcast.lane.b32.xlu0 %v4350, 256
      %v4353 = vpop.permute.xlu0 %4352
      %v4354 = vlaneseq
      %v4355 = vshrl.u32 %v4354, 7
      %v4356 = vsub.s32 5, %v4355
      %v4357 = vrot.slane %v4242, %v4356
      %4359 = vbcast.lane.b32.xlu0 %v4357, 256
      %v4360 = vpop.permute.xlu0 %4359
      %v4361 = vlaneseq
      %v4362 = vshrl.u32 %v4361, 7
      %v4363 = vsub.s32 6, %v4362
      %v4364 = vrot.slane %v4242, %v4363
      %4366 = vbcast.lane.b32.xlu0 %v4364, 256
      %v4367 = vpop.permute.xlu0 %4366
      %v4368 = vlaneseq
      %v4369 = vshrl.u32 %v4368, 7
      %v4370 = vsub.s32 7, %v4369
      %v4371 = vrot.slane %v4242, %v4370
      %4373 = vbcast.lane.b32.xlu0 %v4371, 256
      %v4374 = vpop.permute.xlu0 %4373
      %v4375 = vlaneseq
      %v4376 = vshrl.u32 %v4375, 7
      %v4377 = vsub.s32 0, %v4376
      %v4378 = vrot.slane %v4244, %v4377
      %4380 = vbcast.lane.b32.xlu0 %v4378, 256
      %v4381 = vpop.permute.xlu0 %4380
      %v4382 = vlaneseq
      %v4383 = vshrl.u32 %v4382, 7
      %v4384 = vsub.s32 1, %v4383
      %v4385 = vrot.slane %v4244, %v4384
      %4387 = vbcast.lane.b32.xlu0 %v4385, 256
      %v4388 = vpop.permute.xlu0 %4387
      %v4389 = vlaneseq
      %v4390 = vshrl.u32 %v4389, 7
      %v4391 = vsub.s32 2, %v4390
      %v4392 = vrot.slane %v4244, %v4391
      %4394 = vbcast.lane.b32.xlu0 %v4392, 256
      %v4395 = vpop.permute.xlu0 %4394
      %v4396 = vlaneseq
      %v4397 = vshrl.u32 %v4396, 7
      %v4398 = vsub.s32 3, %v4397
      %v4399 = vrot.slane %v4244, %v4398
      %4401 = vbcast.lane.b32.xlu0 %v4399, 256
      %v4402 = vpop.permute.xlu0 %4401
      %v4403 = vlaneseq
      %v4404 = vshrl.u32 %v4403, 7
      %v4405 = vsub.s32 4, %v4404
      %v4406 = vrot.slane %v4244, %v4405
      %4408 = vbcast.lane.b32.xlu0 %v4406, 256
      %v4409 = vpop.permute.xlu0 %4408
      %v4410 = vlaneseq
      %v4411 = vshrl.u32 %v4410, 7
      %v4412 = vsub.s32 5, %v4411
      %v4413 = vrot.slane %v4244, %v4412
      %4415 = vbcast.lane.b32.xlu0 %v4413, 256
      %v4416 = vpop.permute.xlu0 %4415
      %v4417 = vlaneseq
      %v4418 = vshrl.u32 %v4417, 7
      %v4419 = vsub.s32 6, %v4418
      %v4420 = vrot.slane %v4244, %v4419
      %4422 = vbcast.lane.b32.xlu0 %v4420, 256
      %v4423 = vpop.permute.xlu0 %4422
      %v4424 = vlaneseq
      %v4425 = vshrl.u32 %v4424, 7
      %v4426 = vsub.s32 7, %v4425
      %v4427 = vrot.slane %v4244, %v4426
      %4429 = vbcast.lane.b32.xlu0 %v4427, 256
      %v4430 = vpop.permute.xlu0 %4429
      %v4431 = vlaneseq
      %v4432 = vshrl.u32 %v4431, 7
      %v4433 = vsub.s32 0, %v4432
      %v4434 = vrot.slane %v4246, %v4433
      %4436 = vbcast.lane.b32.xlu0 %v4434, 256
      %v4437 = vpop.permute.xlu0 %4436
      %v4438 = vlaneseq
      %v4439 = vshrl.u32 %v4438, 7
      %v4440 = vsub.s32 1, %v4439
      %v4441 = vrot.slane %v4246, %v4440
      %4443 = vbcast.lane.b32.xlu0 %v4441, 256
      %v4444 = vpop.permute.xlu0 %4443
      %v4445 = vlaneseq
      %v4446 = vshrl.u32 %v4445, 7
      %v4447 = vsub.s32 2, %v4446
      %v4448 = vrot.slane %v4246, %v4447
      %4450 = vbcast.lane.b32.xlu0 %v4448, 256
      %v4451 = vpop.permute.xlu0 %4450
      %v4452 = vlaneseq
      %v4453 = vshrl.u32 %v4452, 7
      %v4454 = vsub.s32 3, %v4453
      %v4455 = vrot.slane %v4246, %v4454
      %4457 = vbcast.lane.b32.xlu0 %v4455, 256
      %v4458 = vpop.permute.xlu0 %4457
      %v4459 = vlaneseq
      %v4460 = vshrl.u32 %v4459, 7
      %v4461 = vsub.s32 4, %v4460
      %v4462 = vrot.slane %v4246, %v4461
      %4464 = vbcast.lane.b32.xlu0 %v4462, 256
      %v4465 = vpop.permute.xlu0 %4464
      %v4466 = vlaneseq
      %v4467 = vshrl.u32 %v4466, 7
      %v4468 = vsub.s32 5, %v4467
      %v4469 = vrot.slane %v4246, %v4468
      %4471 = vbcast.lane.b32.xlu0 %v4469, 256
      %v4472 = vpop.permute.xlu0 %4471
      %v4473 = vlaneseq
      %v4474 = vshrl.u32 %v4473, 7
      %v4475 = vsub.s32 6, %v4474
      %v4476 = vrot.slane %v4246, %v4475
      %4478 = vbcast.lane.b32.xlu0 %v4476, 256
      %v4479 = vpop.permute.xlu0 %4478
      %v4480 = vlaneseq
      %v4481 = vshrl.u32 %v4480, 7
      %v4482 = vsub.s32 7, %v4481
      %v4483 = vrot.slane %v4246, %v4482
      %4485 = vbcast.lane.b32.xlu0 %v4483, 256
      %v4486 = vpop.permute.xlu0 %4485
      %v4487 = vlaneseq
      %v4488 = vshrl.u32 %v4487, 7
      %v4489 = vsub.s32 0, %v4488
      %v4490 = vrot.slane %v4248, %v4489
      %4492 = vbcast.lane.b32.xlu0 %v4490, 256
      %v4493 = vpop.permute.xlu0 %4492
      %v4494 = vlaneseq
      %v4495 = vshrl.u32 %v4494, 7
      %v4496 = vsub.s32 1, %v4495
      %v4497 = vrot.slane %v4248, %v4496
      %4499 = vbcast.lane.b32.xlu0 %v4497, 256
      %v4500 = vpop.permute.xlu0 %4499
      %v4501 = vlaneseq
      %v4502 = vshrl.u32 %v4501, 7
      %v4503 = vsub.s32 2, %v4502
      %v4504 = vrot.slane %v4248, %v4503
      %4506 = vbcast.lane.b32.xlu0 %v4504, 256
      %v4507 = vpop.permute.xlu0 %4506
      %v4508 = vlaneseq
      %v4509 = vshrl.u32 %v4508, 7
      %v4510 = vsub.s32 3, %v4509
      %v4511 = vrot.slane %v4248, %v4510
      %4513 = vbcast.lane.b32.xlu0 %v4511, 256
      %v4514 = vpop.permute.xlu0 %4513
      %v4515 = vlaneseq
      %v4516 = vshrl.u32 %v4515, 7
      %v4517 = vsub.s32 4, %v4516
      %v4518 = vrot.slane %v4248, %v4517
      %4520 = vbcast.lane.b32.xlu0 %v4518, 256
      %v4521 = vpop.permute.xlu0 %4520
      %v4522 = vlaneseq
      %v4523 = vshrl.u32 %v4522, 7
      %v4524 = vsub.s32 5, %v4523
      %v4525 = vrot.slane %v4248, %v4524
      %4527 = vbcast.lane.b32.xlu0 %v4525, 256
      %v4528 = vpop.permute.xlu0 %4527
      %v4529 = vlaneseq
      %v4530 = vshrl.u32 %v4529, 7
      %v4531 = vsub.s32 6, %v4530
      %v4532 = vrot.slane %v4248, %v4531
      %4534 = vbcast.lane.b32.xlu0 %v4532, 256
      %v4535 = vpop.permute.xlu0 %4534
      %v4536 = vlaneseq
      %v4537 = vshrl.u32 %v4536, 7
      %v4538 = vsub.s32 7, %v4537
      %v4539 = vrot.slane %v4248, %v4538
      %4541 = vbcast.lane.b32.xlu0 %v4539, 256
      %v4542 = vpop.permute.xlu0 %4541
      %v4543 = vlaneseq
      %v4544 = vshrl.u32 %v4543, 7
      %v4545 = vsub.s32 0, %v4544
      %v4546 = vrot.slane %v4250, %v4545
      %4548 = vbcast.lane.b32.xlu0 %v4546, 256
      %v4549 = vpop.permute.xlu0 %4548
      %v4550 = vlaneseq
      %v4551 = vshrl.u32 %v4550, 7
      %v4552 = vsub.s32 1, %v4551
      %v4553 = vrot.slane %v4250, %v4552
      %4555 = vbcast.lane.b32.xlu0 %v4553, 256
      %v4556 = vpop.permute.xlu0 %4555
      %v4557 = vlaneseq
      %v4558 = vshrl.u32 %v4557, 7
      %v4559 = vsub.s32 2, %v4558
      %v4560 = vrot.slane %v4250, %v4559
      %4562 = vbcast.lane.b32.xlu0 %v4560, 256
      %v4563 = vpop.permute.xlu0 %4562
      %v4564 = vlaneseq
      %v4565 = vshrl.u32 %v4564, 7
      %v4566 = vsub.s32 3, %v4565
      %v4567 = vrot.slane %v4250, %v4566
      %4569 = vbcast.lane.b32.xlu0 %v4567, 256
      %v4570 = vpop.permute.xlu0 %4569
      %v4571 = vlaneseq
      %v4572 = vshrl.u32 %v4571, 7
      %v4573 = vsub.s32 4, %v4572
      %v4574 = vrot.slane %v4250, %v4573
      %4576 = vbcast.lane.b32.xlu0 %v4574, 256
      %v4577 = vpop.permute.xlu0 %4576
      %v4578 = vlaneseq
      %v4579 = vshrl.u32 %v4578, 7
      %v4580 = vsub.s32 5, %v4579
      %v4581 = vrot.slane %v4250, %v4580
      %4583 = vbcast.lane.b32.xlu0 %v4581, 256
      %v4584 = vpop.permute.xlu0 %4583
      %v4585 = vlaneseq
      %v4586 = vshrl.u32 %v4585, 7
      %v4587 = vsub.s32 6, %v4586
      %v4588 = vrot.slane %v4250, %v4587
      %4590 = vbcast.lane.b32.xlu0 %v4588, 256
      %v4591 = vpop.permute.xlu0 %4590
      %v4592 = vlaneseq
      %v4593 = vshrl.u32 %v4592, 7
      %v4594 = vsub.s32 7, %v4593
      %v4595 = vrot.slane %v4250, %v4594
      %4597 = vbcast.lane.b32.xlu0 %v4595, 256
      %v4598 = vpop.permute.xlu0 %4597
      %v4599 = vlaneseq
      %v4600 = vshrl.u32 %v4599, 7
      %v4601 = vsub.s32 0, %v4600
      %v4602 = vrot.slane %v4252, %v4601
      %4604 = vbcast.lane.b32.xlu0 %v4602, 256
      %v4605 = vpop.permute.xlu0 %4604
      %v4606 = vlaneseq
      %v4607 = vshrl.u32 %v4606, 7
      %v4608 = vsub.s32 1, %v4607
      %v4609 = vrot.slane %v4252, %v4608
      %4611 = vbcast.lane.b32.xlu0 %v4609, 256
      %v4612 = vpop.permute.xlu0 %4611
      %v4613 = vlaneseq
      %v4614 = vshrl.u32 %v4613, 7
      %v4615 = vsub.s32 2, %v4614
      %v4616 = vrot.slane %v4252, %v4615
      %4618 = vbcast.lane.b32.xlu0 %v4616, 256
      %v4619 = vpop.permute.xlu0 %4618
      %v4620 = vlaneseq
      %v4621 = vshrl.u32 %v4620, 7
      %v4622 = vsub.s32 3, %v4621
      %v4623 = vrot.slane %v4252, %v4622
      %4625 = vbcast.lane.b32.xlu0 %v4623, 256
      %v4626 = vpop.permute.xlu0 %4625
      %v4627 = vlaneseq
      %v4628 = vshrl.u32 %v4627, 7
      %v4629 = vsub.s32 4, %v4628
      %v4630 = vrot.slane %v4252, %v4629
      %4632 = vbcast.lane.b32.xlu0 %v4630, 256
      %v4633 = vpop.permute.xlu0 %4632
      %v4634 = vlaneseq
      %v4635 = vshrl.u32 %v4634, 7
      %v4636 = vsub.s32 5, %v4635
      %v4637 = vrot.slane %v4252, %v4636
      %4639 = vbcast.lane.b32.xlu0 %v4637, 256
      %v4640 = vpop.permute.xlu0 %4639
      %v4641 = vlaneseq
      %v4642 = vshrl.u32 %v4641, 7
      %v4643 = vsub.s32 6, %v4642
      %v4644 = vrot.slane %v4252, %v4643
      %4646 = vbcast.lane.b32.xlu0 %v4644, 256
      %v4647 = vpop.permute.xlu0 %4646
      %v4648 = vlaneseq
      %v4649 = vshrl.u32 %v4648, 7
      %v4650 = vsub.s32 7, %v4649
      %v4651 = vrot.slane %v4252, %v4650
      %4653 = vbcast.lane.b32.xlu0 %v4651, 256
      %v4654 = vpop.permute.xlu0 %4653
      %v4655 = vlaneseq
      %v4656 = vshrl.u32 %v4655, 7
      %v4657 = vsub.s32 0, %v4656
      %v4658 = vrot.slane %v4254, %v4657
      %4660 = vbcast.lane.b32.xlu0 %v4658, 256
      %v4661 = vpop.permute.xlu0 %4660
      %v4662 = vlaneseq
      %v4663 = vshrl.u32 %v4662, 7
      %v4664 = vsub.s32 1, %v4663
      %v4665 = vrot.slane %v4254, %v4664
      %4667 = vbcast.lane.b32.xlu0 %v4665, 256
      %v4668 = vpop.permute.xlu0 %4667
      %v4669 = vlaneseq
      %v4670 = vshrl.u32 %v4669, 7
      %v4671 = vsub.s32 2, %v4670
      %v4672 = vrot.slane %v4254, %v4671
      %4674 = vbcast.lane.b32.xlu0 %v4672, 256
      %v4675 = vpop.permute.xlu0 %4674
      %v4676 = vlaneseq
      %v4677 = vshrl.u32 %v4676, 7
      %v4678 = vsub.s32 3, %v4677
      %v4679 = vrot.slane %v4254, %v4678
      %4681 = vbcast.lane.b32.xlu0 %v4679, 256
      %v4682 = vpop.permute.xlu0 %4681
      %v4683 = vlaneseq
      %v4684 = vshrl.u32 %v4683, 7
      %v4685 = vsub.s32 4, %v4684
      %v4686 = vrot.slane %v4254, %v4685
      %4688 = vbcast.lane.b32.xlu0 %v4686, 256
      %v4689 = vpop.permute.xlu0 %4688
      %v4690 = vlaneseq
      %v4691 = vshrl.u32 %v4690, 7
      %v4692 = vsub.s32 5, %v4691
      %v4693 = vrot.slane %v4254, %v4692
      %4695 = vbcast.lane.b32.xlu0 %v4693, 256
      %v4696 = vpop.permute.xlu0 %4695
      %v4697 = vlaneseq
      %v4698 = vshrl.u32 %v4697, 7
      %v4699 = vsub.s32 6, %v4698
      %v4700 = vrot.slane %v4254, %v4699
      %4702 = vbcast.lane.b32.xlu0 %v4700, 256
      %v4703 = vpop.permute.xlu0 %4702
      %v4704 = vlaneseq
      %v4705 = vshrl.u32 %v4704, 7
      %v4706 = vsub.s32 7, %v4705
      %v4707 = vrot.slane %v4254, %v4706
      %4709 = vbcast.lane.b32.xlu0 %v4707, 256
      %v4710 = vpop.permute.xlu0 %4709
      %v4775 = vmul.f32 %v4167, %v4269
      %v4776 = vmul.f32 %v4168, %v4276
      %v4777 = vmul.f32 %v4169, %v4283
      %v4778 = vmul.f32 %v4170, %v4290
      %v4779 = vmul.f32 %v4171, %v4297
      %v4780 = vmul.f32 %v4172, %v4304
      %v4781 = vmul.f32 %v4173, %v4311
      %v4782 = vmul.f32 %v4174, %v4318
      %v4783 = vmul.f32 %v4175, %v4325
      %v4784 = vmul.f32 %v4176, %v4332
      %v4785 = vmul.f32 %v4177, %v4339
      %v4786 = vmul.f32 %v4178, %v4346
      %v4787 = vmul.f32 %v4179, %v4353
      %v4788 = vmul.f32 %v4180, %v4360
      %v4789 = vmul.f32 %v4181, %v4367
      %v4790 = vmul.f32 %v4182, %v4374
      %v4791 = vmul.f32 %v4183, %v4381
      %v4792 = vmul.f32 %v4184, %v4388
      %v4793 = vmul.f32 %v4185, %v4395
      %v4794 = vmul.f32 %v4186, %v4402
      %v4795 = vmul.f32 %v4187, %v4409
      %v4796 = vmul.f32 %v4188, %v4416
      %v4797 = vmul.f32 %v4189, %v4423
      %v4798 = vmul.f32 %v4190, %v4430
      %v4799 = vmul.f32 %v4191, %v4437
      %v4800 = vmul.f32 %v4192, %v4444
      %v4801 = vmul.f32 %v4193, %v4451
      %v4802 = vmul.f32 %v4194, %v4458
      %v4803 = vmul.f32 %v4195, %v4465
      %v4804 = vmul.f32 %v4196, %v4472
      %v4805 = vmul.f32 %v4197, %v4479
      %v4806 = vmul.f32 %v4198, %v4486
      %v4807 = vmul.f32 %v4199, %v4493
      %v4808 = vmul.f32 %v4200, %v4500
      %v4809 = vmul.f32 %v4201, %v4507
      %v4810 = vmul.f32 %v4202, %v4514
      %v4811 = vmul.f32 %v4203, %v4521
      %v4812 = vmul.f32 %v4204, %v4528
      %v4813 = vmul.f32 %v4205, %v4535
      %v4814 = vmul.f32 %v4206, %v4542
      %v4815 = vmul.f32 %v4207, %v4549
      %v4816 = vmul.f32 %v4208, %v4556
      %v4817 = vmul.f32 %v4209, %v4563
      %v4818 = vmul.f32 %v4210, %v4570
      %v4819 = vmul.f32 %v4211, %v4577
      %v4820 = vmul.f32 %v4212, %v4584
      %v4821 = vmul.f32 %v4213, %v4591
      %v4822 = vmul.f32 %v4214, %v4598
      %v4823 = vmul.f32 %v4215, %v4605
      %v4824 = vmul.f32 %v4216, %v4612
      %v4825 = vmul.f32 %v4217, %v4619
      %v4826 = vmul.f32 %v4218, %v4626
      %v4827 = vmul.f32 %v4219, %v4633
      %v4828 = vmul.f32 %v4220, %v4640
      %v4829 = vmul.f32 %v4221, %v4647
      %v4830 = vmul.f32 %v4222, %v4654
      %v4831 = vmul.f32 %v4223, %v4661
      %v4832 = vmul.f32 %v4224, %v4668
      %v4833 = vmul.f32 %v4225, %v4675
      %v4834 = vmul.f32 %v4226, %v4682
      %v4835 = vmul.f32 %v4227, %v4689
      %v4836 = vmul.f32 %v4228, %v4696
      %v4837 = vmul.f32 %v4229, %v4703
      %v4838 = vmul.f32 %v4230, %v4710
      %4840 = vset.pattern.permute.xlu0 0
      %4841 = vperm.xlu0 %4840, %v4775
      %v4842 = vpop.permute.xlu0 %4841
      %4845 = vset.pattern.permute.xlu0 0
      %4846 = vperm.xlu0 %4845, %v4776
      %v4847 = vpop.permute.xlu0 %4846
      %4850 = vset.pattern.permute.xlu0 0
      %4851 = vperm.xlu0 %4850, %v4777
      %v4852 = vpop.permute.xlu0 %4851
      %4855 = vset.pattern.permute.xlu0 0
      %4856 = vperm.xlu0 %4855, %v4778
      %v4857 = vpop.permute.xlu0 %4856
      %4860 = vset.pattern.permute.xlu0 0
      %4861 = vperm.xlu0 %4860, %v4779
      %v4862 = vpop.permute.xlu0 %4861
      %4865 = vset.pattern.permute.xlu0 0
      %4866 = vperm.xlu0 %4865, %v4780
      %v4867 = vpop.permute.xlu0 %4866
      %4870 = vset.pattern.permute.xlu0 0
      %4871 = vperm.xlu0 %4870, %v4781
      %v4872 = vpop.permute.xlu0 %4871
      %4875 = vset.pattern.permute.xlu0 0
      %4876 = vperm.xlu0 %4875, %v4782
      %v4877 = vpop.permute.xlu0 %4876
      %4880 = vset.pattern.permute.xlu0 0
      %4881 = vperm.xlu0 %4880, %v4783
      %v4882 = vpop.permute.xlu0 %4881
      %4885 = vset.pattern.permute.xlu0 0
      %4886 = vperm.xlu0 %4885, %v4784
      %v4887 = vpop.permute.xlu0 %4886
      %4890 = vset.pattern.permute.xlu0 0
      %4891 = vperm.xlu0 %4890, %v4785
      %v4892 = vpop.permute.xlu0 %4891
      %4895 = vset.pattern.permute.xlu0 0
      %4896 = vperm.xlu0 %4895, %v4786
      %v4897 = vpop.permute.xlu0 %4896
      %4900 = vset.pattern.permute.xlu0 0
      %4901 = vperm.xlu0 %4900, %v4787
      %v4902 = vpop.permute.xlu0 %4901
      %4905 = vset.pattern.permute.xlu0 0
      %4906 = vperm.xlu0 %4905, %v4788
      %v4907 = vpop.permute.xlu0 %4906
      %4910 = vset.pattern.permute.xlu0 0
      %4911 = vperm.xlu0 %4910, %v4789
      %v4912 = vpop.permute.xlu0 %4911
      %4915 = vset.pattern.permute.xlu0 0
      %4916 = vperm.xlu0 %4915, %v4790
      %v4917 = vpop.permute.xlu0 %4916
      %4920 = vset.pattern.permute.xlu0 0
      %4921 = vperm.xlu0 %4920, %v4791
      %v4922 = vpop.permute.xlu0 %4921
      %4925 = vset.pattern.permute.xlu0 0
      %4926 = vperm.xlu0 %4925, %v4792
      %v4927 = vpop.permute.xlu0 %4926
      %4930 = vset.pattern.permute.xlu0 0
      %4931 = vperm.xlu0 %4930, %v4793
      %v4932 = vpop.permute.xlu0 %4931
      %4935 = vset.pattern.permute.xlu0 0
      %4936 = vperm.xlu0 %4935, %v4794
      %v4937 = vpop.permute.xlu0 %4936
      %4940 = vset.pattern.permute.xlu0 0
      %4941 = vperm.xlu0 %4940, %v4795
      %v4942 = vpop.permute.xlu0 %4941
      %4945 = vset.pattern.permute.xlu0 0
      %4946 = vperm.xlu0 %4945, %v4796
      %v4947 = vpop.permute.xlu0 %4946
      %4950 = vset.pattern.permute.xlu0 0
      %4951 = vperm.xlu0 %4950, %v4797
      %v4952 = vpop.permute.xlu0 %4951
      %4955 = vset.pattern.permute.xlu0 0
      %4956 = vperm.xlu0 %4955, %v4798
      %v4957 = vpop.permute.xlu0 %4956
      %4960 = vset.pattern.permute.xlu0 0
      %4961 = vperm.xlu0 %4960, %v4799
      %v4962 = vpop.permute.xlu0 %4961
      %4965 = vset.pattern.permute.xlu0 0
      %4966 = vperm.xlu0 %4965, %v4800
      %v4967 = vpop.permute.xlu0 %4966
      %4970 = vset.pattern.permute.xlu0 0
      %4971 = vperm.xlu0 %4970, %v4801
      %v4972 = vpop.permute.xlu0 %4971
      %4975 = vset.pattern.permute.xlu0 0
      %4976 = vperm.xlu0 %4975, %v4802
      %v4977 = vpop.permute.xlu0 %4976
      %4980 = vset.pattern.permute.xlu0 0
      %4981 = vperm.xlu0 %4980, %v4803
      %v4982 = vpop.permute.xlu0 %4981
      %4985 = vset.pattern.permute.xlu0 0
      %4986 = vperm.xlu0 %4985, %v4804
      %v4987 = vpop.permute.xlu0 %4986
      %4990 = vset.pattern.permute.xlu0 0
      %4991 = vperm.xlu0 %4990, %v4805
      %v4992 = vpop.permute.xlu0 %4991
      %4995 = vset.pattern.permute.xlu0 0
      %4996 = vperm.xlu0 %4995, %v4806
      %v4997 = vpop.permute.xlu0 %4996
      %5000 = vset.pattern.permute.xlu0 0
      %5001 = vperm.xlu0 %5000, %v4807
      %v5002 = vpop.permute.xlu0 %5001
      %5005 = vset.pattern.permute.xlu0 0
      %5006 = vperm.xlu0 %5005, %v4808
      %v5007 = vpop.permute.xlu0 %5006
      %5010 = vset.pattern.permute.xlu0 0
      %5011 = vperm.xlu0 %5010, %v4809
      %v5012 = vpop.permute.xlu0 %5011
      %5015 = vset.pattern.permute.xlu0 0
      %5016 = vperm.xlu0 %5015, %v4810
      %v5017 = vpop.permute.xlu0 %5016
      %5020 = vset.pattern.permute.xlu0 0
      %5021 = vperm.xlu0 %5020, %v4811
      %v5022 = vpop.permute.xlu0 %5021
      %5025 = vset.pattern.permute.xlu0 0
      %5026 = vperm.xlu0 %5025, %v4812
      %v5027 = vpop.permute.xlu0 %5026
      %5030 = vset.pattern.permute.xlu0 0
      %5031 = vperm.xlu0 %5030, %v4813
      %v5032 = vpop.permute.xlu0 %5031
      %5035 = vset.pattern.permute.xlu0 0
      %5036 = vperm.xlu0 %5035, %v4814
      %v5037 = vpop.permute.xlu0 %5036
      %5040 = vset.pattern.permute.xlu0 0
      %5041 = vperm.xlu0 %5040, %v4815
      %v5042 = vpop.permute.xlu0 %5041
      %5045 = vset.pattern.permute.xlu0 0
      %5046 = vperm.xlu0 %5045, %v4816
      %v5047 = vpop.permute.xlu0 %5046
      %5050 = vset.pattern.permute.xlu0 0
      %5051 = vperm.xlu0 %5050, %v4817
      %v5052 = vpop.permute.xlu0 %5051
      %5055 = vset.pattern.permute.xlu0 0
      %5056 = vperm.xlu0 %5055, %v4818
      %v5057 = vpop.permute.xlu0 %5056
      %5060 = vset.pattern.permute.xlu0 0
      %5061 = vperm.xlu0 %5060, %v4819
      %v5062 = vpop.permute.xlu0 %5061
      %5065 = vset.pattern.permute.xlu0 0
      %5066 = vperm.xlu0 %5065, %v4820
      %v5067 = vpop.permute.xlu0 %5066
      %5070 = vset.pattern.permute.xlu0 0
      %5071 = vperm.xlu0 %5070, %v4821
      %v5072 = vpop.permute.xlu0 %5071
      %5075 = vset.pattern.permute.xlu0 0
      %5076 = vperm.xlu0 %5075, %v4822
      %v5077 = vpop.permute.xlu0 %5076
      %5080 = vset.pattern.permute.xlu0 0
      %5081 = vperm.xlu0 %5080, %v4823
      %v5082 = vpop.permute.xlu0 %5081
      %5085 = vset.pattern.permute.xlu0 0
      %5086 = vperm.xlu0 %5085, %v4824
      %v5087 = vpop.permute.xlu0 %5086
      %5090 = vset.pattern.permute.xlu0 0
      %5091 = vperm.xlu0 %5090, %v4825
      %v5092 = vpop.permute.xlu0 %5091
      %5095 = vset.pattern.permute.xlu0 0
      %5096 = vperm.xlu0 %5095, %v4826
      %v5097 = vpop.permute.xlu0 %5096
      %5100 = vset.pattern.permute.xlu0 0
      %5101 = vperm.xlu0 %5100, %v4827
      %v5102 = vpop.permute.xlu0 %5101
      %5105 = vset.pattern.permute.xlu0 0
      %5106 = vperm.xlu0 %5105, %v4828
      %v5107 = vpop.permute.xlu0 %5106
      %5110 = vset.pattern.permute.xlu0 0
      %5111 = vperm.xlu0 %5110, %v4829
      %v5112 = vpop.permute.xlu0 %5111
      %5115 = vset.pattern.permute.xlu0 0
      %5116 = vperm.xlu0 %5115, %v4830
      %v5117 = vpop.permute.xlu0 %5116
      %5120 = vset.pattern.permute.xlu0 0
      %5121 = vperm.xlu0 %5120, %v4831
      %v5122 = vpop.permute.xlu0 %5121
      %5125 = vset.pattern.permute.xlu0 0
      %5126 = vperm.xlu0 %5125, %v4832
      %v5127 = vpop.permute.xlu0 %5126
      %5130 = vset.pattern.permute.xlu0 0
      %5131 = vperm.xlu0 %5130, %v4833
      %v5132 = vpop.permute.xlu0 %5131
      %5135 = vset.pattern.permute.xlu0 0
      %5136 = vperm.xlu0 %5135, %v4834
      %v5137 = vpop.permute.xlu0 %5136
      %5140 = vset.pattern.permute.xlu0 0
      %5141 = vperm.xlu0 %5140, %v4835
      %v5142 = vpop.permute.xlu0 %5141
      %5145 = vset.pattern.permute.xlu0 0
      %5146 = vperm.xlu0 %5145, %v4836
      %v5147 = vpop.permute.xlu0 %5146
      %5150 = vset.pattern.permute.xlu0 0
      %5151 = vperm.xlu0 %5150, %v4837
      %v5152 = vpop.permute.xlu0 %5151
      %5155 = vset.pattern.permute.xlu0 0
      %5156 = vperm.xlu0 %5155, %v4838
      %v5157 = vpop.permute.xlu0 %5156
      %v5159 = vmul.f32 %v4842, %v2615
      %v5160 = vmul.f32 %v4847, %v2616
      %v5161 = vmul.f32 %v4852, %v2617
      %v5162 = vmul.f32 %v4857, %v2618
      %v5163 = vmul.f32 %v4862, %v2619
      %v5164 = vmul.f32 %v4867, %v2620
      %v5165 = vmul.f32 %v4872, %v2621
      %v5166 = vmul.f32 %v4877, %v2622
      %v5167 = vmul.f32 %v4882, %v2623
      %v5168 = vmul.f32 %v4887, %v2624
      %v5169 = vmul.f32 %v4892, %v2625
      %v5170 = vmul.f32 %v4897, %v2626
      %v5171 = vmul.f32 %v4902, %v2627
      %v5172 = vmul.f32 %v4907, %v2628
      %v5173 = vmul.f32 %v4912, %v2629
      %v5174 = vmul.f32 %v4917, %v2630
      %v5175 = vmul.f32 %v4922, %v2631
      %v5176 = vmul.f32 %v4927, %v2632
      %v5177 = vmul.f32 %v4932, %v2633
      %v5178 = vmul.f32 %v4937, %v2634
      %v5179 = vmul.f32 %v4942, %v2635
      %v5180 = vmul.f32 %v4947, %v2636
      %v5181 = vmul.f32 %v4952, %v2637
      %v5182 = vmul.f32 %v4957, %v2638
      %v5183 = vmul.f32 %v4962, %v2639
      %v5184 = vmul.f32 %v4967, %v2640
      %v5185 = vmul.f32 %v4972, %v2641
      %v5186 = vmul.f32 %v4977, %v2642
      %v5187 = vmul.f32 %v4982, %v2643
      %v5188 = vmul.f32 %v4987, %v2644
      %v5189 = vmul.f32 %v4992, %v2645
      %v5190 = vmul.f32 %v4997, %v2646
      %v5191 = vmul.f32 %v5002, %v2647
      %v5192 = vmul.f32 %v5007, %v2648
      %v5193 = vmul.f32 %v5012, %v2649
      %v5194 = vmul.f32 %v5017, %v2650
      %v5195 = vmul.f32 %v5022, %v2651
      %v5196 = vmul.f32 %v5027, %v2652
      %v5197 = vmul.f32 %v5032, %v2653
      %v5198 = vmul.f32 %v5037, %v2654
      %v5199 = vmul.f32 %v5042, %v2655
      %v5200 = vmul.f32 %v5047, %v2656
      %v5201 = vmul.f32 %v5052, %v2657
      %v5202 = vmul.f32 %v5057, %v2658
      %v5203 = vmul.f32 %v5062, %v2659
      %v5204 = vmul.f32 %v5067, %v2660
      %v5205 = vmul.f32 %v5072, %v2661
      %v5206 = vmul.f32 %v5077, %v2662
      %v5207 = vmul.f32 %v5082, %v2663
      %v5208 = vmul.f32 %v5087, %v2664
      %v5209 = vmul.f32 %v5092, %v2665
      %v5210 = vmul.f32 %v5097, %v2666
      %v5211 = vmul.f32 %v5102, %v2667
      %v5212 = vmul.f32 %v5107, %v2668
      %v5213 = vmul.f32 %v5112, %v2669
      %v5214 = vmul.f32 %v5117, %v2670
      %v5215 = vmul.f32 %v5122, %v2671
      %v5216 = vmul.f32 %v5127, %v2672
      %v5217 = vmul.f32 %v5132, %v2673
      %v5218 = vmul.f32 %v5137, %v2674
      %v5219 = vmul.f32 %v5142, %v2675
      %v5220 = vmul.f32 %v5147, %v2676
      %v5221 = vmul.f32 %v5152, %v2677
      %v5222 = vmul.f32 %v5157, %v2678
      %v5223 = vsel %vm404, %v5159, 0.0
      %v5224 = vrot.slane %v5223, 4
      %v5225 = vadd.f32 %v5223, %v5224
      %v5226 = vrot.slane %v5225, 2
      %v5227 = vadd.f32 %v5225, %v5226
      %v5228 = vrot.slane %v5227, 1
      %v5229 = vadd.f32 %v5227, %v5228
      %v5230 = vsel %vm404, %v5160, 0.0
      %v5231 = vrot.slane %v5230, 4
      %v5232 = vadd.f32 %v5230, %v5231
      %v5233 = vrot.slane %v5232, 2
      %v5234 = vadd.f32 %v5232, %v5233
      %v5235 = vrot.slane %v5234, 1
      %v5236 = vadd.f32 %v5234, %v5235
      %v5237 = vsel %vm404, %v5161, 0.0
      %v5238 = vrot.slane %v5237, 4
      %v5239 = vadd.f32 %v5237, %v5238
      %v5240 = vrot.slane %v5239, 2
      %v5241 = vadd.f32 %v5239, %v5240
      %v5242 = vrot.slane %v5241, 1
      %v5243 = vadd.f32 %v5241, %v5242
      %v5244 = vsel %vm404, %v5162, 0.0
      %v5245 = vrot.slane %v5244, 4
      %v5246 = vadd.f32 %v5244, %v5245
      %v5247 = vrot.slane %v5246, 2
      %v5248 = vadd.f32 %v5246, %v5247
      %v5249 = vrot.slane %v5248, 1
      %v5250 = vadd.f32 %v5248, %v5249
      %v5251 = vsel %vm404, %v5163, 0.0
      %v5252 = vrot.slane %v5251, 4
      %v5253 = vadd.f32 %v5251, %v5252
      %v5254 = vrot.slane %v5253, 2
      %v5255 = vadd.f32 %v5253, %v5254
      %v5256 = vrot.slane %v5255, 1
      %v5257 = vadd.f32 %v5255, %v5256
      %v5258 = vsel %vm404, %v5164, 0.0
      %v5259 = vrot.slane %v5258, 4
      %v5260 = vadd.f32 %v5258, %v5259
      %v5261 = vrot.slane %v5260, 2
      %v5262 = vadd.f32 %v5260, %v5261
      %v5263 = vrot.slane %v5262, 1
      %v5264 = vadd.f32 %v5262, %v5263
      %v5265 = vsel %vm404, %v5165, 0.0
      %v5266 = vrot.slane %v5265, 4
      %v5267 = vadd.f32 %v5265, %v5266
      %v5268 = vrot.slane %v5267, 2
      %v5269 = vadd.f32 %v5267, %v5268
      %v5270 = vrot.slane %v5269, 1
      %v5271 = vadd.f32 %v5269, %v5270
      %v5272 = vsel %vm404, %v5166, 0.0
      %v5273 = vrot.slane %v5272, 4
      %v5274 = vadd.f32 %v5272, %v5273
      %v5275 = vrot.slane %v5274, 2
      %v5276 = vadd.f32 %v5274, %v5275
      %v5277 = vrot.slane %v5276, 1
      %v5278 = vadd.f32 %v5276, %v5277
      %v5279 = vsel %vm404, %v5167, 0.0
      %v5280 = vrot.slane %v5279, 4
      %v5281 = vadd.f32 %v5279, %v5280
      %v5282 = vrot.slane %v5281, 2
      %v5283 = vadd.f32 %v5281, %v5282
      %v5284 = vrot.slane %v5283, 1
      %v5285 = vadd.f32 %v5283, %v5284
      %v5286 = vsel %vm404, %v5168, 0.0
      %v5287 = vrot.slane %v5286, 4
      %v5288 = vadd.f32 %v5286, %v5287
      %v5289 = vrot.slane %v5288, 2
      %v5290 = vadd.f32 %v5288, %v5289
      %v5291 = vrot.slane %v5290, 1
      %v5292 = vadd.f32 %v5290, %v5291
      %v5293 = vsel %vm404, %v5169, 0.0
      %v5294 = vrot.slane %v5293, 4
      %v5295 = vadd.f32 %v5293, %v5294
      %v5296 = vrot.slane %v5295, 2
      %v5297 = vadd.f32 %v5295, %v5296
      %v5298 = vrot.slane %v5297, 1
      %v5299 = vadd.f32 %v5297, %v5298
      %v5300 = vsel %vm404, %v5170, 0.0
      %v5301 = vrot.slane %v5300, 4
      %v5302 = vadd.f32 %v5300, %v5301
      %v5303 = vrot.slane %v5302, 2
      %v5304 = vadd.f32 %v5302, %v5303
      %v5305 = vrot.slane %v5304, 1
      %v5306 = vadd.f32 %v5304, %v5305
      %v5307 = vsel %vm404, %v5171, 0.0
      %v5308 = vrot.slane %v5307, 4
      %v5309 = vadd.f32 %v5307, %v5308
      %v5310 = vrot.slane %v5309, 2
      %v5311 = vadd.f32 %v5309, %v5310
      %v5312 = vrot.slane %v5311, 1
      %v5313 = vadd.f32 %v5311, %v5312
      %v5314 = vsel %vm404, %v5172, 0.0
      %v5315 = vrot.slane %v5314, 4
      %v5316 = vadd.f32 %v5314, %v5315
      %v5317 = vrot.slane %v5316, 2
      %v5318 = vadd.f32 %v5316, %v5317
      %v5319 = vrot.slane %v5318, 1
      %v5320 = vadd.f32 %v5318, %v5319
      %v5321 = vsel %vm404, %v5173, 0.0
      %v5322 = vrot.slane %v5321, 4
      %v5323 = vadd.f32 %v5321, %v5322
      %v5324 = vrot.slane %v5323, 2
      %v5325 = vadd.f32 %v5323, %v5324
      %v5326 = vrot.slane %v5325, 1
      %v5327 = vadd.f32 %v5325, %v5326
      %v5328 = vsel %vm404, %v5174, 0.0
      %v5329 = vrot.slane %v5328, 4
      %v5330 = vadd.f32 %v5328, %v5329
      %v5331 = vrot.slane %v5330, 2
      %v5332 = vadd.f32 %v5330, %v5331
      %v5333 = vrot.slane %v5332, 1
      %v5334 = vadd.f32 %v5332, %v5333
      %v5335 = vsel %vm404, %v5175, 0.0
      %v5336 = vrot.slane %v5335, 4
      %v5337 = vadd.f32 %v5335, %v5336
      %v5338 = vrot.slane %v5337, 2
      %v5339 = vadd.f32 %v5337, %v5338
      %v5340 = vrot.slane %v5339, 1
      %v5341 = vadd.f32 %v5339, %v5340
      %v5342 = vsel %vm404, %v5176, 0.0
      %v5343 = vrot.slane %v5342, 4
      %v5344 = vadd.f32 %v5342, %v5343
      %v5345 = vrot.slane %v5344, 2
      %v5346 = vadd.f32 %v5344, %v5345
      %v5347 = vrot.slane %v5346, 1
      %v5348 = vadd.f32 %v5346, %v5347
      %v5349 = vsel %vm404, %v5177, 0.0
      %v5350 = vrot.slane %v5349, 4
      %v5351 = vadd.f32 %v5349, %v5350
      %v5352 = vrot.slane %v5351, 2
      %v5353 = vadd.f32 %v5351, %v5352
      %v5354 = vrot.slane %v5353, 1
      %v5355 = vadd.f32 %v5353, %v5354
      %v5356 = vsel %vm404, %v5178, 0.0
      %v5357 = vrot.slane %v5356, 4
      %v5358 = vadd.f32 %v5356, %v5357
      %v5359 = vrot.slane %v5358, 2
      %v5360 = vadd.f32 %v5358, %v5359
      %v5361 = vrot.slane %v5360, 1
      %v5362 = vadd.f32 %v5360, %v5361
      %v5363 = vsel %vm404, %v5179, 0.0
      %v5364 = vrot.slane %v5363, 4
      %v5365 = vadd.f32 %v5363, %v5364
      %v5366 = vrot.slane %v5365, 2
      %v5367 = vadd.f32 %v5365, %v5366
      %v5368 = vrot.slane %v5367, 1
      %v5369 = vadd.f32 %v5367, %v5368
      %v5370 = vsel %vm404, %v5180, 0.0
      %v5371 = vrot.slane %v5370, 4
      %v5372 = vadd.f32 %v5370, %v5371
      %v5373 = vrot.slane %v5372, 2
      %v5374 = vadd.f32 %v5372, %v5373
      %v5375 = vrot.slane %v5374, 1
      %v5376 = vadd.f32 %v5374, %v5375
      %v5377 = vsel %vm404, %v5181, 0.0
      %v5378 = vrot.slane %v5377, 4
      %v5379 = vadd.f32 %v5377, %v5378
      %v5380 = vrot.slane %v5379, 2
      %v5381 = vadd.f32 %v5379, %v5380
      %v5382 = vrot.slane %v5381, 1
      %v5383 = vadd.f32 %v5381, %v5382
      %v5384 = vsel %vm404, %v5182, 0.0
      %v5385 = vrot.slane %v5384, 4
      %v5386 = vadd.f32 %v5384, %v5385
      %v5387 = vrot.slane %v5386, 2
      %v5388 = vadd.f32 %v5386, %v5387
      %v5389 = vrot.slane %v5388, 1
      %v5390 = vadd.f32 %v5388, %v5389
      %v5391 = vsel %vm404, %v5183, 0.0
      %v5392 = vrot.slane %v5391, 4
      %v5393 = vadd.f32 %v5391, %v5392
      %v5394 = vrot.slane %v5393, 2
      %v5395 = vadd.f32 %v5393, %v5394
      %v5396 = vrot.slane %v5395, 1
      %v5397 = vadd.f32 %v5395, %v5396
      %v5398 = vsel %vm404, %v5184, 0.0
      %v5399 = vrot.slane %v5398, 4
      %v5400 = vadd.f32 %v5398, %v5399
      %v5401 = vrot.slane %v5400, 2
      %v5402 = vadd.f32 %v5400, %v5401
      %v5403 = vrot.slane %v5402, 1
      %v5404 = vadd.f32 %v5402, %v5403
      %v5405 = vsel %vm404, %v5185, 0.0
      %v5406 = vrot.slane %v5405, 4
      %v5407 = vadd.f32 %v5405, %v5406
      %v5408 = vrot.slane %v5407, 2
      %v5409 = vadd.f32 %v5407, %v5408
      %v5410 = vrot.slane %v5409, 1
      %v5411 = vadd.f32 %v5409, %v5410
      %v5412 = vsel %vm404, %v5186, 0.0
      %v5413 = vrot.slane %v5412, 4
      %v5414 = vadd.f32 %v5412, %v5413
      %v5415 = vrot.slane %v5414, 2
      %v5416 = vadd.f32 %v5414, %v5415
      %v5417 = vrot.slane %v5416, 1
      %v5418 = vadd.f32 %v5416, %v5417
      %v5419 = vsel %vm404, %v5187, 0.0
      %v5420 = vrot.slane %v5419, 4
      %v5421 = vadd.f32 %v5419, %v5420
      %v5422 = vrot.slane %v5421, 2
      %v5423 = vadd.f32 %v5421, %v5422
      %v5424 = vrot.slane %v5423, 1
      %v5425 = vadd.f32 %v5423, %v5424
      %v5426 = vsel %vm404, %v5188, 0.0
      %v5427 = vrot.slane %v5426, 4
      %v5428 = vadd.f32 %v5426, %v5427
      %v5429 = vrot.slane %v5428, 2
      %v5430 = vadd.f32 %v5428, %v5429
      %v5431 = vrot.slane %v5430, 1
      %v5432 = vadd.f32 %v5430, %v5431
      %v5433 = vsel %vm404, %v5189, 0.0
      %v5434 = vrot.slane %v5433, 4
      %v5435 = vadd.f32 %v5433, %v5434
      %v5436 = vrot.slane %v5435, 2
      %v5437 = vadd.f32 %v5435, %v5436
      %v5438 = vrot.slane %v5437, 1
      %v5439 = vadd.f32 %v5437, %v5438
      %v5440 = vsel %vm404, %v5190, 0.0
      %v5441 = vrot.slane %v5440, 4
      %v5442 = vadd.f32 %v5440, %v5441
      %v5443 = vrot.slane %v5442, 2
      %v5444 = vadd.f32 %v5442, %v5443
      %v5445 = vrot.slane %v5444, 1
      %v5446 = vadd.f32 %v5444, %v5445
      %v5447 = vsel %vm404, %v5191, 0.0
      %v5448 = vrot.slane %v5447, 4
      %v5449 = vadd.f32 %v5447, %v5448
      %v5450 = vrot.slane %v5449, 2
      %v5451 = vadd.f32 %v5449, %v5450
      %v5452 = vrot.slane %v5451, 1
      %v5453 = vadd.f32 %v5451, %v5452
      %v5454 = vsel %vm404, %v5192, 0.0
      %v5455 = vrot.slane %v5454, 4
      %v5456 = vadd.f32 %v5454, %v5455
      %v5457 = vrot.slane %v5456, 2
      %v5458 = vadd.f32 %v5456, %v5457
      %v5459 = vrot.slane %v5458, 1
      %v5460 = vadd.f32 %v5458, %v5459
      %v5461 = vsel %vm404, %v5193, 0.0
      %v5462 = vrot.slane %v5461, 4
      %v5463 = vadd.f32 %v5461, %v5462
      %v5464 = vrot.slane %v5463, 2
      %v5465 = vadd.f32 %v5463, %v5464
      %v5466 = vrot.slane %v5465, 1
      %v5467 = vadd.f32 %v5465, %v5466
      %v5468 = vsel %vm404, %v5194, 0.0
      %v5469 = vrot.slane %v5468, 4
      %v5470 = vadd.f32 %v5468, %v5469
      %v5471 = vrot.slane %v5470, 2
      %v5472 = vadd.f32 %v5470, %v5471
      %v5473 = vrot.slane %v5472, 1
      %v5474 = vadd.f32 %v5472, %v5473
      %v5475 = vsel %vm404, %v5195, 0.0
      %v5476 = vrot.slane %v5475, 4
      %v5477 = vadd.f32 %v5475, %v5476
      %v5478 = vrot.slane %v5477, 2
      %v5479 = vadd.f32 %v5477, %v5478
      %v5480 = vrot.slane %v5479, 1
      %v5481 = vadd.f32 %v5479, %v5480
      %v5482 = vsel %vm404, %v5196, 0.0
      %v5483 = vrot.slane %v5482, 4
      %v5484 = vadd.f32 %v5482, %v5483
      %v5485 = vrot.slane %v5484, 2
      %v5486 = vadd.f32 %v5484, %v5485
      %v5487 = vrot.slane %v5486, 1
      %v5488 = vadd.f32 %v5486, %v5487
      %v5489 = vsel %vm404, %v5197, 0.0
      %v5490 = vrot.slane %v5489, 4
      %v5491 = vadd.f32 %v5489, %v5490
      %v5492 = vrot.slane %v5491, 2
      %v5493 = vadd.f32 %v5491, %v5492
      %v5494 = vrot.slane %v5493, 1
      %v5495 = vadd.f32 %v5493, %v5494
      %v5496 = vsel %vm404, %v5198, 0.0
      %v5497 = vrot.slane %v5496, 4
      %v5498 = vadd.f32 %v5496, %v5497
      %v5499 = vrot.slane %v5498, 2
      %v5500 = vadd.f32 %v5498, %v5499
      %v5501 = vrot.slane %v5500, 1
      %v5502 = vadd.f32 %v5500, %v5501
      %v5503 = vsel %vm404, %v5199, 0.0
      %v5504 = vrot.slane %v5503, 4
      %v5505 = vadd.f32 %v5503, %v5504
      %v5506 = vrot.slane %v5505, 2
      %v5507 = vadd.f32 %v5505, %v5506
      %v5508 = vrot.slane %v5507, 1
      %v5509 = vadd.f32 %v5507, %v5508
      %v5510 = vsel %vm404, %v5200, 0.0
      %v5511 = vrot.slane %v5510, 4
      %v5512 = vadd.f32 %v5510, %v5511
      %v5513 = vrot.slane %v5512, 2
      %v5514 = vadd.f32 %v5512, %v5513
      %v5515 = vrot.slane %v5514, 1
      %v5516 = vadd.f32 %v5514, %v5515
      %v5517 = vsel %vm404, %v5201, 0.0
      %v5518 = vrot.slane %v5517, 4
      %v5519 = vadd.f32 %v5517, %v5518
      %v5520 = vrot.slane %v5519, 2
      %v5521 = vadd.f32 %v5519, %v5520
      %v5522 = vrot.slane %v5521, 1
      %v5523 = vadd.f32 %v5521, %v5522
      %v5524 = vsel %vm404, %v5202, 0.0
      %v5525 = vrot.slane %v5524, 4
      %v5526 = vadd.f32 %v5524, %v5525
      %v5527 = vrot.slane %v5526, 2
      %v5528 = vadd.f32 %v5526, %v5527
      %v5529 = vrot.slane %v5528, 1
      %v5530 = vadd.f32 %v5528, %v5529
      %v5531 = vsel %vm404, %v5203, 0.0
      %v5532 = vrot.slane %v5531, 4
      %v5533 = vadd.f32 %v5531, %v5532
      %v5534 = vrot.slane %v5533, 2
      %v5535 = vadd.f32 %v5533, %v5534
      %v5536 = vrot.slane %v5535, 1
      %v5537 = vadd.f32 %v5535, %v5536
      %v5538 = vsel %vm404, %v5204, 0.0
      %v5539 = vrot.slane %v5538, 4
      %v5540 = vadd.f32 %v5538, %v5539
      %v5541 = vrot.slane %v5540, 2
      %v5542 = vadd.f32 %v5540, %v5541
      %v5543 = vrot.slane %v5542, 1
      %v5544 = vadd.f32 %v5542, %v5543
      %v5545 = vsel %vm404, %v5205, 0.0
      %v5546 = vrot.slane %v5545, 4
      %v5547 = vadd.f32 %v5545, %v5546
      %v5548 = vrot.slane %v5547, 2
      %v5549 = vadd.f32 %v5547, %v5548
      %v5550 = vrot.slane %v5549, 1
      %v5551 = vadd.f32 %v5549, %v5550
      %v5552 = vsel %vm404, %v5206, 0.0
      %v5553 = vrot.slane %v5552, 4
      %v5554 = vadd.f32 %v5552, %v5553
      %v5555 = vrot.slane %v5554, 2
      %v5556 = vadd.f32 %v5554, %v5555
      %v5557 = vrot.slane %v5556, 1
      %v5558 = vadd.f32 %v5556, %v5557
      %v5559 = vsel %vm404, %v5207, 0.0
      %v5560 = vrot.slane %v5559, 4
      %v5561 = vadd.f32 %v5559, %v5560
      %v5562 = vrot.slane %v5561, 2
      %v5563 = vadd.f32 %v5561, %v5562
      %v5564 = vrot.slane %v5563, 1
      %v5565 = vadd.f32 %v5563, %v5564
      %v5566 = vsel %vm404, %v5208, 0.0
      %v5567 = vrot.slane %v5566, 4
      %v5568 = vadd.f32 %v5566, %v5567
      %v5569 = vrot.slane %v5568, 2
      %v5570 = vadd.f32 %v5568, %v5569
      %v5571 = vrot.slane %v5570, 1
      %v5572 = vadd.f32 %v5570, %v5571
      %v5573 = vsel %vm404, %v5209, 0.0
      %v5574 = vrot.slane %v5573, 4
      %v5575 = vadd.f32 %v5573, %v5574
      %v5576 = vrot.slane %v5575, 2
      %v5577 = vadd.f32 %v5575, %v5576
      %v5578 = vrot.slane %v5577, 1
      %v5579 = vadd.f32 %v5577, %v5578
      %v5580 = vsel %vm404, %v5210, 0.0
      %v5581 = vrot.slane %v5580, 4
      %v5582 = vadd.f32 %v5580, %v5581
      %v5583 = vrot.slane %v5582, 2
      %v5584 = vadd.f32 %v5582, %v5583
      %v5585 = vrot.slane %v5584, 1
      %v5586 = vadd.f32 %v5584, %v5585
      %v5587 = vsel %vm404, %v5211, 0.0
      %v5588 = vrot.slane %v5587, 4
      %v5589 = vadd.f32 %v5587, %v5588
      %v5590 = vrot.slane %v5589, 2
      %v5591 = vadd.f32 %v5589, %v5590
      %v5592 = vrot.slane %v5591, 1
      %v5593 = vadd.f32 %v5591, %v5592
      %v5594 = vsel %vm404, %v5212, 0.0
      %v5595 = vrot.slane %v5594, 4
      %v5596 = vadd.f32 %v5594, %v5595
      %v5597 = vrot.slane %v5596, 2
      %v5598 = vadd.f32 %v5596, %v5597
      %v5599 = vrot.slane %v5598, 1
      %v5600 = vadd.f32 %v5598, %v5599
      %v5601 = vsel %vm404, %v5213, 0.0
      %v5602 = vrot.slane %v5601, 4
      %v5603 = vadd.f32 %v5601, %v5602
      %v5604 = vrot.slane %v5603, 2
      %v5605 = vadd.f32 %v5603, %v5604
      %v5606 = vrot.slane %v5605, 1
      %v5607 = vadd.f32 %v5605, %v5606
      %v5608 = vsel %vm404, %v5214, 0.0
      %v5609 = vrot.slane %v5608, 4
      %v5610 = vadd.f32 %v5608, %v5609
      %v5611 = vrot.slane %v5610, 2
      %v5612 = vadd.f32 %v5610, %v5611
      %v5613 = vrot.slane %v5612, 1
      %v5614 = vadd.f32 %v5612, %v5613
      %v5615 = vsel %vm404, %v5215, 0.0
      %v5616 = vrot.slane %v5615, 4
      %v5617 = vadd.f32 %v5615, %v5616
      %v5618 = vrot.slane %v5617, 2
      %v5619 = vadd.f32 %v5617, %v5618
      %v5620 = vrot.slane %v5619, 1
      %v5621 = vadd.f32 %v5619, %v5620
      %v5622 = vsel %vm404, %v5216, 0.0
      %v5623 = vrot.slane %v5622, 4
      %v5624 = vadd.f32 %v5622, %v5623
      %v5625 = vrot.slane %v5624, 2
      %v5626 = vadd.f32 %v5624, %v5625
      %v5627 = vrot.slane %v5626, 1
      %v5628 = vadd.f32 %v5626, %v5627
      %v5629 = vsel %vm404, %v5217, 0.0
      %v5630 = vrot.slane %v5629, 4
      %v5631 = vadd.f32 %v5629, %v5630
      %v5632 = vrot.slane %v5631, 2
      %v5633 = vadd.f32 %v5631, %v5632
      %v5634 = vrot.slane %v5633, 1
      %v5635 = vadd.f32 %v5633, %v5634
      %v5636 = vsel %vm404, %v5218, 0.0
      %v5637 = vrot.slane %v5636, 4
      %v5638 = vadd.f32 %v5636, %v5637
      %v5639 = vrot.slane %v5638, 2
      %v5640 = vadd.f32 %v5638, %v5639
      %v5641 = vrot.slane %v5640, 1
      %v5642 = vadd.f32 %v5640, %v5641
      %v5643 = vsel %vm404, %v5219, 0.0
      %v5644 = vrot.slane %v5643, 4
      %v5645 = vadd.f32 %v5643, %v5644
      %v5646 = vrot.slane %v5645, 2
      %v5647 = vadd.f32 %v5645, %v5646
      %v5648 = vrot.slane %v5647, 1
      %v5649 = vadd.f32 %v5647, %v5648
      %v5650 = vsel %vm404, %v5220, 0.0
      %v5651 = vrot.slane %v5650, 4
      %v5652 = vadd.f32 %v5650, %v5651
      %v5653 = vrot.slane %v5652, 2
      %v5654 = vadd.f32 %v5652, %v5653
      %v5655 = vrot.slane %v5654, 1
      %v5656 = vadd.f32 %v5654, %v5655
      %v5657 = vsel %vm404, %v5221, 0.0
      %v5658 = vrot.slane %v5657, 4
      %v5659 = vadd.f32 %v5657, %v5658
      %v5660 = vrot.slane %v5659, 2
      %v5661 = vadd.f32 %v5659, %v5660
      %v5662 = vrot.slane %v5661, 1
      %v5663 = vadd.f32 %v5661, %v5662
      %v5664 = vsel %vm404, %v5222, 0.0
      %v5665 = vrot.slane %v5664, 4
      %v5666 = vadd.f32 %v5664, %v5665
      %v5667 = vrot.slane %v5666, 2
      %v5668 = vadd.f32 %v5666, %v5667
      %v5669 = vrot.slane %v5668, 1
      %v5670 = vadd.f32 %v5668, %v5669
      %v5735 = vsel %vm3790, %v5236, %v5229
      %v5736 = vsel %vm3792, %v5243, %v5735
      %v5737 = vsel %vm3794, %v5250, %v5736
      %v5738 = vsel %vm3796, %v5257, %v5737
      %v5739 = vsel %vm3798, %v5264, %v5738
      %v5740 = vsel %vm3800, %v5271, %v5739
      %v5741 = vsel %vm3802, %v5278, %v5740
      %v5742 = vsel %vm3790, %v5292, %v5285
      %v5743 = vsel %vm3792, %v5299, %v5742
      %v5744 = vsel %vm3794, %v5306, %v5743
      %v5745 = vsel %vm3796, %v5313, %v5744
      %v5746 = vsel %vm3798, %v5320, %v5745
      %v5747 = vsel %vm3800, %v5327, %v5746
      %v5748 = vsel %vm3802, %v5334, %v5747
      %v5749 = vsel %vm3790, %v5348, %v5341
      %v5750 = vsel %vm3792, %v5355, %v5749
      %v5751 = vsel %vm3794, %v5362, %v5750
      %v5752 = vsel %vm3796, %v5369, %v5751
      %v5753 = vsel %vm3798, %v5376, %v5752
      %v5754 = vsel %vm3800, %v5383, %v5753
      %v5755 = vsel %vm3802, %v5390, %v5754
      %v5756 = vsel %vm3790, %v5404, %v5397
      %v5757 = vsel %vm3792, %v5411, %v5756
      %v5758 = vsel %vm3794, %v5418, %v5757
      %v5759 = vsel %vm3796, %v5425, %v5758
      %v5760 = vsel %vm3798, %v5432, %v5759
      %v5761 = vsel %vm3800, %v5439, %v5760
      %v5762 = vsel %vm3802, %v5446, %v5761
      %v5763 = vsel %vm3790, %v5460, %v5453
      %v5764 = vsel %vm3792, %v5467, %v5763
      %v5765 = vsel %vm3794, %v5474, %v5764
      %v5766 = vsel %vm3796, %v5481, %v5765
      %v5767 = vsel %vm3798, %v5488, %v5766
      %v5768 = vsel %vm3800, %v5495, %v5767
      %v5769 = vsel %vm3802, %v5502, %v5768
      %v5770 = vsel %vm3790, %v5516, %v5509
      %v5771 = vsel %vm3792, %v5523, %v5770
      %v5772 = vsel %vm3794, %v5530, %v5771
      %v5773 = vsel %vm3796, %v5537, %v5772
      %v5774 = vsel %vm3798, %v5544, %v5773
      %v5775 = vsel %vm3800, %v5551, %v5774
      %v5776 = vsel %vm3802, %v5558, %v5775
      %v5777 = vsel %vm3790, %v5572, %v5565
      %v5778 = vsel %vm3792, %v5579, %v5777
      %v5779 = vsel %vm3794, %v5586, %v5778
      %v5780 = vsel %vm3796, %v5593, %v5779
      %v5781 = vsel %vm3798, %v5600, %v5780
      %v5782 = vsel %vm3800, %v5607, %v5781
      %v5783 = vsel %vm3802, %v5614, %v5782
      %v5784 = vsel %vm3790, %v5628, %v5621
      %v5785 = vsel %vm3792, %v5635, %v5784
      %v5786 = vsel %vm3794, %v5642, %v5785
      %v5787 = vsel %vm3796, %v5649, %v5786
      %v5788 = vsel %vm3798, %v5656, %v5787
      %v5789 = vsel %vm3800, %v5663, %v5788
      %v5790 = vsel %vm3802, %v5670, %v5789
      %5799 = vst.msk [vmem:[%s329] sm:$0xff] %vm404, %v5741
      %5800 = vst.msk [vmem:[%s329 + $0x8] sm:$0xff] %vm404, %v5748
      %5801 = vst.msk [vmem:[%s329 + $0x10] sm:$0xff] %vm404, %v5755
      %5802 = vst.msk [vmem:[%s329 + $0x18] sm:$0xff] %vm404, %v5762
      %5803 = vst.msk [vmem:[%s329 + $0x20] sm:$0xff] %vm404, %v5769
      %5804 = vst.msk [vmem:[%s329 + $0x28] sm:$0xff] %vm404, %v5776
      %5805 = vst.msk [vmem:[%s329 + $0x30] sm:$0xff] %vm404, %v5783
      %5806 = vst.msk [vmem:[%s329 + $0x38] sm:$0xff] %vm404, %v5790
      %s5807 = smul.u32 8, %s19
      %p5808 = scmp.lt.s32.totalorder %s5807, 15
      %s5809 = scalar_select %p5808, %s5807, 15
      %s5810 = smul.addr %s5809, 8
      %s5811 = scalar_lea.vmem %s8, %s5810
      // Predicated region
      $region53: #{tpu_custom_call.1} parent=51 // pred_check
        %p5812 = pneg %p215
      $region54: #{tpu_custom_call.1} parent=51 // pred_check_branch
        %5814 = sbr.rel (%p5812) target = $region56
      $region55: #{tpu_custom_call.1} parent=51 // pred_region
        %s5815 = smul.u32 8, %s19
      $region56: #{tpu_custom_call.1} parent=51 // pred_fallthru
        _
    $region52: #{tpu_custom_call.1} parent=5 // pred_fallthru
      _
    %p5816 = scmp.le.s32.totalorder 2, %s14
    // Predicated region
    $region57: #{tpu_custom_call.1} parent=5 // pred_check
      %p5817 = pneg %p5816
    $region58: #{tpu_custom_call.1} parent=5 // pred_check_branch
      %5819 = sbr.rel (%p5817) target = $region60
    $region59: #{tpu_custom_call.1} parent=5 // pred_region
      %s5820 = ssub.s32 %s14, 2
      // Predicated region
      $region61: #{tpu_custom_call.1} parent=59 // pred_check
        %p5821 = pneg %p221
      $region62: #{tpu_custom_call.1} parent=59 // pred_check_branch
        %5823 = sbr.rel (%p5821) target = $region64
      $region63: #{tpu_custom_call.1} parent=59 // pred_region
        %s5824 = smul.u32 8, %s20
        %p5825 = scmp.lt.s32.totalorder %s5824, 15
        %s5826 = scalar_select %p5825, %s5824, 15
        %s5827 = smul.addr %s5826, 8
        %s5828 = scalar_lea.vmem %s8, %s5827
      $region64: #{tpu_custom_call.1} parent=59 // pred_fallthru
        _
    $region60: #{tpu_custom_call.1} parent=5 // pred_fallthru
      _
  $region6: #{tpu_custom_call.1} parent=0 // loop_footer
    %s18 = sadd.s32 1, %s14
  $region7: #{tpu_custom_call.1} parent=0 // loop_footer_branch
    %13 = sbr.rel target = $region3
  $region8: #{tpu_custom_call.1} parent=0 // loop_exit
    _

</llo_original>
